<compile_context>
chip_gen: v6e
topology: v6e:2x2x1
jax: 0.10.0
libtpu: 0.0.40
codegen_flags: <defaults>
</compile_context>

<pallas_src>
import functools

import jax
import jax.numpy as jnp
from jax.experimental import pallas as pl
from jax.experimental.pallas import tpu as pltpu

EPS = 1e-5
LANE = 128   # channels are zero-padded to a multiple of this (lane-dense)
_PW = 16     # W-axis staging pad: multiple of the bf16 (16, 128) sublane
             # packing, so the interior store into the staging buffer is
             # aligned.  Only used once per (batch, row-tile), not per tap.


def _ceil_to(x, m):
    return (x + m - 1) // m * m


def _pick_co_tile(cout_pad):
    # A 256-wide N tile fills the v6e/v7x 256x256 MXU; 128 is native on v5e
    # (and the only option when Cout_pad == 128).
    return 256 if cout_pad % 256 == 0 else 128


def _pick_h_tile(H, W, cp, co_tile, budget_bytes=8 * 1024 * 1024):
    """Largest H row-tile whose per-step working set fits `budget_bytes`
    (sized with headroom for v7x's 64 MiB per-TensorCore VMEM)."""
    def step_bytes(th):
        b2 = 2  # bf16
        x_blk = 2 * th * W * cp * b2               # input block, double-buffered
        halos = 2 * 2 * W * cp * b2                # two 1-row halo blocks
        xpad = (th + 2) * (W + 2 * _PW) * cp * b2  # staging scratch
        xsh = 3 * (th + 2) * W * cp * b2           # shifted planes scratch
        out = 2 * 2 * th * W * co_tile * b2        # output + optional residual
        wts = 2 * 9 * cp * co_tile * b2            # weight block, dbl-buffered
        acc = th * W * co_tile * 4                 # f32 accumulator
        return x_blk + halos + xpad + xsh + out + wts + acc

    cands = sorted({d for d in (H, 512, 256, 128, 64, 32, 16, 8)
                    if d <= H and H % d == 0}, reverse=True)
    for th in cands:
        if step_bytes(th) <= budget_bytes:
            return th
    return cands[-1]


def _vmem_limit_bytes():
    # A larger scoped-VMEM limit gives deeper pipelining on v5e/v6e (128 MiB
    # physical VMEM); keep headroom on v7x (64 MiB per TensorCore).
    try:
        cap = int(pltpu.get_tpu_info().vmem_capacity_bytes)
        return min(96 * 1024 * 1024, (cap * 3) // 5)
    except Exception:
        return None  # fall back to the compiler default


# ---------------------------------------------------------------------------
# Kernel
# ---------------------------------------------------------------------------
def _conv3x3_bn_kernel(*args, TH, W, apply_relu, has_residual):
    """Fused 3x3 conv (pad=1, stride=1) + folded BN (+ residual) (+ ReLU).

    Refs (one grid step = (n, h_tile, co_tile)):
      x_ref    : (1, TH, W, Cp)        bf16  row-tile of the input
      xt_ref   : (1, 1, W, Cp)         bf16  row just above the tile (clamped)
      xb_ref   : (1, 1, W, Cp)         bf16  row just below the tile (clamped)
      w_ref    : (3, 3, Cp, Ct)        bf16  weights, BN scale folded in
      bias_ref : (1, Ct)               f32   folded conv bias + BN shift
      res_ref  : (1, TH, W, Ct)        bf16  optional residual (added pre-ReLU)
      o_ref    : (1, TH, W, Ct)        bf16
      xpad_ref : (TH+2, W+2*_PW, Cp)   bf16  staging buffer with 1-px halo
      xsh_ref  : (3, TH+2, W, Cp)      bf16  dw-shifted contiguous planes
    """
    if has_residual:
        (x_ref, xt_ref, xb_ref, w_ref, bias_ref, res_ref,
         o_ref, xpad_ref, xsh_ref) = args
    else:
        (x_ref, xt_ref, xb_ref, w_ref, bias_ref,
         o_ref, xpad_ref, xsh_ref) = args
        res_ref = None

    Cp = x_ref.shape[-1]
    Ct = o_ref.shape[-1]
    h = pl.program_id(1)
    last_h = pl.num_programs(1) - 1

    # The staged input is identical for every output-channel tile (co is the
    # innermost grid axis and the x / halo index_maps ignore it), so build it
    # only when co == 0 instead of on every grid step.
    @pl.when(pl.program_id(2) == 0)
    def _stage_input():
        # Zero only the halo column strips; the halo rows and the interior
        # are fully overwritten below (never zero the interior).
        zstrip = jnp.zeros((TH + 2, _PW, Cp), jnp.bfloat16)
        xpad_ref[:, 0:_PW, :] = zstrip
        xpad_ref[:, _PW + W:, :] = zstrip
        # Halo rows come from the neighbouring row-tiles; at the image border
        # the clamped BlockSpec fetched a real row, so mask it to zero there.
        top_m = (h > 0).astype(jnp.bfloat16)
        bot_m = (h < last_h).astype(jnp.bfloat16)
        xpad_ref[0:1, _PW:_PW + W, :] = xt_ref[0] * top_m
        xpad_ref[TH + 1:TH + 2, _PW:_PW + W, :] = xb_ref[0] * bot_m
        # Interior rows (aligned store: _PW is a multiple of the bf16 packing).
        xpad_ref[1:TH + 1, _PW:_PW + W, :] = x_ref[0]
        # Three dw-shifted planes: every tap below reads a contiguous row
        # slab of one plane, so its reshape to (TH*W, Cp) is free and no
        # per-matmul realignment copy is generated.
        for dw in range(3):
            c0 = _PW - 1 + dw
            xsh_ref[dw, :, :, :] = xpad_ref[:, c0:c0 + W, :]

    # Accumulator starts at the folded bias (saves a separate bias-add pass).
    acc = jnp.broadcast_to(bias_ref[0, :], (TH * W, Ct))
    for dh in range(3):
        for dw in range(3):
            patch = xsh_ref[dw, dh:dh + TH, :, :].reshape(TH * W, Cp)
            acc = acc + jnp.dot(patch, w_ref[dh, dw],
                                preferred_element_type=jnp.float32)

    y = acc.reshape(1, TH, W, Ct)
    if has_residual:
        y = y + res_ref[...].astype(jnp.float32)
    if apply_relu:
        y = jnp.maximum(y, 0.0)
    o_ref[...] = y.astype(o_ref.dtype)


# ---------------------------------------------------------------------------
# pallas_call wrapper
# ---------------------------------------------------------------------------
def conv3x3_bn(x_nhwc, w_bf16, bias_f32, *, apply_relu, residual=None,
               h_tile=None):
    """Conv2d(k=3, pad=1) + BN(eval, folded) [+ residual] [+ ReLU].

    x_nhwc   : (N, H, W, Cin_pad)  bf16, channels padded to a 128-multiple
    w_bf16   : (3, 3, Cin_pad, Cout_pad) bf16 (BN scale folded)
    bias_f32 : (1, Cout_pad) f32
    residual : optional (N, H, W, Cout_pad) bf16, added before the ReLU
    returns  : (N, H, W, Cout_pad) bf16
    """
    N, H, W, Cp = x_nhwc.shape
    Cout_pad = w_bf16.shape[-1]
    CO = _pick_co_tile(Cout_pad)
    assert Cp % LANE == 0 and Cout_pad % CO == 0
    TH = h_tile if h_tile is not None else _pick_h_tile(H, W, Cp, CO)
    assert H % TH == 0, (H, TH)
    h_tiles = H // TH
    co_tiles = Cout_pad // CO
    has_residual = residual is not None

    kern = functools.partial(_conv3x3_bn_kernel, TH=TH, W=W,
                             apply_relu=apply_relu, has_residual=has_residual)

    in_specs = [
        # Row tile of x plus its one-row top/bottom halos.  The halo row
        # indices are clamped at the image border; the kernel masks them to
        # zero there.
        pl.BlockSpec((1, TH, W, Cp), lambda n, h, co: (n, h, 0, 0)),
        pl.BlockSpec((1, 1, W, Cp),
                     lambda n, h, co: (n, jnp.maximum(h * TH - 1, 0), 0, 0)),
        pl.BlockSpec((1, 1, W, Cp),
                     lambda n, h, co: (n, jnp.minimum(h * TH + TH, H - 1), 0, 0)),
        pl.BlockSpec((3, 3, Cp, CO), lambda n, h, co: (0, 0, 0, co)),
        pl.BlockSpec((1, CO), lambda n, h, co: (0, co)),
    ]
    args = [x_nhwc, x_nhwc, x_nhwc, w_bf16, bias_f32]
    if has_residual:
        in_specs.append(pl.BlockSpec((1, TH, W, CO),
                                     lambda n, h, co: (n, h, 0, co)))
        args.append(residual)

    return pl.pallas_call(
        kern,
        out_shape=jax.ShapeDtypeStruct((N, H, W, Cout_pad), jnp.bfloat16),
        grid_spec=pltpu.PrefetchScalarGridSpec(
            num_scalar_prefetch=0,
            grid=(N, h_tiles, co_tiles),
            in_specs=in_specs,
            out_specs=pl.BlockSpec((1, TH, W, CO),
                                   lambda n, h, co: (n, h, 0, co)),
            scratch_shapes=[
                pltpu.VMEM((TH + 2, W + 2 * _PW, Cp), jnp.bfloat16),
                pltpu.VMEM((3, TH + 2, W, Cp), jnp.bfloat16),
            ]),
        compiler_params=pltpu.CompilerParams(
            # co (output-channel tiles) must stay sequential on one core so
            # the co==0 staging step is always executed before reuse.
            dimension_semantics=("parallel", "parallel", "arbitrary"),
            vmem_limit_bytes=_vmem_limit_bytes()),
    )(*args)


# ---------------------------------------------------------------------------
# Parameters (PyTorch-like raw params + one-time folded/padded prep)
# ---------------------------------------------------------------------------
def _init_conv_bn(key, cin, cout):
    kw, kb, kg, kbeta = jax.random.split(key, 4)
    return {
        "w": 0.1 * jax.random.normal(kw, (3, 3, cin, cout), jnp.float32),
        "b": 0.1 * jax.random.normal(kb, (cout,), jnp.float32),
        "gamma": 1.0 + 0.1 * jax.random.normal(kg, (cout,), jnp.float32),
        "beta": 0.1 * jax.random.normal(kbeta, (cout,), jnp.float32),
    }


def init_double_conv_params(key, in_channels, out_channels, mid_channels=None):
    if not mid_channels:
        mid_channels = out_channels
    keys = jax.random.split(key, 5)
    return {
        # BasicBlock(in, in) — only used when res_block=True
        "res_conv1a": _init_conv_bn(keys[0], in_channels, in_channels),
        "res_conv1b": _init_conv_bn(keys[1], in_channels, in_channels),
        "res_short": _init_conv_bn(keys[2], in_channels, in_channels),
        # double_conv
        "dc1": _init_conv_bn(keys[3], in_channels, mid_channels),
        "dc2": _init_conv_bn(keys[4], mid_channels, out_channels),
    }


def _prepare_conv_bn(p):
    """One-time transform: fold eval-mode BN into weights/bias, pad channels
    to 128-multiples, cast weights to bf16 for the MXU."""
    w, b, gamma, beta = p["w"], p["b"], p["gamma"], p["beta"]
    cin, cout = w.shape[2], w.shape[3]
    cin_pad, cout_pad = _ceil_to(cin, LANE), _ceil_to(cout, LANE)
    scale = gamma / jnp.sqrt(1.0 + EPS)              # BN: mean=0, var=1 (eval)
    w_f = w * scale[None, None, None, :]             # fold BN scale into weights
    bias = beta + b * scale                          # fold conv bias + BN shift
    w_pad = jnp.zeros((3, 3, cin_pad, cout_pad), jnp.float32)
    w_pad = w_pad.at[:, :, :cin, :cout].set(w_f)
    bias_pad = jnp.zeros((cout_pad,), jnp.float32).at[:cout].set(bias)
    return {"w": w_pad.astype(jnp.bfloat16),
            "bias": bias_pad.reshape(1, cout_pad)}


def prepare_double_conv_params(params):
    return {name: _prepare_conv_bn(p) for name, p in params.items()}


# ---------------------------------------------------------------------------
# Forward (matches DoubleConv.forward, eval-mode BN)
# ---------------------------------------------------------------------------
def double_conv_forward(x_nchw, prepared, *, out_channels, res_block=False,
                        h_tile=None):
    # NOTE: in a full UNet, keep activations in padded bf16 NHWC end-to-end
    # and do this layout conversion only once at the model boundary.
    N, Cin, H, W = x_nchw.shape
    cin_pad = _ceil_to(Cin, LANE)
    x = jnp.transpose(x_nchw, (0, 2, 3, 1)).astype(jnp.bfloat16)  # NCHW->NHWC
    x = jnp.pad(x, ((0, 0), (0, 0), (0, 0), (0, cin_pad - Cin)))  # lane-dense C
    if res_block:
        # BasicBlock: relu(conv1b(relu(conv1a(x))) + shortcut(x)); the
        # residual add + ReLU are fused into the conv1b kernel epilogue.
        out = conv3x3_bn(x, prepared["res_conv1a"]["w"],
                         prepared["res_conv1a"]["bias"],
                         apply_relu=True, h_tile=h_tile)
        shortcut = conv3x3_bn(x, prepared["res_short"]["w"],
                              prepared["res_short"]["bias"],
                              apply_relu=False, h_tile=h_tile)
        x = conv3x3_bn(out, prepared["res_conv1b"]["w"],
                       prepared["res_conv1b"]["bias"],
                       apply_relu=True, residual=shortcut, h_tile=h_tile)
    x = conv3x3_bn(x, prepared["dc1"]["w"], prepared["dc1"]["bias"],
                   apply_relu=True, h_tile=h_tile)
    x = conv3x3_bn(x, prepared["dc2"]["w"], prepared["dc2"]["bias"],
                   apply_relu=True, h_tile=h_tile)
    x = x[..., :out_channels].astype(jnp.float32)    # drop channel pad
    return jnp.transpose(x, (0, 3, 1, 2))            # NHWC -> NCHW


# ---------------------------------------------------------------------------
# References
# ---------------------------------------------------------------------------
def _ref_conv_bn(x_nhwc, p, *, apply_relu):
    """Pure-f32 module semantics (Conv2d + BatchNorm2d(eval) [+ ReLU])."""
    y = jax.lax.conv_general_dilated(
        x_nhwc, p["w"], window_strides=(1, 1), padding=((1, 1), (1, 1)),
        dimension_numbers=("NHWC", "HWIO", "NHWC")) + p["b"]
    y = y / jnp.sqrt(1.0 + EPS) * p["gamma"] + p["beta"]
    if apply_relu:
        y = jnp.maximum(y, 0.0)
    return y


def ref_double_conv(x_nchw, params, *, res_block=False):
    x = jnp.transpose(x_nchw, (0, 2, 3, 1))
    if res_block:
        out = _ref_conv_bn(x, params["res_conv1a"], apply_relu=True)
        out = _ref_conv_bn(out, params["res_conv1b"], apply_relu=False)
        residual = _ref_conv_bn(x, params["res_short"], apply_relu=False)
        x = jnp.maximum(out + residual, 0.0)
    x = _ref_conv_bn(x, params["dc1"], apply_relu=True)
    x = _ref_conv_bn(x, params["dc2"], apply_relu=True)
    return jnp.transpose(x, (0, 3, 1, 2))


def _ref_conv_prepared(x_bf16, pp, *, apply_relu, residual=None):
    """Precision-matched reference: bf16 operands and bf16 inter-layer
    activations, f32 accumulation — mirrors the kernel chain."""
    y = jax.lax.conv_general_dilated(
        x_bf16, pp["w"], window_strides=(1, 1), padding=((1, 1), (1, 1)),
        dimension_numbers=("NHWC", "HWIO", "NHWC"),
        preferred_element_type=jnp.float32)
    y = y + pp["bias"][0]
    if residual is not None:
        y = y + residual.astype(jnp.float32)
    if apply_relu:
        y = jnp.maximum(y, 0.0)
    return y.astype(jnp.bfloat16)


def ref_double_conv_prepared(x_nchw, prepared, *, out_channels,
                             res_block=False):
    N, Cin, H, W = x_nchw.shape
    cin_pad = _ceil_to(Cin, LANE)
    x = jnp.transpose(x_nchw, (0, 2, 3, 1)).astype(jnp.bfloat16)
    x = jnp.pad(x, ((0, 0), (0, 0), (0, 0), (0, cin_pad - Cin)))
    if res_block:
        out = _ref_conv_prepared(x, prepared["res_conv1a"], apply_relu=True)
        sc = _ref_conv_prepared(x, prepared["res_short"], apply_relu=False)
        x = _ref_conv_prepared(out, prepared["res_conv1b"], apply_relu=True,
                               residual=sc)
    x = _ref_conv_prepared(x, prepared["dc1"], apply_relu=True)
    x = _ref_conv_prepared(x, prepared["dc2"], apply_relu=True)
    x = x[..., :out_channels].astype(jnp.float32)
    return jnp.transpose(x, (0, 3, 1, 2))


# ---------------------------------------------------------------------------
if __name__ == "__main__":
    key = jax.random.PRNGKey(0)
    kx, kp = jax.random.split(key)

    N, Cin, H, W = 2, 4, 16, 16
    Cout = 8
    x = jax.random.normal(kx, (N, Cin, H, W), jnp.float32)   # PyTorch NCHW input
    params = init_double_conv_params(kp, Cin, Cout)
    prepared = prepare_double_conv_params(params)

    for res_block in (False, True):
        # h_tile=8 -> two row tiles per image, exercising the cross-tile halo
        # path (top / bottom neighbour rows) as well as the image border.
        fwd = jax.jit(functools.partial(double_conv_forward,
                                        out_channels=Cout,
                                        res_block=res_block, h_tile=8))
        out = jax.block_until_ready(fwd(x, prepared))
        assert out.shape == (N, Cout, H, W)

        # Precision-matched reference (bf16 operands + bf16 inter-layer
        # activations, f32 accumulation): only summation-order / rounding-
        # boundary noise should remain.
        ref_m = ref_double_conv_prepared(x, prepared, out_channels=Cout,
                                         res_block=res_block)
        assert jnp.allclose(out, ref_m, atol=2e-2, rtol=2e-2), res_block

        # Pure-f32 module semantics (loose: bf16 rounding of operands and
        # inter-layer activations).
        ref_f = ref_double_conv(x, params, res_block=res_block)
        assert jnp.allclose(out, ref_f, atol=1e-1, rtol=1e-1), res_block

    print("KERNEL_OK")
</pallas_src>

<mosaic_0001>
module attributes {stable_mosaic.version = 11 : i64} {
  func.func @_conv3x3_bn_kernel(%arg0: i32, %arg1: i32, %arg2: i32, %arg3: memref<1x8x16x128xbf16, #tpu.memory_space<vmem>>, %arg4: memref<1x1x16x128xbf16, #tpu.memory_space<vmem>>, %arg5: memref<1x1x16x128xbf16, #tpu.memory_space<vmem>>, %arg6: memref<3x3x128x128xbf16, #tpu.memory_space<vmem>>, %arg7: memref<1x128xf32, #tpu.memory_space<vmem>>, %arg8: memref<1x8x16x128xbf16, #tpu.memory_space<vmem>>, %arg9: memref<10x48x128xbf16, #tpu.memory_space<vmem>>, %arg10: memref<3x10x16x128xbf16, #tpu.memory_space<vmem>>) attributes {dimension_semantics = [#tpu.dimension_semantics<parallel>, #tpu.dimension_semantics<parallel>, #tpu.dimension_semantics<arbitrary>], iteration_bounds = array<i64: 2, 2, 1>, scalar_prefetch = 0 : i64, scratch_operands = 2 : i64, tpu.core_type = #tpu.core_type<tc>, window_params = [{transform_indices = @transform_0, window_bounds = array<i64: 1, 8, 16, 128>}, {transform_indices = @transform_1, window_bounds = array<i64: 1, 1, 16, 128>}, {transform_indices = @transform_2, window_bounds = array<i64: 1, 1, 16, 128>}, {transform_indices = @transform_3, window_bounds = array<i64: 3, 3, 128, 128>}, {transform_indices = @transform_4, window_bounds = array<i64: 1, 128>}, {transform_indices = @transform_5, window_bounds = array<i64: 1, 8, 16, 128>}]} {
    %c0_i32 = arith.constant 0 : i32
    %0 = arith.cmpi eq, %arg2, %c0_i32 : i32
    %1 = arith.extui %0 : i1 to i32
    %c0_i32_0 = arith.constant 0 : i32
    %2 = arith.cmpi ne, %1, %c0_i32_0 : i32
    scf.if %2 {
      %cst_85 = arith.constant 0.000000e+00 : bf16
      %75 = vector.broadcast %cst_85 : bf16 to vector<10x16x128xbf16>
      %c0_86 = arith.constant 0 : index
      %c0_87 = arith.constant 0 : index
      %c0_88 = arith.constant 0 : index
      %76 = vector.load %arg9[%c0_86, %c0_87, %c0_88] : memref<10x48x128xbf16, #tpu.memory_space<vmem>>, vector<10x16x128xbf16>
      tpu.vector_store %arg9[%c0_86, %c0_87, %c0_88], %75 {strides = array<i32>} : memref<10x48x128xbf16, #tpu.memory_space<vmem>>, vector<10x16x128xbf16>,
      %c0_89 = arith.constant 0 : index
      %c32 = arith.constant 32 : index
      %c0_90 = arith.constant 0 : index
      %77 = vector.load %arg9[%c0_89, %c32, %c0_90] : memref<10x48x128xbf16, #tpu.memory_space<vmem>>, vector<10x16x128xbf16>
      tpu.vector_store %arg9[%c0_89, %c32, %c0_90], %75 {strides = array<i32>} : memref<10x48x128xbf16, #tpu.memory_space<vmem>>, vector<10x16x128xbf16>,
      %c0_i32_91 = arith.constant 0 : i32
      %78 = arith.cmpi sgt, %arg1, %c0_i32_91 : i32
      %79 = arith.extui %78 : i1 to i32
      %80 = arith.sitofp %79 : i32 to f32
      %81 = arith.truncf %80 : f32 to bf16
      %c1_i32 = arith.constant 1 : i32
      %82 = arith.cmpi slt, %arg1, %c1_i32 : i32
      %83 = arith.extui %82 : i1 to i32
      %84 = arith.sitofp %83 : i32 to f32
      %85 = arith.truncf %84 : f32 to bf16
      %c0_92 = arith.constant 0 : index
      %c0_93 = arith.constant 0 : index
      %c0_94 = arith.constant 0 : index
      %c0_95 = arith.constant 0 : index
      %86 = vector.load %arg4[%c0_92, %c0_93, %c0_94, %c0_95] : memref<1x1x16x128xbf16, #tpu.memory_space<vmem>>, vector<1x1x16x128xbf16>
      %87 = vector.shape_cast %86 : vector<1x1x16x128xbf16> to vector<1x16x128xbf16>
      %88 = vector.broadcast %81 : bf16 to vector<1x16x128xbf16>
      %89 = arith.mulf %87, %88 : vector<1x16x128xbf16>
      %c0_96 = arith.constant 0 : index
      %c16 = arith.constant 16 : index
      %c0_97 = arith.constant 0 : index
      %90 = vector.load %arg9[%c0_96, %c16, %c0_97] : memref<10x48x128xbf16, #tpu.memory_space<vmem>>, vector<1x16x128xbf16>
      tpu.vector_store %arg9[%c0_96, %c16, %c0_97], %89 {strides = array<i32>} : memref<10x48x128xbf16, #tpu.memory_space<vmem>>, vector<1x16x128xbf16>,
      %c0_98 = arith.constant 0 : index
      %c0_99 = arith.constant 0 : index
      %c0_100 = arith.constant 0 : index
      %c0_101 = arith.constant 0 : index
      %91 = vector.load %arg5[%c0_98, %c0_99, %c0_100, %c0_101] : memref<1x1x16x128xbf16, #tpu.memory_space<vmem>>, vector<1x1x16x128xbf16>
      %92 = vector.shape_cast %91 : vector<1x1x16x128xbf16> to vector<1x16x128xbf16>
      %93 = vector.broadcast %85 : bf16 to vector<1x16x128xbf16>
      %94 = arith.mulf %92, %93 : vector<1x16x128xbf16>
      %c9 = arith.constant 9 : index
      %c16_102 = arith.constant 16 : index
      %c0_103 = arith.constant 0 : index
      %95 = vector.load %arg9[%c9, %c16_102, %c0_103] : memref<10x48x128xbf16, #tpu.memory_space<vmem>>, vector<1x16x128xbf16>
      tpu.vector_store %arg9[%c9, %c16_102, %c0_103], %94 {strides = array<i32>} : memref<10x48x128xbf16, #tpu.memory_space<vmem>>, vector<1x16x128xbf16>,
      %c0_104 = arith.constant 0 : index
      %c0_105 = arith.constant 0 : index
      %c0_106 = arith.constant 0 : index
      %c0_107 = arith.constant 0 : index
      %96 = vector.load %arg3[%c0_104, %c0_105, %c0_106, %c0_107] : memref<1x8x16x128xbf16, #tpu.memory_space<vmem>>, vector<1x8x16x128xbf16>
      %97 = vector.shape_cast %96 : vector<1x8x16x128xbf16> to vector<8x16x128xbf16>
      %c1_108 = arith.constant 1 : index
      %c16_109 = arith.constant 16 : index
      %c0_110 = arith.constant 0 : index
      %98 = vector.load %arg9[%c1_108, %c16_109, %c0_110] : memref<10x48x128xbf16, #tpu.memory_space<vmem>>, vector<8x16x128xbf16>
      tpu.vector_store %arg9[%c1_108, %c16_109, %c0_110], %97 {strides = array<i32>} : memref<10x48x128xbf16, #tpu.memory_space<vmem>>, vector<8x16x128xbf16>,
      %c0_111 = arith.constant 0 : index
      %c15 = arith.constant 15 : index
      %c0_112 = arith.constant 0 : index
      %99 = vector.load %arg9[%c0_111, %c15, %c0_112] : memref<10x48x128xbf16, #tpu.memory_space<vmem>>, vector<10x16x128xbf16>
      %c0_113 = arith.constant 0 : index
      %c0_114 = arith.constant 0 : index
      %c0_115 = arith.constant 0 : index
      %c0_116 = arith.constant 0 : index
      %100 = vector.load %arg10[%c0_113, %c0_114, %c0_115, %c0_116] : memref<3x10x16x128xbf16, #tpu.memory_space<vmem>>, vector<1x10x16x128xbf16>
      %101 = vector.shape_cast %100 : vector<1x10x16x128xbf16> to vector<10x16x128xbf16>
      %102 = vector.shape_cast %99 : vector<10x16x128xbf16> to vector<1x10x16x128xbf16>
      tpu.vector_store %arg10[%c0_113, %c0_114, %c0_115, %c0_116], %102 {strides = array<i32>} : memref<3x10x16x128xbf16, #tpu.memory_space<vmem>>, vector<1x10x16x128xbf16>,
      %c0_117 = arith.constant 0 : index
      %c16_118 = arith.constant 16 : index
      %c0_119 = arith.constant 0 : index
      %103 = vector.load %arg9[%c0_117, %c16_118, %c0_119] : memref<10x48x128xbf16, #tpu.memory_space<vmem>>, vector<10x16x128xbf16>
      %c1_120 = arith.constant 1 : index
      %c0_121 = arith.constant 0 : index
      %c0_122 = arith.constant 0 : index
      %c0_123 = arith.constant 0 : index
      %104 = vector.load %arg10[%c1_120, %c0_121, %c0_122, %c0_123] : memref<3x10x16x128xbf16, #tpu.memory_space<vmem>>, vector<1x10x16x128xbf16>
      %105 = vector.shape_cast %104 : vector<1x10x16x128xbf16> to vector<10x16x128xbf16>
      %106 = vector.shape_cast %103 : vector<10x16x128xbf16> to vector<1x10x16x128xbf16>
      tpu.vector_store %arg10[%c1_120, %c0_121, %c0_122, %c0_123], %106 {strides = array<i32>} : memref<3x10x16x128xbf16, #tpu.memory_space<vmem>>, vector<1x10x16x128xbf16>,
      %c0_124 = arith.constant 0 : index
      %c17 = arith.constant 17 : index
      %c0_125 = arith.constant 0 : index
      %107 = vector.load %arg9[%c0_124, %c17, %c0_125] : memref<10x48x128xbf16, #tpu.memory_space<vmem>>, vector<10x16x128xbf16>
      %c2_126 = arith.constant 2 : index
      %c0_127 = arith.constant 0 : index
      %c0_128 = arith.constant 0 : index
      %c0_129 = arith.constant 0 : index
      %108 = vector.load %arg10[%c2_126, %c0_127, %c0_128, %c0_129] : memref<3x10x16x128xbf16, #tpu.memory_space<vmem>>, vector<1x10x16x128xbf16>
      %109 = vector.shape_cast %108 : vector<1x10x16x128xbf16> to vector<10x16x128xbf16>
      %110 = vector.shape_cast %107 : vector<10x16x128xbf16> to vector<1x10x16x128xbf16>
      tpu.vector_store %arg10[%c2_126, %c0_127, %c0_128, %c0_129], %110 {strides = array<i32>} : memref<3x10x16x128xbf16, #tpu.memory_space<vmem>>, vector<1x10x16x128xbf16>,
    } else {
    }
    %c0 = arith.constant 0 : index
    %c0_1 = arith.constant 0 : index
    %3 = vector.load %arg7[%c0, %c0_1] : memref<1x128xf32, #tpu.memory_space<vmem>>, vector<1x128xf32>
    %4 = vector.shape_cast %3 : vector<1x128xf32> to vector<128xf32>
    %5 = vector.shape_cast %4 : vector<128xf32> to vector<1x128xf32>
    %6 = vector.broadcast %5 : vector<1x128xf32> to vector<128x128xf32>
    %c0_2 = arith.constant 0 : index
    %c0_3 = arith.constant 0 : index
    %c0_4 = arith.constant 0 : index
    %c0_5 = arith.constant 0 : index
    %7 = vector.load %arg10[%c0_2, %c0_3, %c0_4, %c0_5] : memref<3x10x16x128xbf16, #tpu.memory_space<vmem>>, vector<1x8x16x128xbf16>
    %8 = vector.shape_cast %7 : vector<1x8x16x128xbf16> to vector<8x16x128xbf16>
    %9 = vector.shape_cast %8 : vector<8x16x128xbf16> to vector<128x128xbf16>
    %c0_6 = arith.constant 0 : index
    %c0_7 = arith.constant 0 : index
    %c0_8 = arith.constant 0 : index
    %c0_9 = arith.constant 0 : index
    %10 = vector.load %arg6[%c0_6, %c0_7, %c0_8, %c0_9] : memref<3x3x128x128xbf16, #tpu.memory_space<vmem>>, vector<1x1x128x128xbf16>
    %11 = vector.shape_cast %10 : vector<1x1x128x128xbf16> to vector<128x128xbf16>
    %cst = arith.constant dense<0.000000e+00> : vector<128x128xf32>
    %12 = tpu.matmul %9, %11, %cst {dimension_numbers = #tpu.dot_dimension_numbers<[1], [0], [0], [1], [0, 0, 1, 1], [], []>} : vector<128x128xbf16>, vector<128x128xbf16>, vector<128x128xf32> -> vector<128x128xf32>
    %13 = arith.addf %6, %12 : vector<128x128xf32>
    %c1 = arith.constant 1 : index
    %c0_10 = arith.constant 0 : index
    %c0_11 = arith.constant 0 : index
    %c0_12 = arith.constant 0 : index
    %14 = vector.load %arg10[%c1, %c0_10, %c0_11, %c0_12] : memref<3x10x16x128xbf16, #tpu.memory_space<vmem>>, vector<1x8x16x128xbf16>
    %15 = vector.shape_cast %14 : vector<1x8x16x128xbf16> to vector<8x16x128xbf16>
    %16 = vector.shape_cast %15 : vector<8x16x128xbf16> to vector<128x128xbf16>
    %c0_13 = arith.constant 0 : index
    %c1_14 = arith.constant 1 : index
    %c0_15 = arith.constant 0 : index
    %c0_16 = arith.constant 0 : index
    %17 = vector.load %arg6[%c0_13, %c1_14, %c0_15, %c0_16] : memref<3x3x128x128xbf16, #tpu.memory_space<vmem>>, vector<1x1x128x128xbf16>
    %18 = vector.shape_cast %17 : vector<1x1x128x128xbf16> to vector<128x128xbf16>
    %cst_17 = arith.constant dense<0.000000e+00> : vector<128x128xf32>
    %19 = tpu.matmul %16, %18, %cst_17 {dimension_numbers = #tpu.dot_dimension_numbers<[1], [0], [0], [1], [0, 0, 1, 1], [], []>} : vector<128x128xbf16>, vector<128x128xbf16>, vector<128x128xf32> -> vector<128x128xf32>
    %20 = arith.addf %13, %19 : vector<128x128xf32>
    %c2 = arith.constant 2 : index
    %c0_18 = arith.constant 0 : index
    %c0_19 = arith.constant 0 : index
    %c0_20 = arith.constant 0 : index
    %21 = vector.load %arg10[%c2, %c0_18, %c0_19, %c0_20] : memref<3x10x16x128xbf16, #tpu.memory_space<vmem>>, vector<1x8x16x128xbf16>
    %22 = vector.shape_cast %21 : vector<1x8x16x128xbf16> to vector<8x16x128xbf16>
    %23 = vector.shape_cast %22 : vector<8x16x128xbf16> to vector<128x128xbf16>
    %c0_21 = arith.constant 0 : index
    %c2_22 = arith.constant 2 : index
    %c0_23 = arith.constant 0 : index
    %c0_24 = arith.constant 0 : index
    %24 = vector.load %arg6[%c0_21, %c2_22, %c0_23, %c0_24] : memref<3x3x128x128xbf16, #tpu.memory_space<vmem>>, vector<1x1x128x128xbf16>
    %25 = vector.shape_cast %24 : vector<1x1x128x128xbf16> to vector<128x128xbf16>
    %cst_25 = arith.constant dense<0.000000e+00> : vector<128x128xf32>
    %26 = tpu.matmul %23, %25, %cst_25 {dimension_numbers = #tpu.dot_dimension_numbers<[1], [0], [0], [1], [0, 0, 1, 1], [], []>} : vector<128x128xbf16>, vector<128x128xbf16>, vector<128x128xf32> -> vector<128x128xf32>
    %27 = arith.addf %20, %26 : vector<128x128xf32>
    %c0_26 = arith.constant 0 : index
    %c1_27 = arith.constant 1 : index
    %c0_28 = arith.constant 0 : index
    %c0_29 = arith.constant 0 : index
    %28 = vector.load %arg10[%c0_26, %c1_27, %c0_28, %c0_29] : memref<3x10x16x128xbf16, #tpu.memory_space<vmem>>, vector<1x8x16x128xbf16>
    %29 = vector.shape_cast %28 : vector<1x8x16x128xbf16> to vector<8x16x128xbf16>
    %30 = vector.shape_cast %29 : vector<8x16x128xbf16> to vector<128x128xbf16>
    %c1_30 = arith.constant 1 : index
    %c0_31 = arith.constant 0 : index
    %c0_32 = arith.constant 0 : index
    %c0_33 = arith.constant 0 : index
    %31 = vector.load %arg6[%c1_30, %c0_31, %c0_32, %c0_33] : memref<3x3x128x128xbf16, #tpu.memory_space<vmem>>, vector<1x1x128x128xbf16>
    %32 = vector.shape_cast %31 : vector<1x1x128x128xbf16> to vector<128x128xbf16>
    %cst_34 = arith.constant dense<0.000000e+00> : vector<128x128xf32>
    %33 = tpu.matmul %30, %32, %cst_34 {dimension_numbers = #tpu.dot_dimension_numbers<[1], [0], [0], [1], [0, 0, 1, 1], [], []>} : vector<128x128xbf16>, vector<128x128xbf16>, vector<128x128xf32> -> vector<128x128xf32>
    %34 = arith.addf %27, %33 : vector<128x128xf32>
    %c1_35 = arith.constant 1 : index
    %c1_36 = arith.constant 1 : index
    %c0_37 = arith.constant 0 : index
    %c0_38 = arith.constant 0 : index
    %35 = vector.load %arg10[%c1_35, %c1_36, %c0_37, %c0_38] : memref<3x10x16x128xbf16, #tpu.memory_space<vmem>>, vector<1x8x16x128xbf16>
    %36 = vector.shape_cast %35 : vector<1x8x16x128xbf16> to vector<8x16x128xbf16>
    %37 = vector.shape_cast %36 : vector<8x16x128xbf16> to vector<128x128xbf16>
    %c1_39 = arith.constant 1 : index
    %c1_40 = arith.constant 1 : index
    %c0_41 = arith.constant 0 : index
    %c0_42 = arith.constant 0 : index
    %38 = vector.load %arg6[%c1_39, %c1_40, %c0_41, %c0_42] : memref<3x3x128x128xbf16, #tpu.memory_space<vmem>>, vector<1x1x128x128xbf16>
    %39 = vector.shape_cast %38 : vector<1x1x128x128xbf16> to vector<128x128xbf16>
    %cst_43 = arith.constant dense<0.000000e+00> : vector<128x128xf32>
    %40 = tpu.matmul %37, %39, %cst_43 {dimension_numbers = #tpu.dot_dimension_numbers<[1], [0], [0], [1], [0, 0, 1, 1], [], []>} : vector<128x128xbf16>, vector<128x128xbf16>, vector<128x128xf32> -> vector<128x128xf32>
    %41 = arith.addf %34, %40 : vector<128x128xf32>
    %c2_44 = arith.constant 2 : index
    %c1_45 = arith.constant 1 : index
    %c0_46 = arith.constant 0 : index
    %c0_47 = arith.constant 0 : index
    %42 = vector.load %arg10[%c2_44, %c1_45, %c0_46, %c0_47] : memref<3x10x16x128xbf16, #tpu.memory_space<vmem>>, vector<1x8x16x128xbf16>
    %43 = vector.shape_cast %42 : vector<1x8x16x128xbf16> to vector<8x16x128xbf16>
    %44 = vector.shape_cast %43 : vector<8x16x128xbf16> to vector<128x128xbf16>
    %c1_48 = arith.constant 1 : index
    %c2_49 = arith.constant 2 : index
    %c0_50 = arith.constant 0 : index
    %c0_51 = arith.constant 0 : index
    %45 = vector.load %arg6[%c1_48, %c2_49, %c0_50, %c0_51] : memref<3x3x128x128xbf16, #tpu.memory_space<vmem>>, vector<1x1x128x128xbf16>
    %46 = vector.shape_cast %45 : vector<1x1x128x128xbf16> to vector<128x128xbf16>
    %cst_52 = arith.constant dense<0.000000e+00> : vector<128x128xf32>
    %47 = tpu.matmul %44, %46, %cst_52 {dimension_numbers = #tpu.dot_dimension_numbers<[1], [0], [0], [1], [0, 0, 1, 1], [], []>} : vector<128x128xbf16>, vector<128x128xbf16>, vector<128x128xf32> -> vector<128x128xf32>
    %48 = arith.addf %41, %47 : vector<128x128xf32>
    %c0_53 = arith.constant 0 : index
    %c2_54 = arith.constant 2 : index
    %c0_55 = arith.constant 0 : index
    %c0_56 = arith.constant 0 : index
    %49 = vector.load %arg10[%c0_53, %c2_54, %c0_55, %c0_56] : memref<3x10x16x128xbf16, #tpu.memory_space<vmem>>, vector<1x8x16x128xbf16>
    %50 = vector.shape_cast %49 : vector<1x8x16x128xbf16> to vector<8x16x128xbf16>
    %51 = vector.shape_cast %50 : vector<8x16x128xbf16> to vector<128x128xbf16>
    %c2_57 = arith.constant 2 : index
    %c0_58 = arith.constant 0 : index
    %c0_59 = arith.constant 0 : index
    %c0_60 = arith.constant 0 : index
    %52 = vector.load %arg6[%c2_57, %c0_58, %c0_59, %c0_60] : memref<3x3x128x128xbf16, #tpu.memory_space<vmem>>, vector<1x1x128x128xbf16>
    %53 = vector.shape_cast %52 : vector<1x1x128x128xbf16> to vector<128x128xbf16>
    %cst_61 = arith.constant dense<0.000000e+00> : vector<128x128xf32>
    %54 = tpu.matmul %51, %53, %cst_61 {dimension_numbers = #tpu.dot_dimension_numbers<[1], [0], [0], [1], [0, 0, 1, 1], [], []>} : vector<128x128xbf16>, vector<128x128xbf16>, vector<128x128xf32> -> vector<128x128xf32>
    %55 = arith.addf %48, %54 : vector<128x128xf32>
    %c1_62 = arith.constant 1 : index
    %c2_63 = arith.constant 2 : index
    %c0_64 = arith.constant 0 : index
    %c0_65 = arith.constant 0 : index
    %56 = vector.load %arg10[%c1_62, %c2_63, %c0_64, %c0_65] : memref<3x10x16x128xbf16, #tpu.memory_space<vmem>>, vector<1x8x16x128xbf16>
    %57 = vector.shape_cast %56 : vector<1x8x16x128xbf16> to vector<8x16x128xbf16>
    %58 = vector.shape_cast %57 : vector<8x16x128xbf16> to vector<128x128xbf16>
    %c2_66 = arith.constant 2 : index
    %c1_67 = arith.constant 1 : index
    %c0_68 = arith.constant 0 : index
    %c0_69 = arith.constant 0 : index
    %59 = vector.load %arg6[%c2_66, %c1_67, %c0_68, %c0_69] : memref<3x3x128x128xbf16, #tpu.memory_space<vmem>>, vector<1x1x128x128xbf16>
    %60 = vector.shape_cast %59 : vector<1x1x128x128xbf16> to vector<128x128xbf16>
    %cst_70 = arith.constant dense<0.000000e+00> : vector<128x128xf32>
    %61 = tpu.matmul %58, %60, %cst_70 {dimension_numbers = #tpu.dot_dimension_numbers<[1], [0], [0], [1], [0, 0, 1, 1], [], []>} : vector<128x128xbf16>, vector<128x128xbf16>, vector<128x128xf32> -> vector<128x128xf32>
    %62 = arith.addf %55, %61 : vector<128x128xf32>
    %c2_71 = arith.constant 2 : index
    %c2_72 = arith.constant 2 : index
    %c0_73 = arith.constant 0 : index
    %c0_74 = arith.constant 0 : index
    %63 = vector.load %arg10[%c2_71, %c2_72, %c0_73, %c0_74] : memref<3x10x16x128xbf16, #tpu.memory_space<vmem>>, vector<1x8x16x128xbf16>
    %64 = vector.shape_cast %63 : vector<1x8x16x128xbf16> to vector<8x16x128xbf16>
    %65 = vector.shape_cast %64 : vector<8x16x128xbf16> to vector<128x128xbf16>
    %c2_75 = arith.constant 2 : index
    %c2_76 = arith.constant 2 : index
    %c0_77 = arith.constant 0 : index
    %c0_78 = arith.constant 0 : index
    %66 = vector.load %arg6[%c2_75, %c2_76, %c0_77, %c0_78] : memref<3x3x128x128xbf16, #tpu.memory_space<vmem>>, vector<1x1x128x128xbf16>
    %67 = vector.shape_cast %66 : vector<1x1x128x128xbf16> to vector<128x128xbf16>
    %cst_79 = arith.constant dense<0.000000e+00> : vector<128x128xf32>
    %68 = tpu.matmul %65, %67, %cst_79 {dimension_numbers = #tpu.dot_dimension_numbers<[1], [0], [0], [1], [0, 0, 1, 1], [], []>} : vector<128x128xbf16>, vector<128x128xbf16>, vector<128x128xf32> -> vector<128x128xf32>
    %69 = arith.addf %62, %68 : vector<128x128xf32>
    %70 = vector.shape_cast %69 : vector<128x128xf32> to vector<1x8x16x128xf32>
    %cst_80 = arith.constant 0.000000e+00 : f32
    %71 = vector.broadcast %cst_80 : f32 to vector<1x8x16x128xf32>
    %72 = arith.maximumf %70, %71 : vector<1x8x16x128xf32>
    %73 = arith.truncf %72 : vector<1x8x16x128xf32> to vector<1x8x16x128xbf16>
    %c0_81 = arith.constant 0 : index
    %c0_82 = arith.constant 0 : index
    %c0_83 = arith.constant 0 : index
    %c0_84 = arith.constant 0 : index
    %74 = vector.load %arg8[%c0_81, %c0_82, %c0_83, %c0_84] : memref<1x8x16x128xbf16, #tpu.memory_space<vmem>>, vector<1x8x16x128xbf16>
    tpu.vector_store %arg8[%c0_81, %c0_82, %c0_83, %c0_84], %73 {strides = array<i32>} : memref<1x8x16x128xbf16, #tpu.memory_space<vmem>>, vector<1x8x16x128xbf16>,
    return
  }
  func.func @transform_0(%arg0: i32, %arg1: i32, %arg2: i32) -> (i32, i32, i32, i32) {
    %c0_i32 = arith.constant 0 : i32
    %c0_i32_0 = arith.constant 0 : i32
    %c0_i32_1 = arith.constant 0 : i32
    return %arg0, %arg1, %c0_i32, %c0_i32_0 : i32, i32, i32, i32
  }
  func.func @transform_1(%arg0: i32, %arg1: i32, %arg2: i32) -> (i32, i32, i32, i32) {
    %c8_i32 = arith.constant 8 : i32
    %0 = arith.muli %arg1, %c8_i32 : i32
    %c1_i32 = arith.constant 1 : i32
    %1 = arith.subi %0, %c1_i32 : i32
    %c0_i32 = arith.constant 0 : i32
    %2 = arith.maxsi %1, %c0_i32 : i32
    %c0_i32_0 = arith.constant 0 : i32
    %c0_i32_1 = arith.constant 0 : i32
    %c0_i32_2 = arith.constant 0 : i32
    return %arg0, %2, %c0_i32_0, %c0_i32_1 : i32, i32, i32, i32
  }
  func.func @transform_2(%arg0: i32, %arg1: i32, %arg2: i32) -> (i32, i32, i32, i32) {
    %c8_i32 = arith.constant 8 : i32
    %0 = arith.muli %arg1, %c8_i32 : i32
    %c8_i32_0 = arith.constant 8 : i32
    %1 = arith.addi %0, %c8_i32_0 : i32
    %c15_i32 = arith.constant 15 : i32
    %2 = arith.minsi %1, %c15_i32 : i32
    %c0_i32 = arith.constant 0 : i32
    %c0_i32_1 = arith.constant 0 : i32
    %c0_i32_2 = arith.constant 0 : i32
    return %arg0, %2, %c0_i32, %c0_i32_1 : i32, i32, i32, i32
  }
  func.func @transform_3(%arg0: i32, %arg1: i32, %arg2: i32) -> (i32, i32, i32, i32) {
    %c0_i32 = arith.constant 0 : i32
    %c0_i32_0 = arith.constant 0 : i32
    %c0_i32_1 = arith.constant 0 : i32
    %c0_i32_2 = arith.constant 0 : i32
    return %c0_i32, %c0_i32_0, %c0_i32_1, %arg2 : i32, i32, i32, i32
  }
  func.func @transform_4(%arg0: i32, %arg1: i32, %arg2: i32) -> (i32, i32) {
    %c0_i32 = arith.constant 0 : i32
    %c0_i32_0 = arith.constant 0 : i32
    return %c0_i32, %arg2 : i32, i32
  }
  func.func @transform_5(%arg0: i32, %arg1: i32, %arg2: i32) -> (i32, i32, i32, i32) {
    %c0_i32 = arith.constant 0 : i32
    %c0_i32_0 = arith.constant 0 : i32
    return %arg0, %arg1, %c0_i32, %arg2 : i32, i32, i32, i32
  }
}

</mosaic_0001>

<llo_original>
// kernel: double_conv_forward.2
$region0: #{double_conv_forward.2}
  #allocation0 [shape = 'u32[]', space=smem, size = 0x4, offset = 0x4, fixed_abs, tag = 'smem constant byte address 0x4 - core index']
  #allocation1 [shape = 'u32[144,128]{1,0:T(1,128)}', space=vmem, size = 0x12000, scoped, tag = 'internal scratch']
  #allocation2 [shape = 'bf16[10,48,128]{2,1,0:T(8,128)(2,1)}', space=vmem, size = 0x1e000, scoped, tag = 'scratch operand']
  #allocation3 [shape = 'bf16[3,10,16,128]{3,2,1,0:T(8,128)(2,1)}', space=vmem, size = 0x1e000, scoped, tag = 'scratch operand']
  %s0 = inlined_call_operand.vmem [shape: bf16[2,16,16,128], index: 0, kind: input, shape index: {}, may-alias: {0,1,2}]
  %s1 = inlined_call_operand.vmem [shape: bf16[2,16,16,128], index: 1, kind: input, shape index: {}, may-alias: {0,1,2}]
  %s2 = inlined_call_operand.vmem [shape: bf16[2,16,16,128], index: 2, kind: input, shape index: {}, may-alias: {0,1,2}]
  %s3 = inlined_call_operand.vmem [shape: bf16[3,3,128,128], index: 3, kind: input, shape index: {}]
  %s4 = inlined_call_operand.vmem [shape: f32[1,128], index: 4, kind: input, shape index: {}]
  %s5 = inlined_call_operand.vmem [shape: bf16[2,16,16,128], index: 5, kind: output, shape index: {}]
  %s6 = sld [smem:[#allocation0]]
  $region57: #{double_conv_forward.2} parent=0
    _
  %s8 = ssub.s32 1, %s6
  %s9 = scalar_select 0, %s8, %s6
  loop: start=0, step=1, limit=6
  $region2: #{double_conv_forward.2} parent=0 // loop_pre_header
    _
  $region3: #{double_conv_forward.2} parent=0 // loop_header
    %s11 = sphi 0, %s15
    %p12 = scmp.ge.s32.totalorder %s11, 6
    %s18 = sphi 0, %s37
    %s19 = sphi 0, %s33
    %s20 = sphi 0, %s29
    %s21 = sphi 0, %s18
    %s22 = sphi 0, %s19
    %s23 = sphi 0, %s20
    %s24 = sphi 0, %s21
    %s25 = sphi 0, %s22
    %s26 = sphi 0, %s23
    %s42 = sphi 0, %s44
    %s45 = sphi 0, %s42
    %s46 = sphi 0, %s45
    %s62 = sphi 0, %s46
    %s78 = sphi 0, %s80
    %s81 = sphi 0, %s78
    %s82 = sphi 0, %s81
    %s98 = sphi 0, %s82
    %s114 = sphi 0, %s116
    %s117 = sphi 0, %s114
    %s118 = sphi 0, %s117
    %s134 = sphi 0, %s118
    %s140 = sphi 0, %s142
    %s143 = sphi 0, %s140
    %s144 = sphi 0, %s143
    %s160 = sphi 0, %s144
    %s166 = sphi 0, %s168
    %s169 = sphi 0, %s166
    %s170 = sphi 0, %s169
    %s186 = sphi 0, %s170
    %s196 = sphi 0, %s198
    %s199 = sphi 0, %s196
    %s200 = sphi 0, %s199
    %s216 = sphi 0, %s200
  $region4: #{double_conv_forward.2} parent=0 // loop_header_branch
    %14 = sbr.rel (%p12) target = $region8
  $region5: #{double_conv_forward.2} parent=0 // loop_body
    %s16 = ssub.s32 %s11, 1
    %s17 = ssub.s32 %s11, 2
    %s27 = sadd.s32 1, %s20
    %p28 = scmp.ge.s32.totalorder %s27, 1
    %s29 = scalar_select %p28, 0, %s27
    %s30 = sadd.s32 1, %s19
    %s31 = scalar_select %p28, %s30, %s19
    %p32 = scmp.ge.s32.totalorder %s31, 2
    %s33 = scalar_select %p32, 0, %s31
    %s34 = sadd.s32 1, %s18
    %s35 = scalar_select %p32, %s34, %s18
    %p36 = scmp.ge.s32.totalorder %s35, 2
    %s37 = scalar_select %p36, 0, %s35
    %s38 = ssub.s32 %s18, %s37
    %s39 = ssub.s32 %s19, %s33
    %s40 = sor.u32 %s38, %s39
    %p41 = scmp.eq.s32.totalorder %s40, 0
    %s43 = sadd.s32 %s42, 1
    %s44 = scalar_select %p41, %s42, %s43
    %p47 = pneg %p41
    %p48 = scmp.eq.s32.totalorder %s11, 3
    %p49 = por %p47, %p48
    %p50 = scmp.ne.s32.totalorder %s42, %s45
    %p51 = scmp.eq.s32.totalorder %s11, 0
    %p52 = por %p50, %p51
    %p53 = scmp.ne.s32.totalorder %s42, %s45
    %p54 = scmp.eq.s32.totalorder %s16, 3
    %p55 = por %p53, %p54
    %p56 = scmp.ne.s32.totalorder %s45, %s46
    %p57 = scmp.eq.s32.totalorder %s16, 0
    %p58 = por %p56, %p57
    %p59 = scmp.ne.s32.totalorder %s45, %s46
    %p60 = scmp.eq.s32.totalorder %s17, 3
    %p61 = por %p59, %p60
    %p63 = scmp.ne.s32.totalorder %s46, %s62
    %p64 = scmp.eq.s32.totalorder %s17, 0
    %p65 = por %p63, %p64
    %s66 = smul.u32 %s19, 8
    %s67 = ssub.s32 %s66, 1
    %p68 = scmp.gt.s32.totalorder %s67, 0
    %s69 = scalar_select %p68, %s67, 0
    %s70 = smul.u32 %s33, 8
    %s71 = ssub.s32 %s70, 1
    %p72 = scmp.gt.s32.totalorder %s71, 0
    %s73 = scalar_select %p72, %s71, 0
    %s74 = ssub.s32 %s18, %s37
    %s75 = ssub.s32 %s69, %s73
    %s76 = sor.u32 %s74, %s75
    %p77 = scmp.eq.s32.totalorder %s76, 0
    %s79 = sadd.s32 %s78, 1
    %s80 = scalar_select %p77, %s78, %s79
    %p83 = pneg %p77
    %p84 = scmp.eq.s32.totalorder %s11, 3
    %p85 = por %p83, %p84
    %p86 = scmp.ne.s32.totalorder %s78, %s81
    %p87 = scmp.eq.s32.totalorder %s11, 0
    %p88 = por %p86, %p87
    %p89 = scmp.ne.s32.totalorder %s78, %s81
    %p90 = scmp.eq.s32.totalorder %s16, 3
    %p91 = por %p89, %p90
    %p92 = scmp.ne.s32.totalorder %s81, %s82
    %p93 = scmp.eq.s32.totalorder %s16, 0
    %p94 = por %p92, %p93
    %p95 = scmp.ne.s32.totalorder %s81, %s82
    %p96 = scmp.eq.s32.totalorder %s17, 3
    %p97 = por %p95, %p96
    %p99 = scmp.ne.s32.totalorder %s82, %s98
    %p100 = scmp.eq.s32.totalorder %s17, 0
    %p101 = por %p99, %p100
    %s102 = smul.u32 %s19, 8
    %s103 = sadd.s32 %s102, 8
    %p104 = scmp.lt.s32.totalorder %s103, 15
    %s105 = scalar_select %p104, %s103, 15
    %s106 = smul.u32 %s33, 8
    %s107 = sadd.s32 %s106, 8
    %p108 = scmp.lt.s32.totalorder %s107, 15
    %s109 = scalar_select %p108, %s107, 15
    %s110 = ssub.s32 %s18, %s37
    %s111 = ssub.s32 %s105, %s109
    %s112 = sor.u32 %s110, %s111
    %p113 = scmp.eq.s32.totalorder %s112, 0
    %s115 = sadd.s32 %s114, 1
    %s116 = scalar_select %p113, %s114, %s115
    %p119 = pneg %p113
    %p120 = scmp.eq.s32.totalorder %s11, 3
    %p121 = por %p119, %p120
    %p122 = scmp.ne.s32.totalorder %s114, %s117
    %p123 = scmp.eq.s32.totalorder %s11, 0
    %p124 = por %p122, %p123
    %p125 = scmp.ne.s32.totalorder %s114, %s117
    %p126 = scmp.eq.s32.totalorder %s16, 3
    %p127 = por %p125, %p126
    %p128 = scmp.ne.s32.totalorder %s117, %s118
    %p129 = scmp.eq.s32.totalorder %s16, 0
    %p130 = por %p128, %p129
    %p131 = scmp.ne.s32.totalorder %s117, %s118
    %p132 = scmp.eq.s32.totalorder %s17, 3
    %p133 = por %p131, %p132
    %p135 = scmp.ne.s32.totalorder %s118, %s134
    %p136 = scmp.eq.s32.totalorder %s17, 0
    %p137 = por %p135, %p136
    %s138 = ssub.s32 %s20, %s29
    %p139 = scmp.eq.s32.totalorder %s138, 0
    %s141 = sadd.s32 %s140, 1
    %s142 = scalar_select %p139, %s140, %s141
    %p145 = pneg %p139
    %p146 = scmp.eq.s32.totalorder %s11, 3
    %p147 = por %p145, %p146
    %p148 = scmp.ne.s32.totalorder %s140, %s143
    %p149 = scmp.eq.s32.totalorder %s11, 0
    %p150 = por %p148, %p149
    %p151 = scmp.ne.s32.totalorder %s140, %s143
    %p152 = scmp.eq.s32.totalorder %s16, 3
    %p153 = por %p151, %p152
    %p154 = scmp.ne.s32.totalorder %s143, %s144
    %p155 = scmp.eq.s32.totalorder %s16, 0
    %p156 = por %p154, %p155
    %p157 = scmp.ne.s32.totalorder %s143, %s144
    %p158 = scmp.eq.s32.totalorder %s17, 3
    %p159 = por %p157, %p158
    %p161 = scmp.ne.s32.totalorder %s144, %s160
    %p162 = scmp.eq.s32.totalorder %s17, 0
    %p163 = por %p161, %p162
    %s164 = ssub.s32 %s20, %s29
    %p165 = scmp.eq.s32.totalorder %s164, 0
    %s167 = sadd.s32 %s166, 1
    %s168 = scalar_select %p165, %s166, %s167
    %p171 = pneg %p165
    %p172 = scmp.eq.s32.totalorder %s11, 3
    %p173 = por %p171, %p172
    %p174 = scmp.ne.s32.totalorder %s166, %s169
    %p175 = scmp.eq.s32.totalorder %s11, 0
    %p176 = por %p174, %p175
    %p177 = scmp.ne.s32.totalorder %s166, %s169
    %p178 = scmp.eq.s32.totalorder %s16, 3
    %p179 = por %p177, %p178
    %p180 = scmp.ne.s32.totalorder %s169, %s170
    %p181 = scmp.eq.s32.totalorder %s16, 0
    %p182 = por %p180, %p181
    %p183 = scmp.ne.s32.totalorder %s169, %s170
    %p184 = scmp.eq.s32.totalorder %s17, 3
    %p185 = por %p183, %p184
    %p187 = scmp.ne.s32.totalorder %s170, %s186
    %p188 = scmp.eq.s32.totalorder %s17, 0
    %p189 = por %p187, %p188
    %s190 = ssub.s32 %s18, %s37
    %s191 = ssub.s32 %s19, %s33
    %s192 = sor.u32 %s190, %s191
    %s193 = ssub.s32 %s20, %s29
    %s194 = sor.u32 %s192, %s193
    %p195 = scmp.eq.s32.totalorder %s194, 0
    %s197 = sadd.s32 %s196, 1
    %s198 = scalar_select %p195, %s196, %s197
    %p201 = pneg %p195
    %p202 = scmp.eq.s32.totalorder %s11, 3
    %p203 = por %p201, %p202
    %p204 = scmp.ne.s32.totalorder %s196, %s199
    %p205 = scmp.eq.s32.totalorder %s11, 0
    %p206 = por %p204, %p205
    %p207 = scmp.ne.s32.totalorder %s196, %s199
    %p208 = scmp.eq.s32.totalorder %s16, 3
    %p209 = por %p207, %p208
    %p210 = scmp.ne.s32.totalorder %s199, %s200
    %p211 = scmp.eq.s32.totalorder %s16, 0
    %p212 = por %p210, %p211
    %p213 = scmp.ne.s32.totalorder %s199, %s200
    %p214 = scmp.eq.s32.totalorder %s17, 3
    %p215 = por %p213, %p214
    %p217 = scmp.ne.s32.totalorder %s200, %s216
    %p218 = scmp.eq.s32.totalorder %s17, 0
    %p219 = por %p217, %p218
    %p220 = scmp.le.s32.totalorder 1, %s11
    %p221 = scmp.lt.s32.totalorder %s11, 5
    %p222 = pnand %p220, %p221
    %p223 = pneg %p222
    // Predicated region
    $region9: #{double_conv_forward.2} parent=5 // pred_check
      _
    $region10: #{double_conv_forward.2} parent=5 // pred_check_branch
      %225 = sbr.rel (%p222) target = $region12
    $region11: #{double_conv_forward.2} parent=5 // pred_region
      %s226 = ssub.s32 %s11, 1
      // Predicated region
      $region13: #{double_conv_forward.2} parent=11 // pred_check
        %p227 = pneg %p156
      $region14: #{double_conv_forward.2} parent=11 // pred_check_branch
        %229 = sbr.rel (%p227) target = $region16
      $region15: #{double_conv_forward.2} parent=11 // pred_region
        %p230 = scmp.lt.s32.totalorder %s23, 0
        %s231 = scalar_select %p230, %s23, 0
        %s232 = smul.addr %s231, 4
        %s233 = scalar_lea.vmem %s3, %s232
      $region16: #{double_conv_forward.2} parent=11 // pred_fallthru
        _
      // Predicated region
      $region17: #{double_conv_forward.2} parent=11 // pred_check
        %p234 = pneg %p182
      $region18: #{double_conv_forward.2} parent=11 // pred_check_branch
        %236 = sbr.rel (%p234) target = $region20
      $region19: #{double_conv_forward.2} parent=11 // pred_region
        %p237 = scmp.lt.s32.totalorder %s23, 0
        %s238 = scalar_select %p237, %s23, 0
        %s239 = scalar_lea.vmem %s4, %s238
      $region20: #{double_conv_forward.2} parent=11 // pred_fallthru
        _
    $region12: #{double_conv_forward.2} parent=5 // pred_fallthru
      _
    %p240 = scmp.lt.s32.totalorder %s11, 4
    // Predicated region
    $region21: #{double_conv_forward.2} parent=5 // pred_check
      %p241 = pneg %p240
    $region22: #{double_conv_forward.2} parent=5 // pred_check_branch
      %243 = sbr.rel (%p241) target = $region24
    $region23: #{double_conv_forward.2} parent=5 // pred_region
      // Predicated region
      $region25: #{double_conv_forward.2} parent=23 // pred_check
        %p244 = pneg %p52
      $region26: #{double_conv_forward.2} parent=23 // pred_check_branch
        %246 = sbr.rel (%p244) target = $region28
      $region27: #{double_conv_forward.2} parent=23 // pred_region
        %s247 = smul.u32 8, %s19
        %p248 = scmp.lt.s32.totalorder %s18, 1
        %s249 = scalar_select %p248, %s18, 1
        %p250 = scmp.lt.s32.totalorder %s247, 15
        %s251 = scalar_select %p250, %s247, 15
        %s252 = smul.addr %s251, 2
        %s253 = smul.addr %s249, 32
        %s254 = sadd.s32 %s252, %s253
        %s255 = smul.addr %s254, 4
        %s256 = scalar_lea.vmem %s0, %s255
        %s257 = smul.u32 8, %s19
      $region28: #{double_conv_forward.2} parent=23 // pred_fallthru
        _
      // Predicated region
      $region29: #{double_conv_forward.2} parent=23 // pred_check
        %p258 = pneg %p88
      $region30: #{double_conv_forward.2} parent=23 // pred_check_branch
        %260 = sbr.rel (%p258) target = $region32
      $region31: #{double_conv_forward.2} parent=23 // pred_region
        %s261 = smul.u32 %s19, 8
        %s262 = ssub.s32 %s261, 1
        %p263 = scmp.gt.s32.totalorder %s262, 0
        %s264 = scalar_select %p263, %s262, 0
        %p265 = scmp.lt.s32.totalorder %s18, 1
        %s266 = scalar_select %p265, %s18, 1
        %p267 = scmp.lt.s32.totalorder %s264, 15
        %s268 = scalar_select %p267, %s264, 15
        %s269 = smul.addr %s268, 2
        %s270 = smul.addr %s266, 32
        %s271 = sadd.s32 %s269, %s270
        %s272 = smul.addr %s271, 4
        %s273 = scalar_lea.vmem %s1, %s272
        %s274 = smul.u32 %s19, 8
        %s275 = ssub.s32 %s274, 1
        %p276 = scmp.gt.s32.totalorder %s275, 0
        %s277 = scalar_select %p276, %s275, 0
      $region32: #{double_conv_forward.2} parent=23 // pred_fallthru
        _
      // Predicated region
      $region33: #{double_conv_forward.2} parent=23 // pred_check
        %p278 = pneg %p124
      $region34: #{double_conv_forward.2} parent=23 // pred_check_branch
        %280 = sbr.rel (%p278) target = $region36
      $region35: #{double_conv_forward.2} parent=23 // pred_region
        %s281 = smul.u32 %s19, 8
        %s282 = sadd.s32 %s281, 8
        %p283 = scmp.lt.s32.totalorder %s282, 15
        %s284 = scalar_select %p283, %s282, 15
        %p285 = scmp.lt.s32.totalorder %s18, 1
        %s286 = scalar_select %p285, %s18, 1
        %p287 = scmp.lt.s32.totalorder %s284, 15
        %s288 = scalar_select %p287, %s284, 15
        %s289 = smul.addr %s288, 2
        %s290 = smul.addr %s286, 32
        %s291 = sadd.s32 %s289, %s290
        %s292 = smul.addr %s291, 4
        %s293 = scalar_lea.vmem %s2, %s292
        %s294 = smul.u32 %s19, 8
        %s295 = sadd.s32 %s294, 8
        %p296 = scmp.lt.s32.totalorder %s295, 15
        %s297 = scalar_select %p296, %s295, 15
      $region36: #{double_conv_forward.2} parent=23 // pred_fallthru
        _
    $region24: #{double_conv_forward.2} parent=5 // pred_fallthru
      _
    %p298 = scmp.le.s32.totalorder 1, %s11
    %p299 = scmp.lt.s32.totalorder %s11, 5
    %p300 = pnand %p298, %p299
    %p301 = pneg %p300
    // Predicated region
    $region37: #{double_conv_forward.2} parent=5 // pred_check
      _
    $region38: #{double_conv_forward.2} parent=5 // pred_check_branch
      %303 = sbr.rel (%p300) target = $region40
    $region39: #{double_conv_forward.2} parent=5 // pred_region
      %s304 = ssub.s32 %s11, 1
      %s305 = smul.u32 8, %s22
      %p306 = scmp.lt.s32.totalorder %s21, 1
      %s307 = scalar_select %p306, %s21, 1
      %p308 = scmp.lt.s32.totalorder %s305, 15
      %s309 = scalar_select %p308, %s305, 15
      %s310 = smul.addr %s309, 2
      %s311 = smul.addr %s307, 32
      %s312 = sadd.s32 %s310, %s311
      %s313 = smul.addr %s312, 4
      %s314 = scalar_lea.vmem %s0, %s313
      %p315 = pneg %p58
      %p316 = pneg %p55
      %s317 = smul.u32 %s22, 8
      %s318 = ssub.s32 %s317, 1
      %p319 = scmp.gt.s32.totalorder %s318, 0
      %s320 = scalar_select %p319, %s318, 0
      %p321 = scmp.lt.s32.totalorder %s21, 1
      %s322 = scalar_select %p321, %s21, 1
      %p323 = scmp.lt.s32.totalorder %s320, 15
      %s324 = scalar_select %p323, %s320, 15
      %s325 = smul.addr %s324, 2
      %s326 = smul.addr %s322, 32
      %s327 = sadd.s32 %s325, %s326
      %s328 = smul.addr %s327, 4
      %s329 = scalar_lea.vmem %s1, %s328
      %p330 = pneg %p94
      %p331 = pneg %p91
      %s332 = smul.u32 %s22, 8
      %s333 = sadd.s32 %s332, 8
      %p334 = scmp.lt.s32.totalorder %s333, 15
      %s335 = scalar_select %p334, %s333, 15
      %p336 = scmp.lt.s32.totalorder %s21, 1
      %s337 = scalar_select %p336, %s21, 1
      %p338 = scmp.lt.s32.totalorder %s335, 15
      %s339 = scalar_select %p338, %s335, 15
      %s340 = smul.addr %s339, 2
      %s341 = smul.addr %s337, 32
      %s342 = sadd.s32 %s340, %s341
      %s343 = smul.addr %s342, 4
      %s344 = scalar_lea.vmem %s2, %s343
      %p345 = pneg %p130
      %p346 = pneg %p127
      %p347 = scmp.lt.s32.totalorder %s23, 0
      %s348 = scalar_select %p347, %s23, 0
      %s349 = smul.addr %s348, 4
      %s350 = scalar_lea.vmem %s3, %s349
      %p351 = pneg %p156
      %p352 = pneg %p153
      %p353 = scmp.lt.s32.totalorder %s23, 0
      %s354 = scalar_select %p353, %s23, 0
      %s355 = scalar_lea.vmem %s4, %s354
      %p356 = pneg %p182
      %p357 = pneg %p179
      %p358 = pneg %p212
      %p359 = pneg %p209
      %s360 = smul.u32 8, %s22
      %p361 = scmp.lt.s32.totalorder %s21, 1
      %s362 = scalar_select %p361, %s21, 1
      %p363 = scmp.lt.s32.totalorder %s360, 15
      %s364 = scalar_select %p363, %s360, 15
      %p365 = scmp.lt.s32.totalorder %s23, 0
      %s366 = scalar_select %p365, %s23, 0
      %s367 = smul.addr %s364, 2
      %s368 = sadd.s32 %s366, %s367
      %s369 = smul.addr %s362, 32
      %s370 = sadd.s32 %s368, %s369
      %s371 = smul.addr %s370, 4
      %s372 = scalar_lea.vmem %s5, %s371
      %s373 = smul.u32 8, %s22
      %p374 = scmp.lt.s32.totalorder %s21, 1
      %s375 = scalar_select %p374, %s21, 1
      %p376 = scmp.lt.s32.totalorder %s373, 15
      %s377 = scalar_select %p376, %s373, 15
      %s378 = smul.addr %s377, 2
      %s379 = smul.addr %s375, 32
      %s380 = sadd.s32 %s378, %s379
      %s381 = smul.addr %s380, 4
      %s382 = scalar_lea.vmem %s0, %s381
      %s383 = smul.u32 8, %s22
      %s384 = smul.u32 %s22, 8
      %s385 = ssub.s32 %s384, 1
      %p386 = scmp.gt.s32.totalorder %s385, 0
      %s387 = scalar_select %p386, %s385, 0
      %p388 = scmp.lt.s32.totalorder %s21, 1
      %s389 = scalar_select %p388, %s21, 1
      %p390 = scmp.lt.s32.totalorder %s387, 15
      %s391 = scalar_select %p390, %s387, 15
      %s392 = smul.addr %s391, 2
      %s393 = smul.addr %s389, 32
      %s394 = sadd.s32 %s392, %s393
      %s395 = smul.addr %s394, 4
      %s396 = scalar_lea.vmem %s1, %s395
      %s397 = smul.u32 %s22, 8
      %s398 = ssub.s32 %s397, 1
      %p399 = scmp.gt.s32.totalorder %s398, 0
      %s400 = scalar_select %p399, %s398, 0
      %s401 = smul.u32 %s22, 8
      %s402 = sadd.s32 %s401, 8
      %p403 = scmp.lt.s32.totalorder %s402, 15
      %s404 = scalar_select %p403, %s402, 15
      %p405 = scmp.lt.s32.totalorder %s21, 1
      %s406 = scalar_select %p405, %s21, 1
      %p407 = scmp.lt.s32.totalorder %s404, 15
      %s408 = scalar_select %p407, %s404, 15
      %s409 = smul.addr %s408, 2
      %s410 = smul.addr %s406, 32
      %s411 = sadd.s32 %s409, %s410
      %s412 = smul.addr %s411, 4
      %s413 = scalar_lea.vmem %s2, %s412
      %s414 = smul.u32 %s22, 8
      %s415 = sadd.s32 %s414, 8
      %p416 = scmp.lt.s32.totalorder %s415, 15
      %s417 = scalar_select %p416, %s415, 15
      %p418 = scmp.lt.s32.totalorder %s23, 0
      %s419 = scalar_select %p418, %s23, 0
      %s420 = smul.addr %s419, 4
      %s421 = scalar_lea.vmem %s3, %s420
      %p422 = scmp.lt.s32.totalorder %s23, 0
      %s423 = scalar_select %p422, %s23, 0
      %s424 = scalar_lea.vmem %s4, %s423
      %s425 = smul.u32 8, %s22
      %p426 = scmp.lt.s32.totalorder %s21, 1
      %s427 = scalar_select %p426, %s21, 1
      %p428 = scmp.lt.s32.totalorder %s425, 15
      %s429 = scalar_select %p428, %s425, 15
      %p430 = scmp.lt.s32.totalorder %s23, 0
      %s431 = scalar_select %p430, %s23, 0
      %s432 = smul.addr %s429, 2
      %s433 = sadd.s32 %s431, %s432
      %s434 = smul.addr %s427, 32
      %s435 = sadd.s32 %s433, %s434
      %s436 = smul.addr %s435, 4
      %s437 = scalar_lea.vmem %s5, %s436
      %s438 = smul.u32 8, %s22
      %p440 = scmp.eq.s32.totalorder %s23, 0
      // Predicated region
      $region41: #{double_conv_forward.2} parent=39 // pred_check
        %p441 = pneg %p440
      $region42: #{double_conv_forward.2} parent=39 // pred_check_branch
        %443 = sbr.rel (%p441) target = $region44
      $region43: #{double_conv_forward.2} parent=39 // pred_region
        %444 = vst [vmem:[#allocation2] sm:$0xf] 0
        %445 = vst [vmem:[#allocation2 + $0x4] sm:$0xf] 0
        %446 = vst [vmem:[#allocation2 + $0x18] sm:$0xf] 0
        %447 = vst [vmem:[#allocation2 + $0x1c] sm:$0xf] 0
        %448 = vst [vmem:[#allocation2 + $0x30] sm:$0xf] 0
        %449 = vst [vmem:[#allocation2 + $0x34] sm:$0xf] 0
        %450 = vst [vmem:[#allocation2 + $0x48] sm:$0xf] 0
        %451 = vst [vmem:[#allocation2 + $0x4c] sm:$0xf] 0
        %452 = vst [vmem:[#allocation2 + $0x60] sm:$0xf] 0
        %453 = vst [vmem:[#allocation2 + $0x64] sm:$0xf] 0
        %454 = vst [vmem:[#allocation2 + $0x78] sm:$0xf] 0
        %455 = vst [vmem:[#allocation2 + $0x7c] sm:$0xf] 0
        %456 = vst [vmem:[#allocation2 + $0x90] sm:$0xf] 0
        %457 = vst [vmem:[#allocation2 + $0x94] sm:$0xf] 0
        %458 = vst [vmem:[#allocation2 + $0xa8] sm:$0xf] 0
        %459 = vst [vmem:[#allocation2 + $0xac] sm:$0xf] 0
        %460 = vst [vmem:[#allocation2 + $0xc0] sm:$0xf] 0
        %461 = vst [vmem:[#allocation2 + $0xc4] sm:$0xf] 0
        %462 = vst [vmem:[#allocation2 + $0xd8] sm:$0xf] 0
        %463 = vst [vmem:[#allocation2 + $0xdc] sm:$0xf] 0
        %464 = vst [vmem:[#allocation2 + $0x10] sm:$0xf] 0
        %465 = vst [vmem:[#allocation2 + $0x14] sm:$0xf] 0
        %466 = vst [vmem:[#allocation2 + $0x28] sm:$0xf] 0
        %467 = vst [vmem:[#allocation2 + $0x2c] sm:$0xf] 0
        %468 = vst [vmem:[#allocation2 + $0x40] sm:$0xf] 0
        %469 = vst [vmem:[#allocation2 + $0x44] sm:$0xf] 0
        %470 = vst [vmem:[#allocation2 + $0x58] sm:$0xf] 0
        %471 = vst [vmem:[#allocation2 + $0x5c] sm:$0xf] 0
        %472 = vst [vmem:[#allocation2 + $0x70] sm:$0xf] 0
        %473 = vst [vmem:[#allocation2 + $0x74] sm:$0xf] 0
        %474 = vst [vmem:[#allocation2 + $0x88] sm:$0xf] 0
        %475 = vst [vmem:[#allocation2 + $0x8c] sm:$0xf] 0
        %476 = vst [vmem:[#allocation2 + $0xa0] sm:$0xf] 0
        %477 = vst [vmem:[#allocation2 + $0xa4] sm:$0xf] 0
        %478 = vst [vmem:[#allocation2 + $0xb8] sm:$0xf] 0
        %479 = vst [vmem:[#allocation2 + $0xbc] sm:$0xf] 0
        %480 = vst [vmem:[#allocation2 + $0xd0] sm:$0xf] 0
        %481 = vst [vmem:[#allocation2 + $0xd4] sm:$0xf] 0
        %482 = vst [vmem:[#allocation2 + $0xe8] sm:$0xf] 0
        %483 = vst [vmem:[#allocation2 + $0xec] sm:$0xf] 0
        %p484 = scmp.gt.s32.totalorder %s22, 0
        %s485 = scalar_select %p484, 1, 0
        %s486 = scvt.s32.f32 %s485
        %p488 = scmp.ne.f32.partialorder %s486, %s486
        %s489 = sshrl.u32 %s486, 16
        %s490 = sand.u32 %s489, 1
        %s491 = sadd.s32 32767, %s490
        %s492 = sadd.s32 %s486, %s491
        %s493 = sand.u32 %s492, 4294901760
        %s494 = scalar_select %p488, 2143289344, %s493
        %s496 = sshrl.u32 %s494, 16
        %p497 = scmp.lt.s32.totalorder %s22, 1
        %s498 = scalar_select %p497, 1, 0
        %s499 = scvt.s32.f32 %s498
        %p501 = scmp.ne.f32.partialorder %s499, %s499
        %s502 = sshrl.u32 %s499, 16
        %s503 = sand.u32 %s502, 1
        %s504 = sadd.s32 32767, %s503
        %s505 = sadd.s32 %s499, %s504
        %s506 = sand.u32 %s505, 4294901760
        %s507 = scalar_select %p501, 2143289344, %s506
        %s509 = sshrl.u32 %s507, 16
        %v510 = vld [vmem:[%s396] sm:$0xf]
        %v511 = vld [vmem:[%s396 + $0x4] sm:$0xf]
        %s512 = sshll.u32 %s496, 16
        %s513 = sor.u32 %s496, %s512
        %v514 = vstv %s513
        %v516 = vmul.bf16 %v510, %v514
        %v517 = vmul.bf16 %v511, %v514
        %518 = vst [vmem:[#allocation2 + $0x8] sm:$0xf] %v516
        %519 = vst [vmem:[#allocation2 + $0xc] sm:$0xf] %v517
        %v520 = vld [vmem:[%s413] sm:$0xf]
        %v521 = vld [vmem:[%s413 + $0x4] sm:$0xf]
        %s522 = sshll.u32 %s509, 16
        %s523 = sor.u32 %s509, %s522
        %v524 = vstv %s523
        %v526 = vmul.bf16 %v520, %v524
        %v527 = vmul.bf16 %v521, %v524
        %s528 = scalar_lea.vmem [#allocation2], 216
        %529 = vst [vmem:[%s528 + $0x8] sm:$0xf] %v526
        %530 = vst [vmem:[%s528 + $0xc] sm:$0xf] %v527
        %v531 = vld [vmem:[%s382] sm:$0xf]
        %v532 = vld [vmem:[%s382 + $0x4] sm:$0xf]
        %v533 = vld [vmem:[%s382 + $0x8] sm:$0xf]
        %v534 = vld [vmem:[%s382 + $0xc] sm:$0xf]
        %v535 = vld [vmem:[%s382 + $0x10] sm:$0xf]
        %v536 = vld [vmem:[%s382 + $0x14] sm:$0xf]
        %v537 = vld [vmem:[%s382 + $0x18] sm:$0xf]
        %v538 = vld [vmem:[%s382 + $0x1c] sm:$0xf]
        %v539 = vld [vmem:[%s382 + $0x20] sm:$0xf]
        %v540 = vld [vmem:[%s382 + $0x24] sm:$0xf]
        %v541 = vld [vmem:[%s382 + $0x28] sm:$0xf]
        %v542 = vld [vmem:[%s382 + $0x2c] sm:$0xf]
        %v543 = vld [vmem:[%s382 + $0x30] sm:$0xf]
        %v544 = vld [vmem:[%s382 + $0x34] sm:$0xf]
        %v545 = vld [vmem:[%s382 + $0x38] sm:$0xf]
        %v546 = vld [vmem:[%s382 + $0x3c] sm:$0xf]
        %s547 = scalar_lea.vmem [#allocation2], 24
        %548 = vst [vmem:[%s547 + $0x8] sm:$0xf] %v531
        %549 = vst [vmem:[%s547 + $0xc] sm:$0xf] %v532
        %550 = vst [vmem:[%s547 + $0x20] sm:$0xf] %v533
        %551 = vst [vmem:[%s547 + $0x24] sm:$0xf] %v534
        %552 = vst [vmem:[%s547 + $0x38] sm:$0xf] %v535
        %553 = vst [vmem:[%s547 + $0x3c] sm:$0xf] %v536
        %554 = vst [vmem:[%s547 + $0x50] sm:$0xf] %v537
        %555 = vst [vmem:[%s547 + $0x54] sm:$0xf] %v538
        %556 = vst [vmem:[%s547 + $0x68] sm:$0xf] %v539
        %557 = vst [vmem:[%s547 + $0x6c] sm:$0xf] %v540
        %558 = vst [vmem:[%s547 + $0x80] sm:$0xf] %v541
        %559 = vst [vmem:[%s547 + $0x84] sm:$0xf] %v542
        %560 = vst [vmem:[%s547 + $0x98] sm:$0xf] %v543
        %561 = vst [vmem:[%s547 + $0x9c] sm:$0xf] %v544
        %562 = vst [vmem:[%s547 + $0xb0] sm:$0xf] %v545
        %563 = vst [vmem:[%s547 + $0xb4] sm:$0xf] %v546
        %v564 = vld [vmem:[#allocation2 + $0x4] sm:$0x8]
        %v565 = vld [vmem:[#allocation2 + $0x8] sm:$0xf]
        %v566 = vld [vmem:[#allocation2 + $0xc] sm:$0xf]
        %v567 = vld [vmem:[#allocation2 + $0x1c] sm:$0x8]
        %v568 = vld [vmem:[#allocation2 + $0x20] sm:$0xf]
        %v569 = vld [vmem:[#allocation2 + $0x24] sm:$0xf]
        %v570 = vld [vmem:[#allocation2 + $0x34] sm:$0x8]
        %v571 = vld [vmem:[#allocation2 + $0x38] sm:$0xf]
        %v572 = vld [vmem:[#allocation2 + $0x3c] sm:$0xf]
        %v573 = vld [vmem:[#allocation2 + $0x4c] sm:$0x8]
        %v574 = vld [vmem:[#allocation2 + $0x50] sm:$0xf]
        %v575 = vld [vmem:[#allocation2 + $0x54] sm:$0xf]
        %v576 = vld [vmem:[#allocation2 + $0x64] sm:$0x8]
        %v577 = vld [vmem:[#allocation2 + $0x68] sm:$0xf]
        %v578 = vld [vmem:[#allocation2 + $0x6c] sm:$0xf]
        %v579 = vld [vmem:[#allocation2 + $0x7c] sm:$0x8]
        %v580 = vld [vmem:[#allocation2 + $0x80] sm:$0xf]
        %v581 = vld [vmem:[#allocation2 + $0x84] sm:$0xf]
        %v582 = vld [vmem:[#allocation2 + $0x94] sm:$0x8]
        %v583 = vld [vmem:[#allocation2 + $0x98] sm:$0xf]
        %v584 = vld [vmem:[#allocation2 + $0x9c] sm:$0xf]
        %v585 = vld [vmem:[#allocation2 + $0xac] sm:$0x8]
        %v586 = vld [vmem:[#allocation2 + $0xb0] sm:$0xf]
        %v587 = vld [vmem:[#allocation2 + $0xb4] sm:$0xf]
        %v588 = vld [vmem:[#allocation2 + $0xc4] sm:$0x8]
        %v589 = vld [vmem:[#allocation2 + $0xc8] sm:$0xf]
        %v590 = vld [vmem:[#allocation2 + $0xcc] sm:$0xf]
        %v591 = vld [vmem:[#allocation2 + $0xdc] sm:$0x8]
        %v592 = vld [vmem:[#allocation2 + $0xe0] sm:$0xf]
        %v593 = vld [vmem:[#allocation2 + $0xe4] sm:$0xf]
        %vm594 = vsmask.f32 256
        %vm595 = vsmask.f32 4368
        %vm596 = vmor %vm594, %vm595
        %v598 = vshrl.u32 %v564, 16
        %v600 = vrot.slane %v598, 7
        %v601 = vrot.slane %v600, 4
        %v603 = vshrl.u32 %v565, 16
        %v605 = vrot.slane %v603, 7
        %v606 = vshll.u32 %v565, 16
        %v608 = vor.u32 %v605, %v606
        %v609 = vsel %vm596, %v601, %v608
        %v610 = vrot.slane %v605, 4
        %v612 = vshrl.u32 %v566, 16
        %v614 = vrot.slane %v612, 7
        %v615 = vshll.u32 %v566, 16
        %v617 = vor.u32 %v614, %v615
        %v618 = vsel %vm596, %v610, %v617
        %v620 = vshrl.u32 %v567, 16
        %v622 = vrot.slane %v620, 7
        %v623 = vrot.slane %v622, 4
        %v625 = vshrl.u32 %v568, 16
        %v627 = vrot.slane %v625, 7
        %v628 = vshll.u32 %v568, 16
        %v630 = vor.u32 %v627, %v628
        %v631 = vsel %vm596, %v623, %v630
        %v632 = vrot.slane %v627, 4
        %v634 = vshrl.u32 %v569, 16
        %v636 = vrot.slane %v634, 7
        %v637 = vshll.u32 %v569, 16
        %v639 = vor.u32 %v636, %v637
        %v640 = vsel %vm596, %v632, %v639
        %v642 = vshrl.u32 %v570, 16
        %v644 = vrot.slane %v642, 7
        %v645 = vrot.slane %v644, 4
        %v647 = vshrl.u32 %v571, 16
        %v649 = vrot.slane %v647, 7
        %v650 = vshll.u32 %v571, 16
        %v652 = vor.u32 %v649, %v650
        %v653 = vsel %vm596, %v645, %v652
        %v654 = vrot.slane %v649, 4
        %v656 = vshrl.u32 %v572, 16
        %v658 = vrot.slane %v656, 7
        %v659 = vshll.u32 %v572, 16
        %v661 = vor.u32 %v658, %v659
        %v662 = vsel %vm596, %v654, %v661
        %v664 = vshrl.u32 %v573, 16
        %v666 = vrot.slane %v664, 7
        %v667 = vrot.slane %v666, 4
        %v669 = vshrl.u32 %v574, 16
        %v671 = vrot.slane %v669, 7
        %v672 = vshll.u32 %v574, 16
        %v674 = vor.u32 %v671, %v672
        %v675 = vsel %vm596, %v667, %v674
        %v676 = vrot.slane %v671, 4
        %v678 = vshrl.u32 %v575, 16
        %v680 = vrot.slane %v678, 7
        %v681 = vshll.u32 %v575, 16
        %v683 = vor.u32 %v680, %v681
        %v684 = vsel %vm596, %v676, %v683
        %v686 = vshrl.u32 %v576, 16
        %v688 = vrot.slane %v686, 7
        %v689 = vrot.slane %v688, 4
        %v691 = vshrl.u32 %v577, 16
        %v693 = vrot.slane %v691, 7
        %v694 = vshll.u32 %v577, 16
        %v696 = vor.u32 %v693, %v694
        %v697 = vsel %vm596, %v689, %v696
        %v698 = vrot.slane %v693, 4
        %v700 = vshrl.u32 %v578, 16
        %v702 = vrot.slane %v700, 7
        %v703 = vshll.u32 %v578, 16
        %v705 = vor.u32 %v702, %v703
        %v706 = vsel %vm596, %v698, %v705
        %v708 = vshrl.u32 %v579, 16
        %v710 = vrot.slane %v708, 7
        %v711 = vrot.slane %v710, 4
        %v713 = vshrl.u32 %v580, 16
        %v715 = vrot.slane %v713, 7
        %v716 = vshll.u32 %v580, 16
        %v718 = vor.u32 %v715, %v716
        %v719 = vsel %vm596, %v711, %v718
        %v720 = vrot.slane %v715, 4
        %v722 = vshrl.u32 %v581, 16
        %v724 = vrot.slane %v722, 7
        %v725 = vshll.u32 %v581, 16
        %v727 = vor.u32 %v724, %v725
        %v728 = vsel %vm596, %v720, %v727
        %v730 = vshrl.u32 %v582, 16
        %v732 = vrot.slane %v730, 7
        %v733 = vrot.slane %v732, 4
        %v735 = vshrl.u32 %v583, 16
        %v737 = vrot.slane %v735, 7
        %v738 = vshll.u32 %v583, 16
        %v740 = vor.u32 %v737, %v738
        %v741 = vsel %vm596, %v733, %v740
        %v742 = vrot.slane %v737, 4
        %v744 = vshrl.u32 %v584, 16
        %v746 = vrot.slane %v744, 7
        %v747 = vshll.u32 %v584, 16
        %v749 = vor.u32 %v746, %v747
        %v750 = vsel %vm596, %v742, %v749
        %v752 = vshrl.u32 %v585, 16
        %v754 = vrot.slane %v752, 7
        %v755 = vrot.slane %v754, 4
        %v757 = vshrl.u32 %v586, 16
        %v759 = vrot.slane %v757, 7
        %v760 = vshll.u32 %v586, 16
        %v762 = vor.u32 %v759, %v760
        %v763 = vsel %vm596, %v755, %v762
        %v764 = vrot.slane %v759, 4
        %v766 = vshrl.u32 %v587, 16
        %v768 = vrot.slane %v766, 7
        %v769 = vshll.u32 %v587, 16
        %v771 = vor.u32 %v768, %v769
        %v772 = vsel %vm596, %v764, %v771
        %v774 = vshrl.u32 %v588, 16
        %v776 = vrot.slane %v774, 7
        %v777 = vrot.slane %v776, 4
        %v779 = vshrl.u32 %v589, 16
        %v781 = vrot.slane %v779, 7
        %v782 = vshll.u32 %v589, 16
        %v784 = vor.u32 %v781, %v782
        %v785 = vsel %vm596, %v777, %v784
        %v786 = vrot.slane %v781, 4
        %v788 = vshrl.u32 %v590, 16
        %v790 = vrot.slane %v788, 7
        %v791 = vshll.u32 %v590, 16
        %v793 = vor.u32 %v790, %v791
        %v794 = vsel %vm596, %v786, %v793
        %v796 = vshrl.u32 %v591, 16
        %v798 = vrot.slane %v796, 7
        %v799 = vrot.slane %v798, 4
        %v801 = vshrl.u32 %v592, 16
        %v803 = vrot.slane %v801, 7
        %v804 = vshll.u32 %v592, 16
        %v806 = vor.u32 %v803, %v804
        %v807 = vsel %vm596, %v799, %v806
        %v808 = vrot.slane %v803, 4
        %v810 = vshrl.u32 %v593, 16
        %v812 = vrot.slane %v810, 7
        %v813 = vshll.u32 %v593, 16
        %v815 = vor.u32 %v812, %v813
        %v816 = vsel %vm596, %v808, %v815
        %837 = vst [vmem:[#allocation3] sm:$0xf] %v609
        %838 = vst [vmem:[#allocation3 + $0x4] sm:$0xf] %v618
        %839 = vst [vmem:[#allocation3 + $0x8] sm:$0xf] %v631
        %840 = vst [vmem:[#allocation3 + $0xc] sm:$0xf] %v640
        %841 = vst [vmem:[#allocation3 + $0x10] sm:$0xf] %v653
        %842 = vst [vmem:[#allocation3 + $0x14] sm:$0xf] %v662
        %843 = vst [vmem:[#allocation3 + $0x18] sm:$0xf] %v675
        %844 = vst [vmem:[#allocation3 + $0x1c] sm:$0xf] %v684
        %845 = vst [vmem:[#allocation3 + $0x20] sm:$0xf] %v697
        %846 = vst [vmem:[#allocation3 + $0x24] sm:$0xf] %v706
        %847 = vst [vmem:[#allocation3 + $0x28] sm:$0xf] %v719
        %848 = vst [vmem:[#allocation3 + $0x2c] sm:$0xf] %v728
        %849 = vst [vmem:[#allocation3 + $0x30] sm:$0xf] %v741
        %850 = vst [vmem:[#allocation3 + $0x34] sm:$0xf] %v750
        %851 = vst [vmem:[#allocation3 + $0x38] sm:$0xf] %v763
        %852 = vst [vmem:[#allocation3 + $0x3c] sm:$0xf] %v772
        %853 = vst [vmem:[#allocation3 + $0x40] sm:$0xf] %v785
        %854 = vst [vmem:[#allocation3 + $0x44] sm:$0xf] %v794
        %855 = vst [vmem:[#allocation3 + $0x48] sm:$0xf] %v807
        %856 = vst [vmem:[#allocation3 + $0x4c] sm:$0xf] %v816
        %v857 = vld [vmem:[#allocation2 + $0x8] sm:$0xf]
        %v858 = vld [vmem:[#allocation2 + $0xc] sm:$0xf]
        %v859 = vld [vmem:[#allocation2 + $0x20] sm:$0xf]
        %v860 = vld [vmem:[#allocation2 + $0x24] sm:$0xf]
        %v861 = vld [vmem:[#allocation2 + $0x38] sm:$0xf]
        %v862 = vld [vmem:[#allocation2 + $0x3c] sm:$0xf]
        %v863 = vld [vmem:[#allocation2 + $0x50] sm:$0xf]
        %v864 = vld [vmem:[#allocation2 + $0x54] sm:$0xf]
        %v865 = vld [vmem:[#allocation2 + $0x68] sm:$0xf]
        %v866 = vld [vmem:[#allocation2 + $0x6c] sm:$0xf]
        %v867 = vld [vmem:[#allocation2 + $0x80] sm:$0xf]
        %v868 = vld [vmem:[#allocation2 + $0x84] sm:$0xf]
        %v869 = vld [vmem:[#allocation2 + $0x98] sm:$0xf]
        %v870 = vld [vmem:[#allocation2 + $0x9c] sm:$0xf]
        %v871 = vld [vmem:[#allocation2 + $0xb0] sm:$0xf]
        %v872 = vld [vmem:[#allocation2 + $0xb4] sm:$0xf]
        %v873 = vld [vmem:[#allocation2 + $0xc8] sm:$0xf]
        %v874 = vld [vmem:[#allocation2 + $0xcc] sm:$0xf]
        %v875 = vld [vmem:[#allocation2 + $0xe0] sm:$0xf]
        %v876 = vld [vmem:[#allocation2 + $0xe4] sm:$0xf]
        %s877 = scalar_lea.vmem [#allocation3], 80
        %878 = vst [vmem:[%s877] sm:$0xf] %v857
        %879 = vst [vmem:[%s877 + $0x4] sm:$0xf] %v858
        %880 = vst [vmem:[%s877 + $0x8] sm:$0xf] %v859
        %881 = vst [vmem:[%s877 + $0xc] sm:$0xf] %v860
        %882 = vst [vmem:[%s877 + $0x10] sm:$0xf] %v861
        %883 = vst [vmem:[%s877 + $0x14] sm:$0xf] %v862
        %884 = vst [vmem:[%s877 + $0x18] sm:$0xf] %v863
        %885 = vst [vmem:[%s877 + $0x1c] sm:$0xf] %v864
        %886 = vst [vmem:[%s877 + $0x20] sm:$0xf] %v865
        %887 = vst [vmem:[%s877 + $0x24] sm:$0xf] %v866
        %888 = vst [vmem:[%s877 + $0x28] sm:$0xf] %v867
        %889 = vst [vmem:[%s877 + $0x2c] sm:$0xf] %v868
        %890 = vst [vmem:[%s877 + $0x30] sm:$0xf] %v869
        %891 = vst [vmem:[%s877 + $0x34] sm:$0xf] %v870
        %892 = vst [vmem:[%s877 + $0x38] sm:$0xf] %v871
        %893 = vst [vmem:[%s877 + $0x3c] sm:$0xf] %v872
        %894 = vst [vmem:[%s877 + $0x40] sm:$0xf] %v873
        %895 = vst [vmem:[%s877 + $0x44] sm:$0xf] %v874
        %896 = vst [vmem:[%s877 + $0x48] sm:$0xf] %v875
        %897 = vst [vmem:[%s877 + $0x4c] sm:$0xf] %v876
        %v898 = vld [vmem:[#allocation2 + $0x8] sm:$0xf]
        %v899 = vld [vmem:[#allocation2 + $0xc] sm:$0xf]
        %v900 = vld [vmem:[#allocation2 + $0x10] sm:$0x1]
        %v901 = vld [vmem:[#allocation2 + $0x20] sm:$0xf]
        %v902 = vld [vmem:[#allocation2 + $0x24] sm:$0xf]
        %v903 = vld [vmem:[#allocation2 + $0x28] sm:$0x1]
        %v904 = vld [vmem:[#allocation2 + $0x38] sm:$0xf]
        %v905 = vld [vmem:[#allocation2 + $0x3c] sm:$0xf]
        %v906 = vld [vmem:[#allocation2 + $0x40] sm:$0x1]
        %v907 = vld [vmem:[#allocation2 + $0x50] sm:$0xf]
        %v908 = vld [vmem:[#allocation2 + $0x54] sm:$0xf]
        %v909 = vld [vmem:[#allocation2 + $0x58] sm:$0x1]
        %v910 = vld [vmem:[#allocation2 + $0x68] sm:$0xf]
        %v911 = vld [vmem:[#allocation2 + $0x6c] sm:$0xf]
        %v912 = vld [vmem:[#allocation2 + $0x70] sm:$0x1]
        %v913 = vld [vmem:[#allocation2 + $0x80] sm:$0xf]
        %v914 = vld [vmem:[#allocation2 + $0x84] sm:$0xf]
        %v915 = vld [vmem:[#allocation2 + $0x88] sm:$0x1]
        %v916 = vld [vmem:[#allocation2 + $0x98] sm:$0xf]
        %v917 = vld [vmem:[#allocation2 + $0x9c] sm:$0xf]
        %v918 = vld [vmem:[#allocation2 + $0xa0] sm:$0x1]
        %v919 = vld [vmem:[#allocation2 + $0xb0] sm:$0xf]
        %v920 = vld [vmem:[#allocation2 + $0xb4] sm:$0xf]
        %v921 = vld [vmem:[#allocation2 + $0xb8] sm:$0x1]
        %v922 = vld [vmem:[#allocation2 + $0xc8] sm:$0xf]
        %v923 = vld [vmem:[#allocation2 + $0xcc] sm:$0xf]
        %v924 = vld [vmem:[#allocation2 + $0xd0] sm:$0x1]
        %v925 = vld [vmem:[#allocation2 + $0xe0] sm:$0xf]
        %v926 = vld [vmem:[#allocation2 + $0xe4] sm:$0xf]
        %v927 = vld [vmem:[#allocation2 + $0xe8] sm:$0x1]
        %vm928 = vsmask.f32 3328
        %vm929 = vsmask.f32 7440
        %vm930 = vmor %vm928, %vm929
        %v932 = vshrl.u32 %v898, 16
        %v934 = vrot.slane %v932, 4
        %v935 = vshll.u32 %v898, 16
        %v937 = vrot.slane %v935, 5
        %v938 = vor.u32 %v934, %v937
        %v939 = vrot.slane %v938, 4
        %v941 = vshll.u32 %v899, 16
        %v943 = vrot.slane %v941, 5
        %v944 = vsel %vm930, %v939, %v943
        %v945 = vshrl.u32 %v899, 16
        %v947 = vrot.slane %v945, 4
        %v948 = vor.u32 %v947, %v943
        %v949 = vrot.slane %v948, 4
        %v951 = vshll.u32 %v900, 16
        %v953 = vrot.slane %v951, 5
        %v954 = vsel %vm930, %v949, %v953
        %v956 = vshrl.u32 %v901, 16
        %v958 = vrot.slane %v956, 4
        %v959 = vshll.u32 %v901, 16
        %v961 = vrot.slane %v959, 5
        %v962 = vor.u32 %v958, %v961
        %v963 = vrot.slane %v962, 4
        %v965 = vshll.u32 %v902, 16
        %v967 = vrot.slane %v965, 5
        %v968 = vsel %vm930, %v963, %v967
        %v969 = vshrl.u32 %v902, 16
        %v971 = vrot.slane %v969, 4
        %v972 = vor.u32 %v971, %v967
        %v973 = vrot.slane %v972, 4
        %v975 = vshll.u32 %v903, 16
        %v977 = vrot.slane %v975, 5
        %v978 = vsel %vm930, %v973, %v977
        %v980 = vshrl.u32 %v904, 16
        %v982 = vrot.slane %v980, 4
        %v983 = vshll.u32 %v904, 16
        %v985 = vrot.slane %v983, 5
        %v986 = vor.u32 %v982, %v985
        %v987 = vrot.slane %v986, 4
        %v989 = vshll.u32 %v905, 16
        %v991 = vrot.slane %v989, 5
        %v992 = vsel %vm930, %v987, %v991
        %v993 = vshrl.u32 %v905, 16
        %v995 = vrot.slane %v993, 4
        %v996 = vor.u32 %v995, %v991
        %v997 = vrot.slane %v996, 4
        %v999 = vshll.u32 %v906, 16
        %v1001 = vrot.slane %v999, 5
        %v1002 = vsel %vm930, %v997, %v1001
        %v1004 = vshrl.u32 %v907, 16
        %v1006 = vrot.slane %v1004, 4
        %v1007 = vshll.u32 %v907, 16
        %v1009 = vrot.slane %v1007, 5
        %v1010 = vor.u32 %v1006, %v1009
        %v1011 = vrot.slane %v1010, 4
        %v1013 = vshll.u32 %v908, 16
        %v1015 = vrot.slane %v1013, 5
        %v1016 = vsel %vm930, %v1011, %v1015
        %v1017 = vshrl.u32 %v908, 16
        %v1019 = vrot.slane %v1017, 4
        %v1020 = vor.u32 %v1019, %v1015
        %v1021 = vrot.slane %v1020, 4
        %v1023 = vshll.u32 %v909, 16
        %v1025 = vrot.slane %v1023, 5
        %v1026 = vsel %vm930, %v1021, %v1025
        %v1028 = vshrl.u32 %v910, 16
        %v1030 = vrot.slane %v1028, 4
        %v1031 = vshll.u32 %v910, 16
        %v1033 = vrot.slane %v1031, 5
        %v1034 = vor.u32 %v1030, %v1033
        %v1035 = vrot.slane %v1034, 4
        %v1037 = vshll.u32 %v911, 16
        %v1039 = vrot.slane %v1037, 5
        %v1040 = vsel %vm930, %v1035, %v1039
        %v1041 = vshrl.u32 %v911, 16
        %v1043 = vrot.slane %v1041, 4
        %v1044 = vor.u32 %v1043, %v1039
        %v1045 = vrot.slane %v1044, 4
        %v1047 = vshll.u32 %v912, 16
        %v1049 = vrot.slane %v1047, 5
        %v1050 = vsel %vm930, %v1045, %v1049
        %v1052 = vshrl.u32 %v913, 16
        %v1054 = vrot.slane %v1052, 4
        %v1055 = vshll.u32 %v913, 16
        %v1057 = vrot.slane %v1055, 5
        %v1058 = vor.u32 %v1054, %v1057
        %v1059 = vrot.slane %v1058, 4
        %v1061 = vshll.u32 %v914, 16
        %v1063 = vrot.slane %v1061, 5
        %v1064 = vsel %vm930, %v1059, %v1063
        %v1065 = vshrl.u32 %v914, 16
        %v1067 = vrot.slane %v1065, 4
        %v1068 = vor.u32 %v1067, %v1063
        %v1069 = vrot.slane %v1068, 4
        %v1071 = vshll.u32 %v915, 16
        %v1073 = vrot.slane %v1071, 5
        %v1074 = vsel %vm930, %v1069, %v1073
        %v1076 = vshrl.u32 %v916, 16
        %v1078 = vrot.slane %v1076, 4
        %v1079 = vshll.u32 %v916, 16
        %v1081 = vrot.slane %v1079, 5
        %v1082 = vor.u32 %v1078, %v1081
        %v1083 = vrot.slane %v1082, 4
        %v1085 = vshll.u32 %v917, 16
        %v1087 = vrot.slane %v1085, 5
        %v1088 = vsel %vm930, %v1083, %v1087
        %v1089 = vshrl.u32 %v917, 16
        %v1091 = vrot.slane %v1089, 4
        %v1092 = vor.u32 %v1091, %v1087
        %v1093 = vrot.slane %v1092, 4
        %v1095 = vshll.u32 %v918, 16
        %v1097 = vrot.slane %v1095, 5
        %v1098 = vsel %vm930, %v1093, %v1097
        %v1100 = vshrl.u32 %v919, 16
        %v1102 = vrot.slane %v1100, 4
        %v1103 = vshll.u32 %v919, 16
        %v1105 = vrot.slane %v1103, 5
        %v1106 = vor.u32 %v1102, %v1105
        %v1107 = vrot.slane %v1106, 4
        %v1109 = vshll.u32 %v920, 16
        %v1111 = vrot.slane %v1109, 5
        %v1112 = vsel %vm930, %v1107, %v1111
        %v1113 = vshrl.u32 %v920, 16
        %v1115 = vrot.slane %v1113, 4
        %v1116 = vor.u32 %v1115, %v1111
        %v1117 = vrot.slane %v1116, 4
        %v1119 = vshll.u32 %v921, 16
        %v1121 = vrot.slane %v1119, 5
        %v1122 = vsel %vm930, %v1117, %v1121
        %v1124 = vshrl.u32 %v922, 16
        %v1126 = vrot.slane %v1124, 4
        %v1127 = vshll.u32 %v922, 16
        %v1129 = vrot.slane %v1127, 5
        %v1130 = vor.u32 %v1126, %v1129
        %v1131 = vrot.slane %v1130, 4
        %v1133 = vshll.u32 %v923, 16
        %v1135 = vrot.slane %v1133, 5
        %v1136 = vsel %vm930, %v1131, %v1135
        %v1137 = vshrl.u32 %v923, 16
        %v1139 = vrot.slane %v1137, 4
        %v1140 = vor.u32 %v1139, %v1135
        %v1141 = vrot.slane %v1140, 4
        %v1143 = vshll.u32 %v924, 16
        %v1145 = vrot.slane %v1143, 5
        %v1146 = vsel %vm930, %v1141, %v1145
        %v1148 = vshrl.u32 %v925, 16
        %v1150 = vrot.slane %v1148, 4
        %v1151 = vshll.u32 %v925, 16
        %v1153 = vrot.slane %v1151, 5
        %v1154 = vor.u32 %v1150, %v1153
        %v1155 = vrot.slane %v1154, 4
        %v1157 = vshll.u32 %v926, 16
        %v1159 = vrot.slane %v1157, 5
        %v1160 = vsel %vm930, %v1155, %v1159
        %v1161 = vshrl.u32 %v926, 16
        %v1163 = vrot.slane %v1161, 4
        %v1164 = vor.u32 %v1163, %v1159
        %v1165 = vrot.slane %v1164, 4
        %v1167 = vshll.u32 %v927, 16
        %v1169 = vrot.slane %v1167, 5
        %v1170 = vsel %vm930, %v1165, %v1169
        %s1191 = scalar_lea.vmem [#allocation3], 160
        %1192 = vst [vmem:[%s1191] sm:$0xf] %v944
        %1193 = vst [vmem:[%s1191 + $0x4] sm:$0xf] %v954
        %1194 = vst [vmem:[%s1191 + $0x8] sm:$0xf] %v968
        %1195 = vst [vmem:[%s1191 + $0xc] sm:$0xf] %v978
        %1196 = vst [vmem:[%s1191 + $0x10] sm:$0xf] %v992
        %1197 = vst [vmem:[%s1191 + $0x14] sm:$0xf] %v1002
        %1198 = vst [vmem:[%s1191 + $0x18] sm:$0xf] %v1016
        %1199 = vst [vmem:[%s1191 + $0x1c] sm:$0xf] %v1026
        %1200 = vst [vmem:[%s1191 + $0x20] sm:$0xf] %v1040
        %1201 = vst [vmem:[%s1191 + $0x24] sm:$0xf] %v1050
        %1202 = vst [vmem:[%s1191 + $0x28] sm:$0xf] %v1064
        %1203 = vst [vmem:[%s1191 + $0x2c] sm:$0xf] %v1074
        %1204 = vst [vmem:[%s1191 + $0x30] sm:$0xf] %v1088
        %1205 = vst [vmem:[%s1191 + $0x34] sm:$0xf] %v1098
        %1206 = vst [vmem:[%s1191 + $0x38] sm:$0xf] %v1112
        %1207 = vst [vmem:[%s1191 + $0x3c] sm:$0xf] %v1122
        %1208 = vst [vmem:[%s1191 + $0x40] sm:$0xf] %v1136
        %1209 = vst [vmem:[%s1191 + $0x44] sm:$0xf] %v1146
        %1210 = vst [vmem:[%s1191 + $0x48] sm:$0xf] %v1160
        %1211 = vst [vmem:[%s1191 + $0x4c] sm:$0xf] %v1170
      $region44: #{double_conv_forward.2} parent=39 // pred_fallthru
        _
      %v1212 = vld [vmem:[%s424] sm:$0x1]
      %v1214 = vlaneseq
      %v1215 = vshrl.u32 %v1214, 7
      %v1216 = vsub.s32 0, %v1215
      %v1217 = vrot.slane %v1212, %v1216
      %v1219 = vld [vmem:[#allocation3] sm:$0xf]
      %v1220 = vld [vmem:[#allocation3 + $0x4] sm:$0xf]
      %v1221 = vld [vmem:[#allocation3 + $0x8] sm:$0xf]
      %v1222 = vld [vmem:[#allocation3 + $0xc] sm:$0xf]
      %v1223 = vld [vmem:[#allocation3 + $0x10] sm:$0xf]
      %v1224 = vld [vmem:[#allocation3 + $0x14] sm:$0xf]
      %v1225 = vld [vmem:[#allocation3 + $0x18] sm:$0xf]
      %v1226 = vld [vmem:[#allocation3 + $0x1c] sm:$0xf]
      %v1227 = vld [vmem:[#allocation3 + $0x20] sm:$0xf]
      %v1228 = vld [vmem:[#allocation3 + $0x24] sm:$0xf]
      %v1229 = vld [vmem:[#allocation3 + $0x28] sm:$0xf]
      %v1230 = vld [vmem:[#allocation3 + $0x2c] sm:$0xf]
      %v1231 = vld [vmem:[#allocation3 + $0x30] sm:$0xf]
      %v1232 = vld [vmem:[#allocation3 + $0x34] sm:$0xf]
      %v1233 = vld [vmem:[#allocation3 + $0x38] sm:$0xf]
      %v1234 = vld [vmem:[#allocation3 + $0x3c] sm:$0xf]
      %v1235 = vld [vmem:[%s421] sm:$0xf]
      %v1236 = vld [vmem:[%s421 + $0x4] sm:$0xf]
      %v1237 = vld [vmem:[%s421 + $0x8] sm:$0xf]
      %v1238 = vld [vmem:[%s421 + $0xc] sm:$0xf]
      %v1239 = vld [vmem:[%s421 + $0x10] sm:$0xf]
      %v1240 = vld [vmem:[%s421 + $0x14] sm:$0xf]
      %v1241 = vld [vmem:[%s421 + $0x18] sm:$0xf]
      %v1242 = vld [vmem:[%s421 + $0x1c] sm:$0xf]
      %v1243 = vld [vmem:[%s421 + $0x20] sm:$0xf]
      %v1244 = vld [vmem:[%s421 + $0x24] sm:$0xf]
      %v1245 = vld [vmem:[%s421 + $0x28] sm:$0xf]
      %v1246 = vld [vmem:[%s421 + $0x2c] sm:$0xf]
      %v1247 = vld [vmem:[%s421 + $0x30] sm:$0xf]
      %v1248 = vld [vmem:[%s421 + $0x34] sm:$0xf]
      %v1249 = vld [vmem:[%s421 + $0x38] sm:$0xf]
      %v1250 = vld [vmem:[%s421 + $0x3c] sm:$0xf]
      %v1267 = vunpack.c.l.b16 %v1219
      %v1268 = vunpack.c.l.b16 %v1220
      %v1269 = vunpack.c.l.b16 %v1221
      %v1270 = vunpack.c.l.b16 %v1222
      %v1271 = vunpack.c.l.b16 %v1223
      %v1272 = vunpack.c.l.b16 %v1224
      %v1273 = vunpack.c.l.b16 %v1225
      %v1274 = vunpack.c.l.b16 %v1226
      %v1275 = vunpack.c.l.b16 %v1227
      %v1276 = vunpack.c.l.b16 %v1228
      %v1277 = vunpack.c.l.b16 %v1229
      %v1278 = vunpack.c.l.b16 %v1230
      %v1279 = vunpack.c.l.b16 %v1231
      %v1280 = vunpack.c.l.b16 %v1232
      %v1281 = vunpack.c.l.b16 %v1233
      %v1282 = vunpack.c.l.b16 %v1234
      %v1283 = vpack.c.b16 %v1268, %v1267
      %v1284 = vpack.c.b16 %v1270, %v1269
      %v1285 = vpack.c.b16 %v1272, %v1271
      %v1286 = vpack.c.b16 %v1274, %v1273
      %v1287 = vpack.c.b16 %v1276, %v1275
      %v1288 = vpack.c.b16 %v1278, %v1277
      %v1289 = vpack.c.b16 %v1280, %v1279
      %v1290 = vpack.c.b16 %v1282, %v1281
      %v1315 = vunpack.c.l.b16 %v1235
      %v1316 = vunpack.c.l.b16 %v1236
      %v1317 = vunpack.c.l.b16 %v1237
      %v1318 = vunpack.c.l.b16 %v1238
      %v1319 = vunpack.c.l.b16 %v1239
      %v1320 = vunpack.c.l.b16 %v1240
      %v1321 = vunpack.c.l.b16 %v1241
      %v1322 = vunpack.c.l.b16 %v1242
      %v1323 = vunpack.c.l.b16 %v1243
      %v1324 = vunpack.c.l.b16 %v1244
      %v1325 = vunpack.c.l.b16 %v1245
      %v1326 = vunpack.c.l.b16 %v1246
      %v1327 = vunpack.c.l.b16 %v1247
      %v1328 = vunpack.c.l.b16 %v1248
      %v1329 = vunpack.c.l.b16 %v1249
      %v1330 = vunpack.c.l.b16 %v1250
      %v1331 = vpack.c.b16 %v1316, %v1315
      %v1332 = vpack.c.b16 %v1318, %v1317
      %v1333 = vpack.c.b16 %v1320, %v1319
      %v1334 = vpack.c.b16 %v1322, %v1321
      %v1335 = vpack.c.b16 %v1324, %v1323
      %v1336 = vpack.c.b16 %v1326, %v1325
      %v1337 = vpack.c.b16 %v1328, %v1327
      %v1338 = vpack.c.b16 %v1330, %v1329
      %1347 = vmatprep.subr.bf16.mxu0 0
      %1348 = vmatpush1.bf16.msra.mxu0 %v1338
      %1349 = vmatprep.subr.bf16.mxu0 0
      %1350 = vmatpush1.bf16.msra.mxu0 %v1337
      %1351 = vmatprep.subr.bf16.mxu0 0
      %1352 = vmatpush1.bf16.msra.mxu0 %v1336
      %1353 = vmatprep.subr.bf16.mxu0 0
      %1354 = vmatpush1.bf16.msra.mxu0 %v1335
      %1355 = vmatprep.subr.bf16.mxu0 0
      %1356 = vmatpush1.bf16.msra.mxu0 %v1334
      %1357 = vmatprep.subr.bf16.mxu0 0
      %1358 = vmatpush1.bf16.msra.mxu0 %v1333
      %1359 = vmatprep.subr.bf16.mxu0 0
      %1360 = vmatpush1.bf16.msra.mxu0 %v1332
      %1361 = vmatprep.subr.bf16.mxu0 0
      %1362 = vmatpush1.bf16.msra.mxu0 %v1331
      %1363 = vmatprep.subr.bf16.mxu0 0
      %1364 = vmatpush2.bf16.msra.mxu0 0
      %1365 = vmatprep.subr.bf16.mxu0 0
      %1366 = vmatpush2.bf16.msra.mxu0 0
      %1367 = vmatprep.subr.bf16.mxu0 0
      %1368 = vmatpush2.bf16.msra.mxu0 0
      %1369 = vmatprep.subr.bf16.mxu0 0
      %1370 = vmatpush2.bf16.msra.mxu0 0
      %1371 = vmatprep.subr.bf16.mxu0 0
      %1372 = vmatpush2.bf16.msra.mxu0 0
      %1373 = vmatprep.subr.bf16.mxu0 0
      %1374 = vmatpush2.bf16.msra.mxu0 0
      %1375 = vmatprep.subr.bf16.mxu0 0
      %1376 = vmatpush2.bf16.msra.mxu0 0
      %1377 = vmatprep.subr.bf16.mxu0 0
      %1378 = vmatpush2.bf16.msra.mxu0 0
      %1379 = vmatprep.mubr.bf16.mxu0 0
      %1380 = vmatmul.mubr.bf16.gmra.mxu0 %v1283
      %v1381 = vpop.f32.mrf.mxu0
      %v1382 = vadd.f32 0.0, %v1381
      %v1383 = vpop.f32.mrf.mxu0
      %v1384 = vpop.f32.mrf.mxu0
      %v1385 = vadd.f32 0.0, %v1384
      %v1386 = vpop.f32.mrf.mxu0
      %1387 = vmatprep.mubr.bf16.mxu0 0
      %1388 = vmatmul.mubr.bf16.gmra.mxu0 %v1284
      %v1389 = vpop.f32.mrf.mxu0
      %v1390 = vadd.f32 0.0, %v1389
      %v1391 = vpop.f32.mrf.mxu0
      %v1392 = vpop.f32.mrf.mxu0
      %v1393 = vadd.f32 0.0, %v1392
      %v1394 = vpop.f32.mrf.mxu0
      %1395 = vmatprep.mubr.bf16.mxu0 0
      %1396 = vmatmul.mubr.bf16.gmra.mxu0 %v1285
      %v1397 = vpop.f32.mrf.mxu0
      %v1398 = vadd.f32 0.0, %v1397
      %v1399 = vpop.f32.mrf.mxu0
      %v1400 = vpop.f32.mrf.mxu0
      %v1401 = vadd.f32 0.0, %v1400
      %v1402 = vpop.f32.mrf.mxu0
      %1403 = vmatprep.mubr.bf16.mxu0 0
      %1404 = vmatmul.mubr.bf16.gmra.mxu0 %v1286
      %v1405 = vpop.f32.mrf.mxu0
      %v1406 = vadd.f32 0.0, %v1405
      %v1407 = vpop.f32.mrf.mxu0
      %v1408 = vpop.f32.mrf.mxu0
      %v1409 = vadd.f32 0.0, %v1408
      %v1410 = vpop.f32.mrf.mxu0
      %1411 = vmatprep.mubr.bf16.mxu0 0
      %1412 = vmatmul.mubr.bf16.gmra.mxu0 %v1287
      %v1413 = vpop.f32.mrf.mxu0
      %v1414 = vadd.f32 0.0, %v1413
      %v1415 = vpop.f32.mrf.mxu0
      %v1416 = vpop.f32.mrf.mxu0
      %v1417 = vadd.f32 0.0, %v1416
      %v1418 = vpop.f32.mrf.mxu0
      %1419 = vmatprep.mubr.bf16.mxu0 0
      %1420 = vmatmul.mubr.bf16.gmra.mxu0 %v1288
      %v1421 = vpop.f32.mrf.mxu0
      %v1422 = vadd.f32 0.0, %v1421
      %v1423 = vpop.f32.mrf.mxu0
      %v1424 = vpop.f32.mrf.mxu0
      %v1425 = vadd.f32 0.0, %v1424
      %v1426 = vpop.f32.mrf.mxu0
      %1427 = vmatprep.mubr.bf16.mxu0 0
      %1428 = vmatmul.mubr.bf16.gmra.mxu0 %v1289
      %v1429 = vpop.f32.mrf.mxu0
      %v1430 = vadd.f32 0.0, %v1429
      %v1431 = vpop.f32.mrf.mxu0
      %v1432 = vpop.f32.mrf.mxu0
      %v1433 = vadd.f32 0.0, %v1432
      %v1434 = vpop.f32.mrf.mxu0
      %1435 = vmatprep.mubr.bf16.mxu0 0
      %1436 = vmatmul.mubr.bf16.gmra.mxu0 %v1290
      %v1437 = vpop.f32.mrf.mxu0
      %v1438 = vadd.f32 0.0, %v1437
      %v1439 = vpop.f32.mrf.mxu0
      %v1440 = vpop.f32.mrf.mxu0
      %v1441 = vadd.f32 0.0, %v1440
      %v1442 = vpop.f32.mrf.mxu0
      %1443 = vdwg.mxu0
      %v1444 = vadd.f32 %v1217, %v1382
      %v1445 = vadd.f32 %v1217, %v1385
      %v1446 = vadd.f32 %v1217, %v1390
      %v1447 = vadd.f32 %v1217, %v1393
      %v1448 = vadd.f32 %v1217, %v1398
      %v1449 = vadd.f32 %v1217, %v1401
      %v1450 = vadd.f32 %v1217, %v1406
      %v1451 = vadd.f32 %v1217, %v1409
      %v1452 = vadd.f32 %v1217, %v1414
      %v1453 = vadd.f32 %v1217, %v1417
      %v1454 = vadd.f32 %v1217, %v1422
      %v1455 = vadd.f32 %v1217, %v1425
      %v1456 = vadd.f32 %v1217, %v1430
      %v1457 = vadd.f32 %v1217, %v1433
      %v1458 = vadd.f32 %v1217, %v1438
      %v1459 = vadd.f32 %v1217, %v1441
      %s1460 = scalar_lea.vmem [#allocation3], 80
      %v1461 = vld [vmem:[%s1460] sm:$0xf]
      %v1462 = vld [vmem:[%s1460 + $0x4] sm:$0xf]
      %v1463 = vld [vmem:[%s1460 + $0x8] sm:$0xf]
      %v1464 = vld [vmem:[%s1460 + $0xc] sm:$0xf]
      %v1465 = vld [vmem:[%s1460 + $0x10] sm:$0xf]
      %v1466 = vld [vmem:[%s1460 + $0x14] sm:$0xf]
      %v1467 = vld [vmem:[%s1460 + $0x18] sm:$0xf]
      %v1468 = vld [vmem:[%s1460 + $0x1c] sm:$0xf]
      %v1469 = vld [vmem:[%s1460 + $0x20] sm:$0xf]
      %v1470 = vld [vmem:[%s1460 + $0x24] sm:$0xf]
      %v1471 = vld [vmem:[%s1460 + $0x28] sm:$0xf]
      %v1472 = vld [vmem:[%s1460 + $0x2c] sm:$0xf]
      %v1473 = vld [vmem:[%s1460 + $0x30] sm:$0xf]
      %v1474 = vld [vmem:[%s1460 + $0x34] sm:$0xf]
      %v1475 = vld [vmem:[%s1460 + $0x38] sm:$0xf]
      %v1476 = vld [vmem:[%s1460 + $0x3c] sm:$0xf]
      %s1477 = scalar_lea.vmem %s421, 64
      %v1478 = vld [vmem:[%s1477] sm:$0xf]
      %v1479 = vld [vmem:[%s1477 + $0x4] sm:$0xf]
      %v1480 = vld [vmem:[%s1477 + $0x8] sm:$0xf]
      %v1481 = vld [vmem:[%s1477 + $0xc] sm:$0xf]
      %v1482 = vld [vmem:[%s1477 + $0x10] sm:$0xf]
      %v1483 = vld [vmem:[%s1477 + $0x14] sm:$0xf]
      %v1484 = vld [vmem:[%s1477 + $0x18] sm:$0xf]
      %v1485 = vld [vmem:[%s1477 + $0x1c] sm:$0xf]
      %v1486 = vld [vmem:[%s1477 + $0x20] sm:$0xf]
      %v1487 = vld [vmem:[%s1477 + $0x24] sm:$0xf]
      %v1488 = vld [vmem:[%s1477 + $0x28] sm:$0xf]
      %v1489 = vld [vmem:[%s1477 + $0x2c] sm:$0xf]
      %v1490 = vld [vmem:[%s1477 + $0x30] sm:$0xf]
      %v1491 = vld [vmem:[%s1477 + $0x34] sm:$0xf]
      %v1492 = vld [vmem:[%s1477 + $0x38] sm:$0xf]
      %v1493 = vld [vmem:[%s1477 + $0x3c] sm:$0xf]
      %v1510 = vunpack.c.l.b16 %v1461
      %v1511 = vunpack.c.l.b16 %v1462
      %v1512 = vunpack.c.l.b16 %v1463
      %v1513 = vunpack.c.l.b16 %v1464
      %v1514 = vunpack.c.l.b16 %v1465
      %v1515 = vunpack.c.l.b16 %v1466
      %v1516 = vunpack.c.l.b16 %v1467
      %v1517 = vunpack.c.l.b16 %v1468
      %v1518 = vunpack.c.l.b16 %v1469
      %v1519 = vunpack.c.l.b16 %v1470
      %v1520 = vunpack.c.l.b16 %v1471
      %v1521 = vunpack.c.l.b16 %v1472
      %v1522 = vunpack.c.l.b16 %v1473
      %v1523 = vunpack.c.l.b16 %v1474
      %v1524 = vunpack.c.l.b16 %v1475
      %v1525 = vunpack.c.l.b16 %v1476
      %v1526 = vpack.c.b16 %v1511, %v1510
      %v1527 = vpack.c.b16 %v1513, %v1512
      %v1528 = vpack.c.b16 %v1515, %v1514
      %v1529 = vpack.c.b16 %v1517, %v1516
      %v1530 = vpack.c.b16 %v1519, %v1518
      %v1531 = vpack.c.b16 %v1521, %v1520
      %v1532 = vpack.c.b16 %v1523, %v1522
      %v1533 = vpack.c.b16 %v1525, %v1524
      %v1558 = vunpack.c.l.b16 %v1478
      %v1559 = vunpack.c.l.b16 %v1479
      %v1560 = vunpack.c.l.b16 %v1480
      %v1561 = vunpack.c.l.b16 %v1481
      %v1562 = vunpack.c.l.b16 %v1482
      %v1563 = vunpack.c.l.b16 %v1483
      %v1564 = vunpack.c.l.b16 %v1484
      %v1565 = vunpack.c.l.b16 %v1485
      %v1566 = vunpack.c.l.b16 %v1486
      %v1567 = vunpack.c.l.b16 %v1487
      %v1568 = vunpack.c.l.b16 %v1488
      %v1569 = vunpack.c.l.b16 %v1489
      %v1570 = vunpack.c.l.b16 %v1490
      %v1571 = vunpack.c.l.b16 %v1491
      %v1572 = vunpack.c.l.b16 %v1492
      %v1573 = vunpack.c.l.b16 %v1493
      %v1574 = vpack.c.b16 %v1559, %v1558
      %v1575 = vpack.c.b16 %v1561, %v1560
      %v1576 = vpack.c.b16 %v1563, %v1562
      %v1577 = vpack.c.b16 %v1565, %v1564
      %v1578 = vpack.c.b16 %v1567, %v1566
      %v1579 = vpack.c.b16 %v1569, %v1568
      %v1580 = vpack.c.b16 %v1571, %v1570
      %v1581 = vpack.c.b16 %v1573, %v1572
      %1590 = vmatprep.subr.bf16.mxu0 0
      %1591 = vmatpush1.bf16.msra.mxu0 %v1581
      %1592 = vmatprep.subr.bf16.mxu0 0
      %1593 = vmatpush1.bf16.msra.mxu0 %v1580
      %1594 = vmatprep.subr.bf16.mxu0 0
      %1595 = vmatpush1.bf16.msra.mxu0 %v1579
      %1596 = vmatprep.subr.bf16.mxu0 0
      %1597 = vmatpush1.bf16.msra.mxu0 %v1578
      %1598 = vmatprep.subr.bf16.mxu0 0
      %1599 = vmatpush1.bf16.msra.mxu0 %v1577
      %1600 = vmatprep.subr.bf16.mxu0 0
      %1601 = vmatpush1.bf16.msra.mxu0 %v1576
      %1602 = vmatprep.subr.bf16.mxu0 0
      %1603 = vmatpush1.bf16.msra.mxu0 %v1575
      %1604 = vmatprep.subr.bf16.mxu0 0
      %1605 = vmatpush1.bf16.msra.mxu0 %v1574
      %1606 = vmatprep.subr.bf16.mxu0 0
      %1607 = vmatpush2.bf16.msra.mxu0 0
      %1608 = vmatprep.subr.bf16.mxu0 0
      %1609 = vmatpush2.bf16.msra.mxu0 0
      %1610 = vmatprep.subr.bf16.mxu0 0
      %1611 = vmatpush2.bf16.msra.mxu0 0
      %1612 = vmatprep.subr.bf16.mxu0 0
      %1613 = vmatpush2.bf16.msra.mxu0 0
      %1614 = vmatprep.subr.bf16.mxu0 0
      %1615 = vmatpush2.bf16.msra.mxu0 0
      %1616 = vmatprep.subr.bf16.mxu0 0
      %1617 = vmatpush2.bf16.msra.mxu0 0
      %1618 = vmatprep.subr.bf16.mxu0 0
      %1619 = vmatpush2.bf16.msra.mxu0 0
      %1620 = vmatprep.subr.bf16.mxu0 0
      %1621 = vmatpush2.bf16.msra.mxu0 0
      %1622 = vmatprep.mubr.bf16.mxu0 0
      %1623 = vmatmul.mubr.bf16.gmra.mxu0 %v1526
      %v1624 = vpop.f32.mrf.mxu0
      %v1625 = vadd.f32 0.0, %v1624
      %v1626 = vpop.f32.mrf.mxu0
      %v1627 = vpop.f32.mrf.mxu0
      %v1628 = vadd.f32 0.0, %v1627
      %v1629 = vpop.f32.mrf.mxu0
      %1630 = vmatprep.mubr.bf16.mxu0 0
      %1631 = vmatmul.mubr.bf16.gmra.mxu0 %v1527
      %v1632 = vpop.f32.mrf.mxu0
      %v1633 = vadd.f32 0.0, %v1632
      %v1634 = vpop.f32.mrf.mxu0
      %v1635 = vpop.f32.mrf.mxu0
      %v1636 = vadd.f32 0.0, %v1635
      %v1637 = vpop.f32.mrf.mxu0
      %1638 = vmatprep.mubr.bf16.mxu0 0
      %1639 = vmatmul.mubr.bf16.gmra.mxu0 %v1528
      %v1640 = vpop.f32.mrf.mxu0
      %v1641 = vadd.f32 0.0, %v1640
      %v1642 = vpop.f32.mrf.mxu0
      %v1643 = vpop.f32.mrf.mxu0
      %v1644 = vadd.f32 0.0, %v1643
      %v1645 = vpop.f32.mrf.mxu0
      %1646 = vmatprep.mubr.bf16.mxu0 0
      %1647 = vmatmul.mubr.bf16.gmra.mxu0 %v1529
      %v1648 = vpop.f32.mrf.mxu0
      %v1649 = vadd.f32 0.0, %v1648
      %v1650 = vpop.f32.mrf.mxu0
      %v1651 = vpop.f32.mrf.mxu0
      %v1652 = vadd.f32 0.0, %v1651
      %v1653 = vpop.f32.mrf.mxu0
      %1654 = vmatprep.mubr.bf16.mxu0 0
      %1655 = vmatmul.mubr.bf16.gmra.mxu0 %v1530
      %v1656 = vpop.f32.mrf.mxu0
      %v1657 = vadd.f32 0.0, %v1656
      %v1658 = vpop.f32.mrf.mxu0
      %v1659 = vpop.f32.mrf.mxu0
      %v1660 = vadd.f32 0.0, %v1659
      %v1661 = vpop.f32.mrf.mxu0
      %1662 = vmatprep.mubr.bf16.mxu0 0
      %1663 = vmatmul.mubr.bf16.gmra.mxu0 %v1531
      %v1664 = vpop.f32.mrf.mxu0
      %v1665 = vadd.f32 0.0, %v1664
      %v1666 = vpop.f32.mrf.mxu0
      %v1667 = vpop.f32.mrf.mxu0
      %v1668 = vadd.f32 0.0, %v1667
      %v1669 = vpop.f32.mrf.mxu0
      %1670 = vmatprep.mubr.bf16.mxu0 0
      %1671 = vmatmul.mubr.bf16.gmra.mxu0 %v1532
      %v1672 = vpop.f32.mrf.mxu0
      %v1673 = vadd.f32 0.0, %v1672
      %v1674 = vpop.f32.mrf.mxu0
      %v1675 = vpop.f32.mrf.mxu0
      %v1676 = vadd.f32 0.0, %v1675
      %v1677 = vpop.f32.mrf.mxu0
      %1678 = vmatprep.mubr.bf16.mxu0 0
      %1679 = vmatmul.mubr.bf16.gmra.mxu0 %v1533
      %v1680 = vpop.f32.mrf.mxu0
      %v1681 = vadd.f32 0.0, %v1680
      %v1682 = vpop.f32.mrf.mxu0
      %v1683 = vpop.f32.mrf.mxu0
      %v1684 = vadd.f32 0.0, %v1683
      %v1685 = vpop.f32.mrf.mxu0
      %1686 = vdwg.mxu0
      %v1687 = vadd.f32 %v1444, %v1625
      %v1688 = vadd.f32 %v1445, %v1628
      %v1689 = vadd.f32 %v1446, %v1633
      %v1690 = vadd.f32 %v1447, %v1636
      %v1691 = vadd.f32 %v1448, %v1641
      %v1692 = vadd.f32 %v1449, %v1644
      %v1693 = vadd.f32 %v1450, %v1649
      %v1694 = vadd.f32 %v1451, %v1652
      %v1695 = vadd.f32 %v1452, %v1657
      %v1696 = vadd.f32 %v1453, %v1660
      %v1697 = vadd.f32 %v1454, %v1665
      %v1698 = vadd.f32 %v1455, %v1668
      %v1699 = vadd.f32 %v1456, %v1673
      %v1700 = vadd.f32 %v1457, %v1676
      %v1701 = vadd.f32 %v1458, %v1681
      %v1702 = vadd.f32 %v1459, %v1684
      %s1703 = scalar_lea.vmem [#allocation3], 160
      %v1704 = vld [vmem:[%s1703] sm:$0xf]
      %v1705 = vld [vmem:[%s1703 + $0x4] sm:$0xf]
      %v1706 = vld [vmem:[%s1703 + $0x8] sm:$0xf]
      %v1707 = vld [vmem:[%s1703 + $0xc] sm:$0xf]
      %v1708 = vld [vmem:[%s1703 + $0x10] sm:$0xf]
      %v1709 = vld [vmem:[%s1703 + $0x14] sm:$0xf]
      %v1710 = vld [vmem:[%s1703 + $0x18] sm:$0xf]
      %v1711 = vld [vmem:[%s1703 + $0x1c] sm:$0xf]
      %v1712 = vld [vmem:[%s1703 + $0x20] sm:$0xf]
      %v1713 = vld [vmem:[%s1703 + $0x24] sm:$0xf]
      %v1714 = vld [vmem:[%s1703 + $0x28] sm:$0xf]
      %v1715 = vld [vmem:[%s1703 + $0x2c] sm:$0xf]
      %v1716 = vld [vmem:[%s1703 + $0x30] sm:$0xf]
      %v1717 = vld [vmem:[%s1703 + $0x34] sm:$0xf]
      %v1718 = vld [vmem:[%s1703 + $0x38] sm:$0xf]
      %v1719 = vld [vmem:[%s1703 + $0x3c] sm:$0xf]
      %s1720 = scalar_lea.vmem %s421, 128
      %v1721 = vld [vmem:[%s1720] sm:$0xf]
      %v1722 = vld [vmem:[%s1720 + $0x4] sm:$0xf]
      %v1723 = vld [vmem:[%s1720 + $0x8] sm:$0xf]
      %v1724 = vld [vmem:[%s1720 + $0xc] sm:$0xf]
      %v1725 = vld [vmem:[%s1720 + $0x10] sm:$0xf]
      %v1726 = vld [vmem:[%s1720 + $0x14] sm:$0xf]
      %v1727 = vld [vmem:[%s1720 + $0x18] sm:$0xf]
      %v1728 = vld [vmem:[%s1720 + $0x1c] sm:$0xf]
      %v1729 = vld [vmem:[%s1720 + $0x20] sm:$0xf]
      %v1730 = vld [vmem:[%s1720 + $0x24] sm:$0xf]
      %v1731 = vld [vmem:[%s1720 + $0x28] sm:$0xf]
      %v1732 = vld [vmem:[%s1720 + $0x2c] sm:$0xf]
      %v1733 = vld [vmem:[%s1720 + $0x30] sm:$0xf]
      %v1734 = vld [vmem:[%s1720 + $0x34] sm:$0xf]
      %v1735 = vld [vmem:[%s1720 + $0x38] sm:$0xf]
      %v1736 = vld [vmem:[%s1720 + $0x3c] sm:$0xf]
      %v1753 = vunpack.c.l.b16 %v1704
      %v1754 = vunpack.c.l.b16 %v1705
      %v1755 = vunpack.c.l.b16 %v1706
      %v1756 = vunpack.c.l.b16 %v1707
      %v1757 = vunpack.c.l.b16 %v1708
      %v1758 = vunpack.c.l.b16 %v1709
      %v1759 = vunpack.c.l.b16 %v1710
      %v1760 = vunpack.c.l.b16 %v1711
      %v1761 = vunpack.c.l.b16 %v1712
      %v1762 = vunpack.c.l.b16 %v1713
      %v1763 = vunpack.c.l.b16 %v1714
      %v1764 = vunpack.c.l.b16 %v1715
      %v1765 = vunpack.c.l.b16 %v1716
      %v1766 = vunpack.c.l.b16 %v1717
      %v1767 = vunpack.c.l.b16 %v1718
      %v1768 = vunpack.c.l.b16 %v1719
      %v1769 = vpack.c.b16 %v1754, %v1753
      %v1770 = vpack.c.b16 %v1756, %v1755
      %v1771 = vpack.c.b16 %v1758, %v1757
      %v1772 = vpack.c.b16 %v1760, %v1759
      %v1773 = vpack.c.b16 %v1762, %v1761
      %v1774 = vpack.c.b16 %v1764, %v1763
      %v1775 = vpack.c.b16 %v1766, %v1765
      %v1776 = vpack.c.b16 %v1768, %v1767
      %v1801 = vunpack.c.l.b16 %v1721
      %v1802 = vunpack.c.l.b16 %v1722
      %v1803 = vunpack.c.l.b16 %v1723
      %v1804 = vunpack.c.l.b16 %v1724
      %v1805 = vunpack.c.l.b16 %v1725
      %v1806 = vunpack.c.l.b16 %v1726
      %v1807 = vunpack.c.l.b16 %v1727
      %v1808 = vunpack.c.l.b16 %v1728
      %v1809 = vunpack.c.l.b16 %v1729
      %v1810 = vunpack.c.l.b16 %v1730
      %v1811 = vunpack.c.l.b16 %v1731
      %v1812 = vunpack.c.l.b16 %v1732
      %v1813 = vunpack.c.l.b16 %v1733
      %v1814 = vunpack.c.l.b16 %v1734
      %v1815 = vunpack.c.l.b16 %v1735
      %v1816 = vunpack.c.l.b16 %v1736
      %v1817 = vpack.c.b16 %v1802, %v1801
      %v1818 = vpack.c.b16 %v1804, %v1803
      %v1819 = vpack.c.b16 %v1806, %v1805
      %v1820 = vpack.c.b16 %v1808, %v1807
      %v1821 = vpack.c.b16 %v1810, %v1809
      %v1822 = vpack.c.b16 %v1812, %v1811
      %v1823 = vpack.c.b16 %v1814, %v1813
      %v1824 = vpack.c.b16 %v1816, %v1815
      %1833 = vmatprep.subr.bf16.mxu0 0
      %1834 = vmatpush1.bf16.msra.mxu0 %v1824
      %1835 = vmatprep.subr.bf16.mxu0 0
      %1836 = vmatpush1.bf16.msra.mxu0 %v1823
      %1837 = vmatprep.subr.bf16.mxu0 0
      %1838 = vmatpush1.bf16.msra.mxu0 %v1822
      %1839 = vmatprep.subr.bf16.mxu0 0
      %1840 = vmatpush1.bf16.msra.mxu0 %v1821
      %1841 = vmatprep.subr.bf16.mxu0 0
      %1842 = vmatpush1.bf16.msra.mxu0 %v1820
      %1843 = vmatprep.subr.bf16.mxu0 0
      %1844 = vmatpush1.bf16.msra.mxu0 %v1819
      %1845 = vmatprep.subr.bf16.mxu0 0
      %1846 = vmatpush1.bf16.msra.mxu0 %v1818
      %1847 = vmatprep.subr.bf16.mxu0 0
      %1848 = vmatpush1.bf16.msra.mxu0 %v1817
      %1849 = vmatprep.subr.bf16.mxu0 0
      %1850 = vmatpush2.bf16.msra.mxu0 0
      %1851 = vmatprep.subr.bf16.mxu0 0
      %1852 = vmatpush2.bf16.msra.mxu0 0
      %1853 = vmatprep.subr.bf16.mxu0 0
      %1854 = vmatpush2.bf16.msra.mxu0 0
      %1855 = vmatprep.subr.bf16.mxu0 0
      %1856 = vmatpush2.bf16.msra.mxu0 0
      %1857 = vmatprep.subr.bf16.mxu0 0
      %1858 = vmatpush2.bf16.msra.mxu0 0
      %1859 = vmatprep.subr.bf16.mxu0 0
      %1860 = vmatpush2.bf16.msra.mxu0 0
      %1861 = vmatprep.subr.bf16.mxu0 0
      %1862 = vmatpush2.bf16.msra.mxu0 0
      %1863 = vmatprep.subr.bf16.mxu0 0
      %1864 = vmatpush2.bf16.msra.mxu0 0
      %1865 = vmatprep.mubr.bf16.mxu0 0
      %1866 = vmatmul.mubr.bf16.gmra.mxu0 %v1769
      %v1867 = vpop.f32.mrf.mxu0
      %v1868 = vadd.f32 0.0, %v1867
      %v1869 = vpop.f32.mrf.mxu0
      %v1870 = vpop.f32.mrf.mxu0
      %v1871 = vadd.f32 0.0, %v1870
      %v1872 = vpop.f32.mrf.mxu0
      %1873 = vmatprep.mubr.bf16.mxu0 0
      %1874 = vmatmul.mubr.bf16.gmra.mxu0 %v1770
      %v1875 = vpop.f32.mrf.mxu0
      %v1876 = vadd.f32 0.0, %v1875
      %v1877 = vpop.f32.mrf.mxu0
      %v1878 = vpop.f32.mrf.mxu0
      %v1879 = vadd.f32 0.0, %v1878
      %v1880 = vpop.f32.mrf.mxu0
      %1881 = vmatprep.mubr.bf16.mxu0 0
      %1882 = vmatmul.mubr.bf16.gmra.mxu0 %v1771
      %v1883 = vpop.f32.mrf.mxu0
      %v1884 = vadd.f32 0.0, %v1883
      %v1885 = vpop.f32.mrf.mxu0
      %v1886 = vpop.f32.mrf.mxu0
      %v1887 = vadd.f32 0.0, %v1886
      %v1888 = vpop.f32.mrf.mxu0
      %1889 = vmatprep.mubr.bf16.mxu0 0
      %1890 = vmatmul.mubr.bf16.gmra.mxu0 %v1772
      %v1891 = vpop.f32.mrf.mxu0
      %v1892 = vadd.f32 0.0, %v1891
      %v1893 = vpop.f32.mrf.mxu0
      %v1894 = vpop.f32.mrf.mxu0
      %v1895 = vadd.f32 0.0, %v1894
      %v1896 = vpop.f32.mrf.mxu0
      %1897 = vmatprep.mubr.bf16.mxu0 0
      %1898 = vmatmul.mubr.bf16.gmra.mxu0 %v1773
      %v1899 = vpop.f32.mrf.mxu0
      %v1900 = vadd.f32 0.0, %v1899
      %v1901 = vpop.f32.mrf.mxu0
      %v1902 = vpop.f32.mrf.mxu0
      %v1903 = vadd.f32 0.0, %v1902
      %v1904 = vpop.f32.mrf.mxu0
      %1905 = vmatprep.mubr.bf16.mxu0 0
      %1906 = vmatmul.mubr.bf16.gmra.mxu0 %v1774
      %v1907 = vpop.f32.mrf.mxu0
      %v1908 = vadd.f32 0.0, %v1907
      %v1909 = vpop.f32.mrf.mxu0
      %v1910 = vpop.f32.mrf.mxu0
      %v1911 = vadd.f32 0.0, %v1910
      %v1912 = vpop.f32.mrf.mxu0
      %1913 = vmatprep.mubr.bf16.mxu0 0
      %1914 = vmatmul.mubr.bf16.gmra.mxu0 %v1775
      %v1915 = vpop.f32.mrf.mxu0
      %v1916 = vadd.f32 0.0, %v1915
      %v1917 = vpop.f32.mrf.mxu0
      %v1918 = vpop.f32.mrf.mxu0
      %v1919 = vadd.f32 0.0, %v1918
      %v1920 = vpop.f32.mrf.mxu0
      %1921 = vmatprep.mubr.bf16.mxu0 0
      %1922 = vmatmul.mubr.bf16.gmra.mxu0 %v1776
      %v1923 = vpop.f32.mrf.mxu0
      %v1924 = vadd.f32 0.0, %v1923
      %v1925 = vpop.f32.mrf.mxu0
      %v1926 = vpop.f32.mrf.mxu0
      %v1927 = vadd.f32 0.0, %v1926
      %v1928 = vpop.f32.mrf.mxu0
      %1929 = vdwg.mxu0
      %v1930 = vadd.f32 %v1687, %v1868
      %v1931 = vadd.f32 %v1688, %v1871
      %v1932 = vadd.f32 %v1689, %v1876
      %v1933 = vadd.f32 %v1690, %v1879
      %v1934 = vadd.f32 %v1691, %v1884
      %v1935 = vadd.f32 %v1692, %v1887
      %v1936 = vadd.f32 %v1693, %v1892
      %v1937 = vadd.f32 %v1694, %v1895
      %v1938 = vadd.f32 %v1695, %v1900
      %v1939 = vadd.f32 %v1696, %v1903
      %v1940 = vadd.f32 %v1697, %v1908
      %v1941 = vadd.f32 %v1698, %v1911
      %v1942 = vadd.f32 %v1699, %v1916
      %v1943 = vadd.f32 %v1700, %v1919
      %v1944 = vadd.f32 %v1701, %v1924
      %v1945 = vadd.f32 %v1702, %v1927
      %s1946 = scalar_lea.vmem [#allocation3], 8
      %v1947 = vld [vmem:[%s1946] sm:$0xf]
      %v1948 = vld [vmem:[%s1946 + $0x4] sm:$0xf]
      %v1949 = vld [vmem:[%s1946 + $0x8] sm:$0xf]
      %v1950 = vld [vmem:[%s1946 + $0xc] sm:$0xf]
      %v1951 = vld [vmem:[%s1946 + $0x10] sm:$0xf]
      %v1952 = vld [vmem:[%s1946 + $0x14] sm:$0xf]
      %v1953 = vld [vmem:[%s1946 + $0x18] sm:$0xf]
      %v1954 = vld [vmem:[%s1946 + $0x1c] sm:$0xf]
      %v1955 = vld [vmem:[%s1946 + $0x20] sm:$0xf]
      %v1956 = vld [vmem:[%s1946 + $0x24] sm:$0xf]
      %v1957 = vld [vmem:[%s1946 + $0x28] sm:$0xf]
      %v1958 = vld [vmem:[%s1946 + $0x2c] sm:$0xf]
      %v1959 = vld [vmem:[%s1946 + $0x30] sm:$0xf]
      %v1960 = vld [vmem:[%s1946 + $0x34] sm:$0xf]
      %v1961 = vld [vmem:[%s1946 + $0x38] sm:$0xf]
      %v1962 = vld [vmem:[%s1946 + $0x3c] sm:$0xf]
      %s1963 = scalar_lea.vmem %s421, 192
      %v1964 = vld [vmem:[%s1963] sm:$0xf]
      %v1965 = vld [vmem:[%s1963 + $0x4] sm:$0xf]
      %v1966 = vld [vmem:[%s1963 + $0x8] sm:$0xf]
      %v1967 = vld [vmem:[%s1963 + $0xc] sm:$0xf]
      %v1968 = vld [vmem:[%s1963 + $0x10] sm:$0xf]
      %v1969 = vld [vmem:[%s1963 + $0x14] sm:$0xf]
      %v1970 = vld [vmem:[%s1963 + $0x18] sm:$0xf]
      %v1971 = vld [vmem:[%s1963 + $0x1c] sm:$0xf]
      %v1972 = vld [vmem:[%s1963 + $0x20] sm:$0xf]
      %v1973 = vld [vmem:[%s1963 + $0x24] sm:$0xf]
      %v1974 = vld [vmem:[%s1963 + $0x28] sm:$0xf]
      %v1975 = vld [vmem:[%s1963 + $0x2c] sm:$0xf]
      %v1976 = vld [vmem:[%s1963 + $0x30] sm:$0xf]
      %v1977 = vld [vmem:[%s1963 + $0x34] sm:$0xf]
      %v1978 = vld [vmem:[%s1963 + $0x38] sm:$0xf]
      %v1979 = vld [vmem:[%s1963 + $0x3c] sm:$0xf]
      %v1996 = vunpack.c.l.b16 %v1947
      %v1997 = vunpack.c.l.b16 %v1948
      %v1998 = vunpack.c.l.b16 %v1949
      %v1999 = vunpack.c.l.b16 %v1950
      %v2000 = vunpack.c.l.b16 %v1951
      %v2001 = vunpack.c.l.b16 %v1952
      %v2002 = vunpack.c.l.b16 %v1953
      %v2003 = vunpack.c.l.b16 %v1954
      %v2004 = vunpack.c.l.b16 %v1955
      %v2005 = vunpack.c.l.b16 %v1956
      %v2006 = vunpack.c.l.b16 %v1957
      %v2007 = vunpack.c.l.b16 %v1958
      %v2008 = vunpack.c.l.b16 %v1959
      %v2009 = vunpack.c.l.b16 %v1960
      %v2010 = vunpack.c.l.b16 %v1961
      %v2011 = vunpack.c.l.b16 %v1962
      %v2012 = vpack.c.b16 %v1997, %v1996
      %v2013 = vpack.c.b16 %v1999, %v1998
      %v2014 = vpack.c.b16 %v2001, %v2000
      %v2015 = vpack.c.b16 %v2003, %v2002
      %v2016 = vpack.c.b16 %v2005, %v2004
      %v2017 = vpack.c.b16 %v2007, %v2006
      %v2018 = vpack.c.b16 %v2009, %v2008
      %v2019 = vpack.c.b16 %v2011, %v2010
      %v2044 = vunpack.c.l.b16 %v1964
      %v2045 = vunpack.c.l.b16 %v1965
      %v2046 = vunpack.c.l.b16 %v1966
      %v2047 = vunpack.c.l.b16 %v1967
      %v2048 = vunpack.c.l.b16 %v1968
      %v2049 = vunpack.c.l.b16 %v1969
      %v2050 = vunpack.c.l.b16 %v1970
      %v2051 = vunpack.c.l.b16 %v1971
      %v2052 = vunpack.c.l.b16 %v1972
      %v2053 = vunpack.c.l.b16 %v1973
      %v2054 = vunpack.c.l.b16 %v1974
      %v2055 = vunpack.c.l.b16 %v1975
      %v2056 = vunpack.c.l.b16 %v1976
      %v2057 = vunpack.c.l.b16 %v1977
      %v2058 = vunpack.c.l.b16 %v1978
      %v2059 = vunpack.c.l.b16 %v1979
      %v2060 = vpack.c.b16 %v2045, %v2044
      %v2061 = vpack.c.b16 %v2047, %v2046
      %v2062 = vpack.c.b16 %v2049, %v2048
      %v2063 = vpack.c.b16 %v2051, %v2050
      %v2064 = vpack.c.b16 %v2053, %v2052
      %v2065 = vpack.c.b16 %v2055, %v2054
      %v2066 = vpack.c.b16 %v2057, %v2056
      %v2067 = vpack.c.b16 %v2059, %v2058
      %2076 = vmatprep.subr.bf16.mxu0 0
      %2077 = vmatpush1.bf16.msra.mxu0 %v2067
      %2078 = vmatprep.subr.bf16.mxu0 0
      %2079 = vmatpush1.bf16.msra.mxu0 %v2066
      %2080 = vmatprep.subr.bf16.mxu0 0
      %2081 = vmatpush1.bf16.msra.mxu0 %v2065
      %2082 = vmatprep.subr.bf16.mxu0 0
      %2083 = vmatpush1.bf16.msra.mxu0 %v2064
      %2084 = vmatprep.subr.bf16.mxu0 0
      %2085 = vmatpush1.bf16.msra.mxu0 %v2063
      %2086 = vmatprep.subr.bf16.mxu0 0
      %2087 = vmatpush1.bf16.msra.mxu0 %v2062
      %2088 = vmatprep.subr.bf16.mxu0 0
      %2089 = vmatpush1.bf16.msra.mxu0 %v2061
      %2090 = vmatprep.subr.bf16.mxu0 0
      %2091 = vmatpush1.bf16.msra.mxu0 %v2060
      %2092 = vmatprep.subr.bf16.mxu0 0
      %2093 = vmatpush2.bf16.msra.mxu0 0
      %2094 = vmatprep.subr.bf16.mxu0 0
      %2095 = vmatpush2.bf16.msra.mxu0 0
      %2096 = vmatprep.subr.bf16.mxu0 0
      %2097 = vmatpush2.bf16.msra.mxu0 0
      %2098 = vmatprep.subr.bf16.mxu0 0
      %2099 = vmatpush2.bf16.msra.mxu0 0
      %2100 = vmatprep.subr.bf16.mxu0 0
      %2101 = vmatpush2.bf16.msra.mxu0 0
      %2102 = vmatprep.subr.bf16.mxu0 0
      %2103 = vmatpush2.bf16.msra.mxu0 0
      %2104 = vmatprep.subr.bf16.mxu0 0
      %2105 = vmatpush2.bf16.msra.mxu0 0
      %2106 = vmatprep.subr.bf16.mxu0 0
      %2107 = vmatpush2.bf16.msra.mxu0 0
      %2108 = vmatprep.mubr.bf16.mxu0 0
      %2109 = vmatmul.mubr.bf16.gmra.mxu0 %v2012
      %v2110 = vpop.f32.mrf.mxu0
      %v2111 = vadd.f32 0.0, %v2110
      %v2112 = vpop.f32.mrf.mxu0
      %v2113 = vpop.f32.mrf.mxu0
      %v2114 = vadd.f32 0.0, %v2113
      %v2115 = vpop.f32.mrf.mxu0
      %2116 = vmatprep.mubr.bf16.mxu0 0
      %2117 = vmatmul.mubr.bf16.gmra.mxu0 %v2013
      %v2118 = vpop.f32.mrf.mxu0
      %v2119 = vadd.f32 0.0, %v2118
      %v2120 = vpop.f32.mrf.mxu0
      %v2121 = vpop.f32.mrf.mxu0
      %v2122 = vadd.f32 0.0, %v2121
      %v2123 = vpop.f32.mrf.mxu0
      %2124 = vmatprep.mubr.bf16.mxu0 0
      %2125 = vmatmul.mubr.bf16.gmra.mxu0 %v2014
      %v2126 = vpop.f32.mrf.mxu0
      %v2127 = vadd.f32 0.0, %v2126
      %v2128 = vpop.f32.mrf.mxu0
      %v2129 = vpop.f32.mrf.mxu0
      %v2130 = vadd.f32 0.0, %v2129
      %v2131 = vpop.f32.mrf.mxu0
      %2132 = vmatprep.mubr.bf16.mxu0 0
      %2133 = vmatmul.mubr.bf16.gmra.mxu0 %v2015
      %v2134 = vpop.f32.mrf.mxu0
      %v2135 = vadd.f32 0.0, %v2134
      %v2136 = vpop.f32.mrf.mxu0
      %v2137 = vpop.f32.mrf.mxu0
      %v2138 = vadd.f32 0.0, %v2137
      %v2139 = vpop.f32.mrf.mxu0
      %2140 = vmatprep.mubr.bf16.mxu0 0
      %2141 = vmatmul.mubr.bf16.gmra.mxu0 %v2016
      %v2142 = vpop.f32.mrf.mxu0
      %v2143 = vadd.f32 0.0, %v2142
      %v2144 = vpop.f32.mrf.mxu0
      %v2145 = vpop.f32.mrf.mxu0
      %v2146 = vadd.f32 0.0, %v2145
      %v2147 = vpop.f32.mrf.mxu0
      %2148 = vmatprep.mubr.bf16.mxu0 0
      %2149 = vmatmul.mubr.bf16.gmra.mxu0 %v2017
      %v2150 = vpop.f32.mrf.mxu0
      %v2151 = vadd.f32 0.0, %v2150
      %v2152 = vpop.f32.mrf.mxu0
      %v2153 = vpop.f32.mrf.mxu0
      %v2154 = vadd.f32 0.0, %v2153
      %v2155 = vpop.f32.mrf.mxu0
      %2156 = vmatprep.mubr.bf16.mxu0 0
      %2157 = vmatmul.mubr.bf16.gmra.mxu0 %v2018
      %v2158 = vpop.f32.mrf.mxu0
      %v2159 = vadd.f32 0.0, %v2158
      %v2160 = vpop.f32.mrf.mxu0
      %v2161 = vpop.f32.mrf.mxu0
      %v2162 = vadd.f32 0.0, %v2161
      %v2163 = vpop.f32.mrf.mxu0
      %2164 = vmatprep.mubr.bf16.mxu0 0
      %2165 = vmatmul.mubr.bf16.gmra.mxu0 %v2019
      %v2166 = vpop.f32.mrf.mxu0
      %v2167 = vadd.f32 0.0, %v2166
      %v2168 = vpop.f32.mrf.mxu0
      %v2169 = vpop.f32.mrf.mxu0
      %v2170 = vadd.f32 0.0, %v2169
      %v2171 = vpop.f32.mrf.mxu0
      %2172 = vdwg.mxu0
      %v2173 = vadd.f32 %v1930, %v2111
      %v2174 = vadd.f32 %v1931, %v2114
      %v2175 = vadd.f32 %v1932, %v2119
      %v2176 = vadd.f32 %v1933, %v2122
      %v2177 = vadd.f32 %v1934, %v2127
      %v2178 = vadd.f32 %v1935, %v2130
      %v2179 = vadd.f32 %v1936, %v2135
      %v2180 = vadd.f32 %v1937, %v2138
      %v2181 = vadd.f32 %v1938, %v2143
      %v2182 = vadd.f32 %v1939, %v2146
      %v2183 = vadd.f32 %v1940, %v2151
      %v2184 = vadd.f32 %v1941, %v2154
      %v2185 = vadd.f32 %v1942, %v2159
      %v2186 = vadd.f32 %v1943, %v2162
      %v2187 = vadd.f32 %v1944, %v2167
      %v2188 = vadd.f32 %v1945, %v2170
      %s2189 = scalar_lea.vmem [#allocation3], 88
      %v2190 = vld [vmem:[%s2189] sm:$0xf]
      %v2191 = vld [vmem:[%s2189 + $0x4] sm:$0xf]
      %v2192 = vld [vmem:[%s2189 + $0x8] sm:$0xf]
      %v2193 = vld [vmem:[%s2189 + $0xc] sm:$0xf]
      %v2194 = vld [vmem:[%s2189 + $0x10] sm:$0xf]
      %v2195 = vld [vmem:[%s2189 + $0x14] sm:$0xf]
      %v2196 = vld [vmem:[%s2189 + $0x18] sm:$0xf]
      %v2197 = vld [vmem:[%s2189 + $0x1c] sm:$0xf]
      %v2198 = vld [vmem:[%s2189 + $0x20] sm:$0xf]
      %v2199 = vld [vmem:[%s2189 + $0x24] sm:$0xf]
      %v2200 = vld [vmem:[%s2189 + $0x28] sm:$0xf]
      %v2201 = vld [vmem:[%s2189 + $0x2c] sm:$0xf]
      %v2202 = vld [vmem:[%s2189 + $0x30] sm:$0xf]
      %v2203 = vld [vmem:[%s2189 + $0x34] sm:$0xf]
      %v2204 = vld [vmem:[%s2189 + $0x38] sm:$0xf]
      %v2205 = vld [vmem:[%s2189 + $0x3c] sm:$0xf]
      %s2206 = scalar_lea.vmem %s421, 256
      %v2207 = vld [vmem:[%s2206] sm:$0xf]
      %v2208 = vld [vmem:[%s2206 + $0x4] sm:$0xf]
      %v2209 = vld [vmem:[%s2206 + $0x8] sm:$0xf]
      %v2210 = vld [vmem:[%s2206 + $0xc] sm:$0xf]
      %v2211 = vld [vmem:[%s2206 + $0x10] sm:$0xf]
      %v2212 = vld [vmem:[%s2206 + $0x14] sm:$0xf]
      %v2213 = vld [vmem:[%s2206 + $0x18] sm:$0xf]
      %v2214 = vld [vmem:[%s2206 + $0x1c] sm:$0xf]
      %v2215 = vld [vmem:[%s2206 + $0x20] sm:$0xf]
      %v2216 = vld [vmem:[%s2206 + $0x24] sm:$0xf]
      %v2217 = vld [vmem:[%s2206 + $0x28] sm:$0xf]
      %v2218 = vld [vmem:[%s2206 + $0x2c] sm:$0xf]
      %v2219 = vld [vmem:[%s2206 + $0x30] sm:$0xf]
      %v2220 = vld [vmem:[%s2206 + $0x34] sm:$0xf]
      %v2221 = vld [vmem:[%s2206 + $0x38] sm:$0xf]
      %v2222 = vld [vmem:[%s2206 + $0x3c] sm:$0xf]
      %v2239 = vunpack.c.l.b16 %v2190
      %v2240 = vunpack.c.l.b16 %v2191
      %v2241 = vunpack.c.l.b16 %v2192
      %v2242 = vunpack.c.l.b16 %v2193
      %v2243 = vunpack.c.l.b16 %v2194
      %v2244 = vunpack.c.l.b16 %v2195
      %v2245 = vunpack.c.l.b16 %v2196
      %v2246 = vunpack.c.l.b16 %v2197
      %v2247 = vunpack.c.l.b16 %v2198
      %v2248 = vunpack.c.l.b16 %v2199
      %v2249 = vunpack.c.l.b16 %v2200
      %v2250 = vunpack.c.l.b16 %v2201
      %v2251 = vunpack.c.l.b16 %v2202
      %v2252 = vunpack.c.l.b16 %v2203
      %v2253 = vunpack.c.l.b16 %v2204
      %v2254 = vunpack.c.l.b16 %v2205
      %v2255 = vpack.c.b16 %v2240, %v2239
      %v2256 = vpack.c.b16 %v2242, %v2241
      %v2257 = vpack.c.b16 %v2244, %v2243
      %v2258 = vpack.c.b16 %v2246, %v2245
      %v2259 = vpack.c.b16 %v2248, %v2247
      %v2260 = vpack.c.b16 %v2250, %v2249
      %v2261 = vpack.c.b16 %v2252, %v2251
      %v2262 = vpack.c.b16 %v2254, %v2253
      %v2287 = vunpack.c.l.b16 %v2207
      %v2288 = vunpack.c.l.b16 %v2208
      %v2289 = vunpack.c.l.b16 %v2209
      %v2290 = vunpack.c.l.b16 %v2210
      %v2291 = vunpack.c.l.b16 %v2211
      %v2292 = vunpack.c.l.b16 %v2212
      %v2293 = vunpack.c.l.b16 %v2213
      %v2294 = vunpack.c.l.b16 %v2214
      %v2295 = vunpack.c.l.b16 %v2215
      %v2296 = vunpack.c.l.b16 %v2216
      %v2297 = vunpack.c.l.b16 %v2217
      %v2298 = vunpack.c.l.b16 %v2218
      %v2299 = vunpack.c.l.b16 %v2219
      %v2300 = vunpack.c.l.b16 %v2220
      %v2301 = vunpack.c.l.b16 %v2221
      %v2302 = vunpack.c.l.b16 %v2222
      %v2303 = vpack.c.b16 %v2288, %v2287
      %v2304 = vpack.c.b16 %v2290, %v2289
      %v2305 = vpack.c.b16 %v2292, %v2291
      %v2306 = vpack.c.b16 %v2294, %v2293
      %v2307 = vpack.c.b16 %v2296, %v2295
      %v2308 = vpack.c.b16 %v2298, %v2297
      %v2309 = vpack.c.b16 %v2300, %v2299
      %v2310 = vpack.c.b16 %v2302, %v2301
      %2319 = vmatprep.subr.bf16.mxu0 0
      %2320 = vmatpush1.bf16.msra.mxu0 %v2310
      %2321 = vmatprep.subr.bf16.mxu0 0
      %2322 = vmatpush1.bf16.msra.mxu0 %v2309
      %2323 = vmatprep.subr.bf16.mxu0 0
      %2324 = vmatpush1.bf16.msra.mxu0 %v2308
      %2325 = vmatprep.subr.bf16.mxu0 0
      %2326 = vmatpush1.bf16.msra.mxu0 %v2307
      %2327 = vmatprep.subr.bf16.mxu0 0
      %2328 = vmatpush1.bf16.msra.mxu0 %v2306
      %2329 = vmatprep.subr.bf16.mxu0 0
      %2330 = vmatpush1.bf16.msra.mxu0 %v2305
      %2331 = vmatprep.subr.bf16.mxu0 0
      %2332 = vmatpush1.bf16.msra.mxu0 %v2304
      %2333 = vmatprep.subr.bf16.mxu0 0
      %2334 = vmatpush1.bf16.msra.mxu0 %v2303
      %2335 = vmatprep.subr.bf16.mxu0 0
      %2336 = vmatpush2.bf16.msra.mxu0 0
      %2337 = vmatprep.subr.bf16.mxu0 0
      %2338 = vmatpush2.bf16.msra.mxu0 0
      %2339 = vmatprep.subr.bf16.mxu0 0
      %2340 = vmatpush2.bf16.msra.mxu0 0
      %2341 = vmatprep.subr.bf16.mxu0 0
      %2342 = vmatpush2.bf16.msra.mxu0 0
      %2343 = vmatprep.subr.bf16.mxu0 0
      %2344 = vmatpush2.bf16.msra.mxu0 0
      %2345 = vmatprep.subr.bf16.mxu0 0
      %2346 = vmatpush2.bf16.msra.mxu0 0
      %2347 = vmatprep.subr.bf16.mxu0 0
      %2348 = vmatpush2.bf16.msra.mxu0 0
      %2349 = vmatprep.subr.bf16.mxu0 0
      %2350 = vmatpush2.bf16.msra.mxu0 0
      %2351 = vmatprep.mubr.bf16.mxu0 0
      %2352 = vmatmul.mubr.bf16.gmra.mxu0 %v2255
      %v2353 = vpop.f32.mrf.mxu0
      %v2354 = vadd.f32 0.0, %v2353
      %v2355 = vpop.f32.mrf.mxu0
      %v2356 = vpop.f32.mrf.mxu0
      %v2357 = vadd.f32 0.0, %v2356
      %v2358 = vpop.f32.mrf.mxu0
      %2359 = vmatprep.mubr.bf16.mxu0 0
      %2360 = vmatmul.mubr.bf16.gmra.mxu0 %v2256
      %v2361 = vpop.f32.mrf.mxu0
      %v2362 = vadd.f32 0.0, %v2361
      %v2363 = vpop.f32.mrf.mxu0
      %v2364 = vpop.f32.mrf.mxu0
      %v2365 = vadd.f32 0.0, %v2364
      %v2366 = vpop.f32.mrf.mxu0
      %2367 = vmatprep.mubr.bf16.mxu0 0
      %2368 = vmatmul.mubr.bf16.gmra.mxu0 %v2257
      %v2369 = vpop.f32.mrf.mxu0
      %v2370 = vadd.f32 0.0, %v2369
      %v2371 = vpop.f32.mrf.mxu0
      %v2372 = vpop.f32.mrf.mxu0
      %v2373 = vadd.f32 0.0, %v2372
      %v2374 = vpop.f32.mrf.mxu0
      %2375 = vmatprep.mubr.bf16.mxu0 0
      %2376 = vmatmul.mubr.bf16.gmra.mxu0 %v2258
      %v2377 = vpop.f32.mrf.mxu0
      %v2378 = vadd.f32 0.0, %v2377
      %v2379 = vpop.f32.mrf.mxu0
      %v2380 = vpop.f32.mrf.mxu0
      %v2381 = vadd.f32 0.0, %v2380
      %v2382 = vpop.f32.mrf.mxu0
      %2383 = vmatprep.mubr.bf16.mxu0 0
      %2384 = vmatmul.mubr.bf16.gmra.mxu0 %v2259
      %v2385 = vpop.f32.mrf.mxu0
      %v2386 = vadd.f32 0.0, %v2385
      %v2387 = vpop.f32.mrf.mxu0
      %v2388 = vpop.f32.mrf.mxu0
      %v2389 = vadd.f32 0.0, %v2388
      %v2390 = vpop.f32.mrf.mxu0
      %2391 = vmatprep.mubr.bf16.mxu0 0
      %2392 = vmatmul.mubr.bf16.gmra.mxu0 %v2260
      %v2393 = vpop.f32.mrf.mxu0
      %v2394 = vadd.f32 0.0, %v2393
      %v2395 = vpop.f32.mrf.mxu0
      %v2396 = vpop.f32.mrf.mxu0
      %v2397 = vadd.f32 0.0, %v2396
      %v2398 = vpop.f32.mrf.mxu0
      %2399 = vmatprep.mubr.bf16.mxu0 0
      %2400 = vmatmul.mubr.bf16.gmra.mxu0 %v2261
      %v2401 = vpop.f32.mrf.mxu0
      %v2402 = vadd.f32 0.0, %v2401
      %v2403 = vpop.f32.mrf.mxu0
      %v2404 = vpop.f32.mrf.mxu0
      %v2405 = vadd.f32 0.0, %v2404
      %v2406 = vpop.f32.mrf.mxu0
      %2407 = vmatprep.mubr.bf16.mxu0 0
      %2408 = vmatmul.mubr.bf16.gmra.mxu0 %v2262
      %v2409 = vpop.f32.mrf.mxu0
      %v2410 = vadd.f32 0.0, %v2409
      %v2411 = vpop.f32.mrf.mxu0
      %v2412 = vpop.f32.mrf.mxu0
      %v2413 = vadd.f32 0.0, %v2412
      %v2414 = vpop.f32.mrf.mxu0
      %2415 = vdwg.mxu0
      %v2416 = vadd.f32 %v2173, %v2354
      %v2417 = vadd.f32 %v2174, %v2357
      %v2418 = vadd.f32 %v2175, %v2362
      %v2419 = vadd.f32 %v2176, %v2365
      %v2420 = vadd.f32 %v2177, %v2370
      %v2421 = vadd.f32 %v2178, %v2373
      %v2422 = vadd.f32 %v2179, %v2378
      %v2423 = vadd.f32 %v2180, %v2381
      %v2424 = vadd.f32 %v2181, %v2386
      %v2425 = vadd.f32 %v2182, %v2389
      %v2426 = vadd.f32 %v2183, %v2394
      %v2427 = vadd.f32 %v2184, %v2397
      %v2428 = vadd.f32 %v2185, %v2402
      %v2429 = vadd.f32 %v2186, %v2405
      %v2430 = vadd.f32 %v2187, %v2410
      %v2431 = vadd.f32 %v2188, %v2413
      %s2432 = scalar_lea.vmem [#allocation3], 168
      %v2433 = vld [vmem:[%s2432] sm:$0xf]
      %v2434 = vld [vmem:[%s2432 + $0x4] sm:$0xf]
      %v2435 = vld [vmem:[%s2432 + $0x8] sm:$0xf]
      %v2436 = vld [vmem:[%s2432 + $0xc] sm:$0xf]
      %v2437 = vld [vmem:[%s2432 + $0x10] sm:$0xf]
      %v2438 = vld [vmem:[%s2432 + $0x14] sm:$0xf]
      %v2439 = vld [vmem:[%s2432 + $0x18] sm:$0xf]
      %v2440 = vld [vmem:[%s2432 + $0x1c] sm:$0xf]
      %v2441 = vld [vmem:[%s2432 + $0x20] sm:$0xf]
      %v2442 = vld [vmem:[%s2432 + $0x24] sm:$0xf]
      %v2443 = vld [vmem:[%s2432 + $0x28] sm:$0xf]
      %v2444 = vld [vmem:[%s2432 + $0x2c] sm:$0xf]
      %v2445 = vld [vmem:[%s2432 + $0x30] sm:$0xf]
      %v2446 = vld [vmem:[%s2432 + $0x34] sm:$0xf]
      %v2447 = vld [vmem:[%s2432 + $0x38] sm:$0xf]
      %v2448 = vld [vmem:[%s2432 + $0x3c] sm:$0xf]
      %s2449 = scalar_lea.vmem %s421, 320
      %v2450 = vld [vmem:[%s2449] sm:$0xf]
      %v2451 = vld [vmem:[%s2449 + $0x4] sm:$0xf]
      %v2452 = vld [vmem:[%s2449 + $0x8] sm:$0xf]
      %v2453 = vld [vmem:[%s2449 + $0xc] sm:$0xf]
      %v2454 = vld [vmem:[%s2449 + $0x10] sm:$0xf]
      %v2455 = vld [vmem:[%s2449 + $0x14] sm:$0xf]
      %v2456 = vld [vmem:[%s2449 + $0x18] sm:$0xf]
      %v2457 = vld [vmem:[%s2449 + $0x1c] sm:$0xf]
      %v2458 = vld [vmem:[%s2449 + $0x20] sm:$0xf]
      %v2459 = vld [vmem:[%s2449 + $0x24] sm:$0xf]
      %v2460 = vld [vmem:[%s2449 + $0x28] sm:$0xf]
      %v2461 = vld [vmem:[%s2449 + $0x2c] sm:$0xf]
      %v2462 = vld [vmem:[%s2449 + $0x30] sm:$0xf]
      %v2463 = vld [vmem:[%s2449 + $0x34] sm:$0xf]
      %v2464 = vld [vmem:[%s2449 + $0x38] sm:$0xf]
      %v2465 = vld [vmem:[%s2449 + $0x3c] sm:$0xf]
      %v2482 = vunpack.c.l.b16 %v2433
      %v2483 = vunpack.c.l.b16 %v2434
      %v2484 = vunpack.c.l.b16 %v2435
      %v2485 = vunpack.c.l.b16 %v2436
      %v2486 = vunpack.c.l.b16 %v2437
      %v2487 = vunpack.c.l.b16 %v2438
      %v2488 = vunpack.c.l.b16 %v2439
      %v2489 = vunpack.c.l.b16 %v2440
      %v2490 = vunpack.c.l.b16 %v2441
      %v2491 = vunpack.c.l.b16 %v2442
      %v2492 = vunpack.c.l.b16 %v2443
      %v2493 = vunpack.c.l.b16 %v2444
      %v2494 = vunpack.c.l.b16 %v2445
      %v2495 = vunpack.c.l.b16 %v2446
      %v2496 = vunpack.c.l.b16 %v2447
      %v2497 = vunpack.c.l.b16 %v2448
      %v2498 = vpack.c.b16 %v2483, %v2482
      %v2499 = vpack.c.b16 %v2485, %v2484
      %v2500 = vpack.c.b16 %v2487, %v2486
      %v2501 = vpack.c.b16 %v2489, %v2488
      %v2502 = vpack.c.b16 %v2491, %v2490
      %v2503 = vpack.c.b16 %v2493, %v2492
      %v2504 = vpack.c.b16 %v2495, %v2494
      %v2505 = vpack.c.b16 %v2497, %v2496
      %v2530 = vunpack.c.l.b16 %v2450
      %v2531 = vunpack.c.l.b16 %v2451
      %v2532 = vunpack.c.l.b16 %v2452
      %v2533 = vunpack.c.l.b16 %v2453
      %v2534 = vunpack.c.l.b16 %v2454
      %v2535 = vunpack.c.l.b16 %v2455
      %v2536 = vunpack.c.l.b16 %v2456
      %v2537 = vunpack.c.l.b16 %v2457
      %v2538 = vunpack.c.l.b16 %v2458
      %v2539 = vunpack.c.l.b16 %v2459
      %v2540 = vunpack.c.l.b16 %v2460
      %v2541 = vunpack.c.l.b16 %v2461
      %v2542 = vunpack.c.l.b16 %v2462
      %v2543 = vunpack.c.l.b16 %v2463
      %v2544 = vunpack.c.l.b16 %v2464
      %v2545 = vunpack.c.l.b16 %v2465
      %v2546 = vpack.c.b16 %v2531, %v2530
      %v2547 = vpack.c.b16 %v2533, %v2532
      %v2548 = vpack.c.b16 %v2535, %v2534
      %v2549 = vpack.c.b16 %v2537, %v2536
      %v2550 = vpack.c.b16 %v2539, %v2538
      %v2551 = vpack.c.b16 %v2541, %v2540
      %v2552 = vpack.c.b16 %v2543, %v2542
      %v2553 = vpack.c.b16 %v2545, %v2544
      %2562 = vmatprep.subr.bf16.mxu0 0
      %2563 = vmatpush1.bf16.msra.mxu0 %v2553
      %2564 = vmatprep.subr.bf16.mxu0 0
      %2565 = vmatpush1.bf16.msra.mxu0 %v2552
      %2566 = vmatprep.subr.bf16.mxu0 0
      %2567 = vmatpush1.bf16.msra.mxu0 %v2551
      %2568 = vmatprep.subr.bf16.mxu0 0
      %2569 = vmatpush1.bf16.msra.mxu0 %v2550
      %2570 = vmatprep.subr.bf16.mxu0 0
      %2571 = vmatpush1.bf16.msra.mxu0 %v2549
      %2572 = vmatprep.subr.bf16.mxu0 0
      %2573 = vmatpush1.bf16.msra.mxu0 %v2548
      %2574 = vmatprep.subr.bf16.mxu0 0
      %2575 = vmatpush1.bf16.msra.mxu0 %v2547
      %2576 = vmatprep.subr.bf16.mxu0 0
      %2577 = vmatpush1.bf16.msra.mxu0 %v2546
      %2578 = vmatprep.subr.bf16.mxu0 0
      %2579 = vmatpush2.bf16.msra.mxu0 0
      %2580 = vmatprep.subr.bf16.mxu0 0
      %2581 = vmatpush2.bf16.msra.mxu0 0
      %2582 = vmatprep.subr.bf16.mxu0 0
      %2583 = vmatpush2.bf16.msra.mxu0 0
      %2584 = vmatprep.subr.bf16.mxu0 0
      %2585 = vmatpush2.bf16.msra.mxu0 0
      %2586 = vmatprep.subr.bf16.mxu0 0
      %2587 = vmatpush2.bf16.msra.mxu0 0
      %2588 = vmatprep.subr.bf16.mxu0 0
      %2589 = vmatpush2.bf16.msra.mxu0 0
      %2590 = vmatprep.subr.bf16.mxu0 0
      %2591 = vmatpush2.bf16.msra.mxu0 0
      %2592 = vmatprep.subr.bf16.mxu0 0
      %2593 = vmatpush2.bf16.msra.mxu0 0
      %2594 = vmatprep.mubr.bf16.mxu0 0
      %2595 = vmatmul.mubr.bf16.gmra.mxu0 %v2498
      %v2596 = vpop.f32.mrf.mxu0
      %v2597 = vadd.f32 0.0, %v2596
      %v2598 = vpop.f32.mrf.mxu0
      %v2599 = vpop.f32.mrf.mxu0
      %v2600 = vadd.f32 0.0, %v2599
      %v2601 = vpop.f32.mrf.mxu0
      %2602 = vmatprep.mubr.bf16.mxu0 0
      %2603 = vmatmul.mubr.bf16.gmra.mxu0 %v2499
      %v2604 = vpop.f32.mrf.mxu0
      %v2605 = vadd.f32 0.0, %v2604
      %v2606 = vpop.f32.mrf.mxu0
      %v2607 = vpop.f32.mrf.mxu0
      %v2608 = vadd.f32 0.0, %v2607
      %v2609 = vpop.f32.mrf.mxu0
      %2610 = vmatprep.mubr.bf16.mxu0 0
      %2611 = vmatmul.mubr.bf16.gmra.mxu0 %v2500
      %v2612 = vpop.f32.mrf.mxu0
      %v2613 = vadd.f32 0.0, %v2612
      %v2614 = vpop.f32.mrf.mxu0
      %v2615 = vpop.f32.mrf.mxu0
      %v2616 = vadd.f32 0.0, %v2615
      %v2617 = vpop.f32.mrf.mxu0
      %2618 = vmatprep.mubr.bf16.mxu0 0
      %2619 = vmatmul.mubr.bf16.gmra.mxu0 %v2501
      %v2620 = vpop.f32.mrf.mxu0
      %v2621 = vadd.f32 0.0, %v2620
      %v2622 = vpop.f32.mrf.mxu0
      %v2623 = vpop.f32.mrf.mxu0
      %v2624 = vadd.f32 0.0, %v2623
      %v2625 = vpop.f32.mrf.mxu0
      %2626 = vmatprep.mubr.bf16.mxu0 0
      %2627 = vmatmul.mubr.bf16.gmra.mxu0 %v2502
      %v2628 = vpop.f32.mrf.mxu0
      %v2629 = vadd.f32 0.0, %v2628
      %v2630 = vpop.f32.mrf.mxu0
      %v2631 = vpop.f32.mrf.mxu0
      %v2632 = vadd.f32 0.0, %v2631
      %v2633 = vpop.f32.mrf.mxu0
      %2634 = vmatprep.mubr.bf16.mxu0 0
      %2635 = vmatmul.mubr.bf16.gmra.mxu0 %v2503
      %v2636 = vpop.f32.mrf.mxu0
      %v2637 = vadd.f32 0.0, %v2636
      %v2638 = vpop.f32.mrf.mxu0
      %v2639 = vpop.f32.mrf.mxu0
      %v2640 = vadd.f32 0.0, %v2639
      %v2641 = vpop.f32.mrf.mxu0
      %2642 = vmatprep.mubr.bf16.mxu0 0
      %2643 = vmatmul.mubr.bf16.gmra.mxu0 %v2504
      %v2644 = vpop.f32.mrf.mxu0
      %v2645 = vadd.f32 0.0, %v2644
      %v2646 = vpop.f32.mrf.mxu0
      %v2647 = vpop.f32.mrf.mxu0
      %v2648 = vadd.f32 0.0, %v2647
      %v2649 = vpop.f32.mrf.mxu0
      %2650 = vmatprep.mubr.bf16.mxu0 0
      %2651 = vmatmul.mubr.bf16.gmra.mxu0 %v2505
      %v2652 = vpop.f32.mrf.mxu0
      %v2653 = vadd.f32 0.0, %v2652
      %v2654 = vpop.f32.mrf.mxu0
      %v2655 = vpop.f32.mrf.mxu0
      %v2656 = vadd.f32 0.0, %v2655
      %v2657 = vpop.f32.mrf.mxu0
      %2658 = vdwg.mxu0
      %v2659 = vadd.f32 %v2416, %v2597
      %v2660 = vadd.f32 %v2417, %v2600
      %v2661 = vadd.f32 %v2418, %v2605
      %v2662 = vadd.f32 %v2419, %v2608
      %v2663 = vadd.f32 %v2420, %v2613
      %v2664 = vadd.f32 %v2421, %v2616
      %v2665 = vadd.f32 %v2422, %v2621
      %v2666 = vadd.f32 %v2423, %v2624
      %v2667 = vadd.f32 %v2424, %v2629
      %v2668 = vadd.f32 %v2425, %v2632
      %v2669 = vadd.f32 %v2426, %v2637
      %v2670 = vadd.f32 %v2427, %v2640
      %v2671 = vadd.f32 %v2428, %v2645
      %v2672 = vadd.f32 %v2429, %v2648
      %v2673 = vadd.f32 %v2430, %v2653
      %v2674 = vadd.f32 %v2431, %v2656
      %s2675 = scalar_lea.vmem [#allocation3], 16
      %v2676 = vld [vmem:[%s2675] sm:$0xf]
      %v2677 = vld [vmem:[%s2675 + $0x4] sm:$0xf]
      %v2678 = vld [vmem:[%s2675 + $0x8] sm:$0xf]
      %v2679 = vld [vmem:[%s2675 + $0xc] sm:$0xf]
      %v2680 = vld [vmem:[%s2675 + $0x10] sm:$0xf]
      %v2681 = vld [vmem:[%s2675 + $0x14] sm:$0xf]
      %v2682 = vld [vmem:[%s2675 + $0x18] sm:$0xf]
      %v2683 = vld [vmem:[%s2675 + $0x1c] sm:$0xf]
      %v2684 = vld [vmem:[%s2675 + $0x20] sm:$0xf]
      %v2685 = vld [vmem:[%s2675 + $0x24] sm:$0xf]
      %v2686 = vld [vmem:[%s2675 + $0x28] sm:$0xf]
      %v2687 = vld [vmem:[%s2675 + $0x2c] sm:$0xf]
      %v2688 = vld [vmem:[%s2675 + $0x30] sm:$0xf]
      %v2689 = vld [vmem:[%s2675 + $0x34] sm:$0xf]
      %v2690 = vld [vmem:[%s2675 + $0x38] sm:$0xf]
      %v2691 = vld [vmem:[%s2675 + $0x3c] sm:$0xf]
      %s2692 = scalar_lea.vmem %s421, 384
      %v2693 = vld [vmem:[%s2692] sm:$0xf]
      %v2694 = vld [vmem:[%s2692 + $0x4] sm:$0xf]
      %v2695 = vld [vmem:[%s2692 + $0x8] sm:$0xf]
      %v2696 = vld [vmem:[%s2692 + $0xc] sm:$0xf]
      %v2697 = vld [vmem:[%s2692 + $0x10] sm:$0xf]
      %v2698 = vld [vmem:[%s2692 + $0x14] sm:$0xf]
      %v2699 = vld [vmem:[%s2692 + $0x18] sm:$0xf]
      %v2700 = vld [vmem:[%s2692 + $0x1c] sm:$0xf]
      %v2701 = vld [vmem:[%s2692 + $0x20] sm:$0xf]
      %v2702 = vld [vmem:[%s2692 + $0x24] sm:$0xf]
      %v2703 = vld [vmem:[%s2692 + $0x28] sm:$0xf]
      %v2704 = vld [vmem:[%s2692 + $0x2c] sm:$0xf]
      %v2705 = vld [vmem:[%s2692 + $0x30] sm:$0xf]
      %v2706 = vld [vmem:[%s2692 + $0x34] sm:$0xf]
      %v2707 = vld [vmem:[%s2692 + $0x38] sm:$0xf]
      %v2708 = vld [vmem:[%s2692 + $0x3c] sm:$0xf]
      %v2725 = vunpack.c.l.b16 %v2676
      %v2726 = vunpack.c.l.b16 %v2677
      %v2727 = vunpack.c.l.b16 %v2678
      %v2728 = vunpack.c.l.b16 %v2679
      %v2729 = vunpack.c.l.b16 %v2680
      %v2730 = vunpack.c.l.b16 %v2681
      %v2731 = vunpack.c.l.b16 %v2682
      %v2732 = vunpack.c.l.b16 %v2683
      %v2733 = vunpack.c.l.b16 %v2684
      %v2734 = vunpack.c.l.b16 %v2685
      %v2735 = vunpack.c.l.b16 %v2686
      %v2736 = vunpack.c.l.b16 %v2687
      %v2737 = vunpack.c.l.b16 %v2688
      %v2738 = vunpack.c.l.b16 %v2689
      %v2739 = vunpack.c.l.b16 %v2690
      %v2740 = vunpack.c.l.b16 %v2691
      %v2741 = vpack.c.b16 %v2726, %v2725
      %v2742 = vpack.c.b16 %v2728, %v2727
      %v2743 = vpack.c.b16 %v2730, %v2729
      %v2744 = vpack.c.b16 %v2732, %v2731
      %v2745 = vpack.c.b16 %v2734, %v2733
      %v2746 = vpack.c.b16 %v2736, %v2735
      %v2747 = vpack.c.b16 %v2738, %v2737
      %v2748 = vpack.c.b16 %v2740, %v2739
      %v2773 = vunpack.c.l.b16 %v2693
      %v2774 = vunpack.c.l.b16 %v2694
      %v2775 = vunpack.c.l.b16 %v2695
      %v2776 = vunpack.c.l.b16 %v2696
      %v2777 = vunpack.c.l.b16 %v2697
      %v2778 = vunpack.c.l.b16 %v2698
      %v2779 = vunpack.c.l.b16 %v2699
      %v2780 = vunpack.c.l.b16 %v2700
      %v2781 = vunpack.c.l.b16 %v2701
      %v2782 = vunpack.c.l.b16 %v2702
      %v2783 = vunpack.c.l.b16 %v2703
      %v2784 = vunpack.c.l.b16 %v2704
      %v2785 = vunpack.c.l.b16 %v2705
      %v2786 = vunpack.c.l.b16 %v2706
      %v2787 = vunpack.c.l.b16 %v2707
      %v2788 = vunpack.c.l.b16 %v2708
      %v2789 = vpack.c.b16 %v2774, %v2773
      %v2790 = vpack.c.b16 %v2776, %v2775
      %v2791 = vpack.c.b16 %v2778, %v2777
      %v2792 = vpack.c.b16 %v2780, %v2779
      %v2793 = vpack.c.b16 %v2782, %v2781
      %v2794 = vpack.c.b16 %v2784, %v2783
      %v2795 = vpack.c.b16 %v2786, %v2785
      %v2796 = vpack.c.b16 %v2788, %v2787
      %2805 = vmatprep.subr.bf16.mxu0 0
      %2806 = vmatpush1.bf16.msra.mxu0 %v2796
      %2807 = vmatprep.subr.bf16.mxu0 0
      %2808 = vmatpush1.bf16.msra.mxu0 %v2795
      %2809 = vmatprep.subr.bf16.mxu0 0
      %2810 = vmatpush1.bf16.msra.mxu0 %v2794
      %2811 = vmatprep.subr.bf16.mxu0 0
      %2812 = vmatpush1.bf16.msra.mxu0 %v2793
      %2813 = vmatprep.subr.bf16.mxu0 0
      %2814 = vmatpush1.bf16.msra.mxu0 %v2792
      %2815 = vmatprep.subr.bf16.mxu0 0
      %2816 = vmatpush1.bf16.msra.mxu0 %v2791
      %2817 = vmatprep.subr.bf16.mxu0 0
      %2818 = vmatpush1.bf16.msra.mxu0 %v2790
      %2819 = vmatprep.subr.bf16.mxu0 0
      %2820 = vmatpush1.bf16.msra.mxu0 %v2789
      %2821 = vmatprep.subr.bf16.mxu0 0
      %2822 = vmatpush2.bf16.msra.mxu0 0
      %2823 = vmatprep.subr.bf16.mxu0 0
      %2824 = vmatpush2.bf16.msra.mxu0 0
      %2825 = vmatprep.subr.bf16.mxu0 0
      %2826 = vmatpush2.bf16.msra.mxu0 0
      %2827 = vmatprep.subr.bf16.mxu0 0
      %2828 = vmatpush2.bf16.msra.mxu0 0
      %2829 = vmatprep.subr.bf16.mxu0 0
      %2830 = vmatpush2.bf16.msra.mxu0 0
      %2831 = vmatprep.subr.bf16.mxu0 0
      %2832 = vmatpush2.bf16.msra.mxu0 0
      %2833 = vmatprep.subr.bf16.mxu0 0
      %2834 = vmatpush2.bf16.msra.mxu0 0
      %2835 = vmatprep.subr.bf16.mxu0 0
      %2836 = vmatpush2.bf16.msra.mxu0 0
      %2837 = vmatprep.mubr.bf16.mxu0 0
      %2838 = vmatmul.mubr.bf16.gmra.mxu0 %v2741
      %v2839 = vpop.f32.mrf.mxu0
      %v2840 = vadd.f32 0.0, %v2839
      %v2841 = vpop.f32.mrf.mxu0
      %v2842 = vpop.f32.mrf.mxu0
      %v2843 = vadd.f32 0.0, %v2842
      %v2844 = vpop.f32.mrf.mxu0
      %2845 = vmatprep.mubr.bf16.mxu0 0
      %2846 = vmatmul.mubr.bf16.gmra.mxu0 %v2742
      %v2847 = vpop.f32.mrf.mxu0
      %v2848 = vadd.f32 0.0, %v2847
      %v2849 = vpop.f32.mrf.mxu0
      %v2850 = vpop.f32.mrf.mxu0
      %v2851 = vadd.f32 0.0, %v2850
      %v2852 = vpop.f32.mrf.mxu0
      %2853 = vmatprep.mubr.bf16.mxu0 0
      %2854 = vmatmul.mubr.bf16.gmra.mxu0 %v2743
      %v2855 = vpop.f32.mrf.mxu0
      %v2856 = vadd.f32 0.0, %v2855
      %v2857 = vpop.f32.mrf.mxu0
      %v2858 = vpop.f32.mrf.mxu0
      %v2859 = vadd.f32 0.0, %v2858
      %v2860 = vpop.f32.mrf.mxu0
      %2861 = vmatprep.mubr.bf16.mxu0 0
      %2862 = vmatmul.mubr.bf16.gmra.mxu0 %v2744
      %v2863 = vpop.f32.mrf.mxu0
      %v2864 = vadd.f32 0.0, %v2863
      %v2865 = vpop.f32.mrf.mxu0
      %v2866 = vpop.f32.mrf.mxu0
      %v2867 = vadd.f32 0.0, %v2866
      %v2868 = vpop.f32.mrf.mxu0
      %2869 = vmatprep.mubr.bf16.mxu0 0
      %2870 = vmatmul.mubr.bf16.gmra.mxu0 %v2745
      %v2871 = vpop.f32.mrf.mxu0
      %v2872 = vadd.f32 0.0, %v2871
      %v2873 = vpop.f32.mrf.mxu0
      %v2874 = vpop.f32.mrf.mxu0
      %v2875 = vadd.f32 0.0, %v2874
      %v2876 = vpop.f32.mrf.mxu0
      %2877 = vmatprep.mubr.bf16.mxu0 0
      %2878 = vmatmul.mubr.bf16.gmra.mxu0 %v2746
      %v2879 = vpop.f32.mrf.mxu0
      %v2880 = vadd.f32 0.0, %v2879
      %v2881 = vpop.f32.mrf.mxu0
      %v2882 = vpop.f32.mrf.mxu0
      %v2883 = vadd.f32 0.0, %v2882
      %v2884 = vpop.f32.mrf.mxu0
      %2885 = vmatprep.mubr.bf16.mxu0 0
      %2886 = vmatmul.mubr.bf16.gmra.mxu0 %v2747
      %v2887 = vpop.f32.mrf.mxu0
      %v2888 = vadd.f32 0.0, %v2887
      %v2889 = vpop.f32.mrf.mxu0
      %v2890 = vpop.f32.mrf.mxu0
      %v2891 = vadd.f32 0.0, %v2890
      %v2892 = vpop.f32.mrf.mxu0
      %2893 = vmatprep.mubr.bf16.mxu0 0
      %2894 = vmatmul.mubr.bf16.gmra.mxu0 %v2748
      %v2895 = vpop.f32.mrf.mxu0
      %v2896 = vadd.f32 0.0, %v2895
      %v2897 = vpop.f32.mrf.mxu0
      %v2898 = vpop.f32.mrf.mxu0
      %v2899 = vadd.f32 0.0, %v2898
      %v2900 = vpop.f32.mrf.mxu0
      %2901 = vdwg.mxu0
      %v2902 = vadd.f32 %v2659, %v2840
      %v2903 = vadd.f32 %v2660, %v2843
      %v2904 = vadd.f32 %v2661, %v2848
      %v2905 = vadd.f32 %v2662, %v2851
      %v2906 = vadd.f32 %v2663, %v2856
      %v2907 = vadd.f32 %v2664, %v2859
      %v2908 = vadd.f32 %v2665, %v2864
      %v2909 = vadd.f32 %v2666, %v2867
      %v2910 = vadd.f32 %v2667, %v2872
      %v2911 = vadd.f32 %v2668, %v2875
      %v2912 = vadd.f32 %v2669, %v2880
      %v2913 = vadd.f32 %v2670, %v2883
      %v2914 = vadd.f32 %v2671, %v2888
      %v2915 = vadd.f32 %v2672, %v2891
      %v2916 = vadd.f32 %v2673, %v2896
      %v2917 = vadd.f32 %v2674, %v2899
      %s2918 = scalar_lea.vmem [#allocation3], 96
      %v2919 = vld [vmem:[%s2918] sm:$0xf]
      %v2920 = vld [vmem:[%s2918 + $0x4] sm:$0xf]
      %v2921 = vld [vmem:[%s2918 + $0x8] sm:$0xf]
      %v2922 = vld [vmem:[%s2918 + $0xc] sm:$0xf]
      %v2923 = vld [vmem:[%s2918 + $0x10] sm:$0xf]
      %v2924 = vld [vmem:[%s2918 + $0x14] sm:$0xf]
      %v2925 = vld [vmem:[%s2918 + $0x18] sm:$0xf]
      %v2926 = vld [vmem:[%s2918 + $0x1c] sm:$0xf]
      %v2927 = vld [vmem:[%s2918 + $0x20] sm:$0xf]
      %v2928 = vld [vmem:[%s2918 + $0x24] sm:$0xf]
      %v2929 = vld [vmem:[%s2918 + $0x28] sm:$0xf]
      %v2930 = vld [vmem:[%s2918 + $0x2c] sm:$0xf]
      %v2931 = vld [vmem:[%s2918 + $0x30] sm:$0xf]
      %v2932 = vld [vmem:[%s2918 + $0x34] sm:$0xf]
      %v2933 = vld [vmem:[%s2918 + $0x38] sm:$0xf]
      %v2934 = vld [vmem:[%s2918 + $0x3c] sm:$0xf]
      %s2935 = scalar_lea.vmem %s421, 448
      %v2936 = vld [vmem:[%s2935] sm:$0xf]
      %v2937 = vld [vmem:[%s2935 + $0x4] sm:$0xf]
      %v2938 = vld [vmem:[%s2935 + $0x8] sm:$0xf]
      %v2939 = vld [vmem:[%s2935 + $0xc] sm:$0xf]
      %v2940 = vld [vmem:[%s2935 + $0x10] sm:$0xf]
      %v2941 = vld [vmem:[%s2935 + $0x14] sm:$0xf]
      %v2942 = vld [vmem:[%s2935 + $0x18] sm:$0xf]
      %v2943 = vld [vmem:[%s2935 + $0x1c] sm:$0xf]
      %v2944 = vld [vmem:[%s2935 + $0x20] sm:$0xf]
      %v2945 = vld [vmem:[%s2935 + $0x24] sm:$0xf]
      %v2946 = vld [vmem:[%s2935 + $0x28] sm:$0xf]
      %v2947 = vld [vmem:[%s2935 + $0x2c] sm:$0xf]
      %v2948 = vld [vmem:[%s2935 + $0x30] sm:$0xf]
      %v2949 = vld [vmem:[%s2935 + $0x34] sm:$0xf]
      %v2950 = vld [vmem:[%s2935 + $0x38] sm:$0xf]
      %v2951 = vld [vmem:[%s2935 + $0x3c] sm:$0xf]
      %v2968 = vunpack.c.l.b16 %v2919
      %v2969 = vunpack.c.l.b16 %v2920
      %v2970 = vunpack.c.l.b16 %v2921
      %v2971 = vunpack.c.l.b16 %v2922
      %v2972 = vunpack.c.l.b16 %v2923
      %v2973 = vunpack.c.l.b16 %v2924
      %v2974 = vunpack.c.l.b16 %v2925
      %v2975 = vunpack.c.l.b16 %v2926
      %v2976 = vunpack.c.l.b16 %v2927
      %v2977 = vunpack.c.l.b16 %v2928
      %v2978 = vunpack.c.l.b16 %v2929
      %v2979 = vunpack.c.l.b16 %v2930
      %v2980 = vunpack.c.l.b16 %v2931
      %v2981 = vunpack.c.l.b16 %v2932
      %v2982 = vunpack.c.l.b16 %v2933
      %v2983 = vunpack.c.l.b16 %v2934
      %v2984 = vpack.c.b16 %v2969, %v2968
      %v2985 = vpack.c.b16 %v2971, %v2970
      %v2986 = vpack.c.b16 %v2973, %v2972
      %v2987 = vpack.c.b16 %v2975, %v2974
      %v2988 = vpack.c.b16 %v2977, %v2976
      %v2989 = vpack.c.b16 %v2979, %v2978
      %v2990 = vpack.c.b16 %v2981, %v2980
      %v2991 = vpack.c.b16 %v2983, %v2982
      %v3016 = vunpack.c.l.b16 %v2936
      %v3017 = vunpack.c.l.b16 %v2937
      %v3018 = vunpack.c.l.b16 %v2938
      %v3019 = vunpack.c.l.b16 %v2939
      %v3020 = vunpack.c.l.b16 %v2940
      %v3021 = vunpack.c.l.b16 %v2941
      %v3022 = vunpack.c.l.b16 %v2942
      %v3023 = vunpack.c.l.b16 %v2943
      %v3024 = vunpack.c.l.b16 %v2944
      %v3025 = vunpack.c.l.b16 %v2945
      %v3026 = vunpack.c.l.b16 %v2946
      %v3027 = vunpack.c.l.b16 %v2947
      %v3028 = vunpack.c.l.b16 %v2948
      %v3029 = vunpack.c.l.b16 %v2949
      %v3030 = vunpack.c.l.b16 %v2950
      %v3031 = vunpack.c.l.b16 %v2951
      %v3032 = vpack.c.b16 %v3017, %v3016
      %v3033 = vpack.c.b16 %v3019, %v3018
      %v3034 = vpack.c.b16 %v3021, %v3020
      %v3035 = vpack.c.b16 %v3023, %v3022
      %v3036 = vpack.c.b16 %v3025, %v3024
      %v3037 = vpack.c.b16 %v3027, %v3026
      %v3038 = vpack.c.b16 %v3029, %v3028
      %v3039 = vpack.c.b16 %v3031, %v3030
      %3048 = vmatprep.subr.bf16.mxu0 0
      %3049 = vmatpush1.bf16.msra.mxu0 %v3039
      %3050 = vmatprep.subr.bf16.mxu0 0
      %3051 = vmatpush1.bf16.msra.mxu0 %v3038
      %3052 = vmatprep.subr.bf16.mxu0 0
      %3053 = vmatpush1.bf16.msra.mxu0 %v3037
      %3054 = vmatprep.subr.bf16.mxu0 0
      %3055 = vmatpush1.bf16.msra.mxu0 %v3036
      %3056 = vmatprep.subr.bf16.mxu0 0
      %3057 = vmatpush1.bf16.msra.mxu0 %v3035
      %3058 = vmatprep.subr.bf16.mxu0 0
      %3059 = vmatpush1.bf16.msra.mxu0 %v3034
      %3060 = vmatprep.subr.bf16.mxu0 0
      %3061 = vmatpush1.bf16.msra.mxu0 %v3033
      %3062 = vmatprep.subr.bf16.mxu0 0
      %3063 = vmatpush1.bf16.msra.mxu0 %v3032
      %3064 = vmatprep.subr.bf16.mxu0 0
      %3065 = vmatpush2.bf16.msra.mxu0 0
      %3066 = vmatprep.subr.bf16.mxu0 0
      %3067 = vmatpush2.bf16.msra.mxu0 0
      %3068 = vmatprep.subr.bf16.mxu0 0
      %3069 = vmatpush2.bf16.msra.mxu0 0
      %3070 = vmatprep.subr.bf16.mxu0 0
      %3071 = vmatpush2.bf16.msra.mxu0 0
      %3072 = vmatprep.subr.bf16.mxu0 0
      %3073 = vmatpush2.bf16.msra.mxu0 0
      %3074 = vmatprep.subr.bf16.mxu0 0
      %3075 = vmatpush2.bf16.msra.mxu0 0
      %3076 = vmatprep.subr.bf16.mxu0 0
      %3077 = vmatpush2.bf16.msra.mxu0 0
      %3078 = vmatprep.subr.bf16.mxu0 0
      %3079 = vmatpush2.bf16.msra.mxu0 0
      %3080 = vmatprep.mubr.bf16.mxu0 0
      %3081 = vmatmul.mubr.bf16.gmra.mxu0 %v2984
      %v3082 = vpop.f32.mrf.mxu0
      %v3083 = vadd.f32 0.0, %v3082
      %v3084 = vpop.f32.mrf.mxu0
      %v3085 = vpop.f32.mrf.mxu0
      %v3086 = vadd.f32 0.0, %v3085
      %v3087 = vpop.f32.mrf.mxu0
      %3088 = vmatprep.mubr.bf16.mxu0 0
      %3089 = vmatmul.mubr.bf16.gmra.mxu0 %v2985
      %v3090 = vpop.f32.mrf.mxu0
      %v3091 = vadd.f32 0.0, %v3090
      %v3092 = vpop.f32.mrf.mxu0
      %v3093 = vpop.f32.mrf.mxu0
      %v3094 = vadd.f32 0.0, %v3093
      %v3095 = vpop.f32.mrf.mxu0
      %3096 = vmatprep.mubr.bf16.mxu0 0
      %3097 = vmatmul.mubr.bf16.gmra.mxu0 %v2986
      %v3098 = vpop.f32.mrf.mxu0
      %v3099 = vadd.f32 0.0, %v3098
      %v3100 = vpop.f32.mrf.mxu0
      %v3101 = vpop.f32.mrf.mxu0
      %v3102 = vadd.f32 0.0, %v3101
      %v3103 = vpop.f32.mrf.mxu0
      %3104 = vmatprep.mubr.bf16.mxu0 0
      %3105 = vmatmul.mubr.bf16.gmra.mxu0 %v2987
      %v3106 = vpop.f32.mrf.mxu0
      %v3107 = vadd.f32 0.0, %v3106
      %v3108 = vpop.f32.mrf.mxu0
      %v3109 = vpop.f32.mrf.mxu0
      %v3110 = vadd.f32 0.0, %v3109
      %v3111 = vpop.f32.mrf.mxu0
      %3112 = vmatprep.mubr.bf16.mxu0 0
      %3113 = vmatmul.mubr.bf16.gmra.mxu0 %v2988
      %v3114 = vpop.f32.mrf.mxu0
      %v3115 = vadd.f32 0.0, %v3114
      %v3116 = vpop.f32.mrf.mxu0
      %v3117 = vpop.f32.mrf.mxu0
      %v3118 = vadd.f32 0.0, %v3117
      %v3119 = vpop.f32.mrf.mxu0
      %3120 = vmatprep.mubr.bf16.mxu0 0
      %3121 = vmatmul.mubr.bf16.gmra.mxu0 %v2989
      %v3122 = vpop.f32.mrf.mxu0
      %v3123 = vadd.f32 0.0, %v3122
      %v3124 = vpop.f32.mrf.mxu0
      %v3125 = vpop.f32.mrf.mxu0
      %v3126 = vadd.f32 0.0, %v3125
      %v3127 = vpop.f32.mrf.mxu0
      %3128 = vmatprep.mubr.bf16.mxu0 0
      %3129 = vmatmul.mubr.bf16.gmra.mxu0 %v2990
      %v3130 = vpop.f32.mrf.mxu0
      %v3131 = vadd.f32 0.0, %v3130
      %v3132 = vpop.f32.mrf.mxu0
      %v3133 = vpop.f32.mrf.mxu0
      %v3134 = vadd.f32 0.0, %v3133
      %v3135 = vpop.f32.mrf.mxu0
      %3136 = vmatprep.mubr.bf16.mxu0 0
      %3137 = vmatmul.mubr.bf16.gmra.mxu0 %v2991
      %v3138 = vpop.f32.mrf.mxu0
      %v3139 = vadd.f32 0.0, %v3138
      %v3140 = vpop.f32.mrf.mxu0
      %v3141 = vpop.f32.mrf.mxu0
      %v3142 = vadd.f32 0.0, %v3141
      %v3143 = vpop.f32.mrf.mxu0
      %3144 = vdwg.mxu0
      %v3145 = vadd.f32 %v2902, %v3083
      %v3146 = vadd.f32 %v2903, %v3086
      %v3147 = vadd.f32 %v2904, %v3091
      %v3148 = vadd.f32 %v2905, %v3094
      %v3149 = vadd.f32 %v2906, %v3099
      %v3150 = vadd.f32 %v2907, %v3102
      %v3151 = vadd.f32 %v2908, %v3107
      %v3152 = vadd.f32 %v2909, %v3110
      %v3153 = vadd.f32 %v2910, %v3115
      %v3154 = vadd.f32 %v2911, %v3118
      %v3155 = vadd.f32 %v2912, %v3123
      %v3156 = vadd.f32 %v2913, %v3126
      %v3157 = vadd.f32 %v2914, %v3131
      %v3158 = vadd.f32 %v2915, %v3134
      %v3159 = vadd.f32 %v2916, %v3139
      %v3160 = vadd.f32 %v2917, %v3142
      %s3161 = scalar_lea.vmem [#allocation3], 176
      %v3162 = vld [vmem:[%s3161] sm:$0xf]
      %v3163 = vld [vmem:[%s3161 + $0x4] sm:$0xf]
      %v3164 = vld [vmem:[%s3161 + $0x8] sm:$0xf]
      %v3165 = vld [vmem:[%s3161 + $0xc] sm:$0xf]
      %v3166 = vld [vmem:[%s3161 + $0x10] sm:$0xf]
      %v3167 = vld [vmem:[%s3161 + $0x14] sm:$0xf]
      %v3168 = vld [vmem:[%s3161 + $0x18] sm:$0xf]
      %v3169 = vld [vmem:[%s3161 + $0x1c] sm:$0xf]
      %v3170 = vld [vmem:[%s3161 + $0x20] sm:$0xf]
      %v3171 = vld [vmem:[%s3161 + $0x24] sm:$0xf]
      %v3172 = vld [vmem:[%s3161 + $0x28] sm:$0xf]
      %v3173 = vld [vmem:[%s3161 + $0x2c] sm:$0xf]
      %v3174 = vld [vmem:[%s3161 + $0x30] sm:$0xf]
      %v3175 = vld [vmem:[%s3161 + $0x34] sm:$0xf]
      %v3176 = vld [vmem:[%s3161 + $0x38] sm:$0xf]
      %v3177 = vld [vmem:[%s3161 + $0x3c] sm:$0xf]
      %s3178 = scalar_lea.vmem %s421, 512
      %v3179 = vld [vmem:[%s3178] sm:$0xf]
      %v3180 = vld [vmem:[%s3178 + $0x4] sm:$0xf]
      %v3181 = vld [vmem:[%s3178 + $0x8] sm:$0xf]
      %v3182 = vld [vmem:[%s3178 + $0xc] sm:$0xf]
      %v3183 = vld [vmem:[%s3178 + $0x10] sm:$0xf]
      %v3184 = vld [vmem:[%s3178 + $0x14] sm:$0xf]
      %v3185 = vld [vmem:[%s3178 + $0x18] sm:$0xf]
      %v3186 = vld [vmem:[%s3178 + $0x1c] sm:$0xf]
      %v3187 = vld [vmem:[%s3178 + $0x20] sm:$0xf]
      %v3188 = vld [vmem:[%s3178 + $0x24] sm:$0xf]
      %v3189 = vld [vmem:[%s3178 + $0x28] sm:$0xf]
      %v3190 = vld [vmem:[%s3178 + $0x2c] sm:$0xf]
      %v3191 = vld [vmem:[%s3178 + $0x30] sm:$0xf]
      %v3192 = vld [vmem:[%s3178 + $0x34] sm:$0xf]
      %v3193 = vld [vmem:[%s3178 + $0x38] sm:$0xf]
      %v3194 = vld [vmem:[%s3178 + $0x3c] sm:$0xf]
      %v3211 = vunpack.c.l.b16 %v3162
      %v3212 = vunpack.c.l.b16 %v3163
      %v3213 = vunpack.c.l.b16 %v3164
      %v3214 = vunpack.c.l.b16 %v3165
      %v3215 = vunpack.c.l.b16 %v3166
      %v3216 = vunpack.c.l.b16 %v3167
      %v3217 = vunpack.c.l.b16 %v3168
      %v3218 = vunpack.c.l.b16 %v3169
      %v3219 = vunpack.c.l.b16 %v3170
      %v3220 = vunpack.c.l.b16 %v3171
      %v3221 = vunpack.c.l.b16 %v3172
      %v3222 = vunpack.c.l.b16 %v3173
      %v3223 = vunpack.c.l.b16 %v3174
      %v3224 = vunpack.c.l.b16 %v3175
      %v3225 = vunpack.c.l.b16 %v3176
      %v3226 = vunpack.c.l.b16 %v3177
      %v3227 = vpack.c.b16 %v3212, %v3211
      %v3228 = vpack.c.b16 %v3214, %v3213
      %v3229 = vpack.c.b16 %v3216, %v3215
      %v3230 = vpack.c.b16 %v3218, %v3217
      %v3231 = vpack.c.b16 %v3220, %v3219
      %v3232 = vpack.c.b16 %v3222, %v3221
      %v3233 = vpack.c.b16 %v3224, %v3223
      %v3234 = vpack.c.b16 %v3226, %v3225
      %v3259 = vunpack.c.l.b16 %v3179
      %v3260 = vunpack.c.l.b16 %v3180
      %v3261 = vunpack.c.l.b16 %v3181
      %v3262 = vunpack.c.l.b16 %v3182
      %v3263 = vunpack.c.l.b16 %v3183
      %v3264 = vunpack.c.l.b16 %v3184
      %v3265 = vunpack.c.l.b16 %v3185
      %v3266 = vunpack.c.l.b16 %v3186
      %v3267 = vunpack.c.l.b16 %v3187
      %v3268 = vunpack.c.l.b16 %v3188
      %v3269 = vunpack.c.l.b16 %v3189
      %v3270 = vunpack.c.l.b16 %v3190
      %v3271 = vunpack.c.l.b16 %v3191
      %v3272 = vunpack.c.l.b16 %v3192
      %v3273 = vunpack.c.l.b16 %v3193
      %v3274 = vunpack.c.l.b16 %v3194
      %v3275 = vpack.c.b16 %v3260, %v3259
      %v3276 = vpack.c.b16 %v3262, %v3261
      %v3277 = vpack.c.b16 %v3264, %v3263
      %v3278 = vpack.c.b16 %v3266, %v3265
      %v3279 = vpack.c.b16 %v3268, %v3267
      %v3280 = vpack.c.b16 %v3270, %v3269
      %v3281 = vpack.c.b16 %v3272, %v3271
      %v3282 = vpack.c.b16 %v3274, %v3273
      %3291 = vmatprep.subr.bf16.mxu0 0
      %3292 = vmatpush1.bf16.msra.mxu0 %v3282
      %3293 = vmatprep.subr.bf16.mxu0 0
      %3294 = vmatpush1.bf16.msra.mxu0 %v3281
      %3295 = vmatprep.subr.bf16.mxu0 0
      %3296 = vmatpush1.bf16.msra.mxu0 %v3280
      %3297 = vmatprep.subr.bf16.mxu0 0
      %3298 = vmatpush1.bf16.msra.mxu0 %v3279
      %3299 = vmatprep.subr.bf16.mxu0 0
      %3300 = vmatpush1.bf16.msra.mxu0 %v3278
      %3301 = vmatprep.subr.bf16.mxu0 0
      %3302 = vmatpush1.bf16.msra.mxu0 %v3277
      %3303 = vmatprep.subr.bf16.mxu0 0
      %3304 = vmatpush1.bf16.msra.mxu0 %v3276
      %3305 = vmatprep.subr.bf16.mxu0 0
      %3306 = vmatpush1.bf16.msra.mxu0 %v3275
      %3307 = vmatprep.subr.bf16.mxu0 0
      %3308 = vmatpush2.bf16.msra.mxu0 0
      %3309 = vmatprep.subr.bf16.mxu0 0
      %3310 = vmatpush2.bf16.msra.mxu0 0
      %3311 = vmatprep.subr.bf16.mxu0 0
      %3312 = vmatpush2.bf16.msra.mxu0 0
      %3313 = vmatprep.subr.bf16.mxu0 0
      %3314 = vmatpush2.bf16.msra.mxu0 0
      %3315 = vmatprep.subr.bf16.mxu0 0
      %3316 = vmatpush2.bf16.msra.mxu0 0
      %3317 = vmatprep.subr.bf16.mxu0 0
      %3318 = vmatpush2.bf16.msra.mxu0 0
      %3319 = vmatprep.subr.bf16.mxu0 0
      %3320 = vmatpush2.bf16.msra.mxu0 0
      %3321 = vmatprep.subr.bf16.mxu0 0
      %3322 = vmatpush2.bf16.msra.mxu0 0
      %3323 = vmatprep.mubr.bf16.mxu0 0
      %3324 = vmatmul.mubr.bf16.gmra.mxu0 %v3227
      %v3325 = vpop.f32.mrf.mxu0
      %v3326 = vadd.f32 0.0, %v3325
      %v3327 = vpop.f32.mrf.mxu0
      %v3328 = vpop.f32.mrf.mxu0
      %v3329 = vadd.f32 0.0, %v3328
      %v3330 = vpop.f32.mrf.mxu0
      %3331 = vmatprep.mubr.bf16.mxu0 0
      %3332 = vmatmul.mubr.bf16.gmra.mxu0 %v3228
      %v3333 = vpop.f32.mrf.mxu0
      %v3334 = vadd.f32 0.0, %v3333
      %v3335 = vpop.f32.mrf.mxu0
      %v3336 = vpop.f32.mrf.mxu0
      %v3337 = vadd.f32 0.0, %v3336
      %v3338 = vpop.f32.mrf.mxu0
      %3339 = vmatprep.mubr.bf16.mxu0 0
      %3340 = vmatmul.mubr.bf16.gmra.mxu0 %v3229
      %v3341 = vpop.f32.mrf.mxu0
      %v3342 = vadd.f32 0.0, %v3341
      %v3343 = vpop.f32.mrf.mxu0
      %v3344 = vpop.f32.mrf.mxu0
      %v3345 = vadd.f32 0.0, %v3344
      %v3346 = vpop.f32.mrf.mxu0
      %3347 = vmatprep.mubr.bf16.mxu0 0
      %3348 = vmatmul.mubr.bf16.gmra.mxu0 %v3230
      %v3349 = vpop.f32.mrf.mxu0
      %v3350 = vadd.f32 0.0, %v3349
      %v3351 = vpop.f32.mrf.mxu0
      %v3352 = vpop.f32.mrf.mxu0
      %v3353 = vadd.f32 0.0, %v3352
      %v3354 = vpop.f32.mrf.mxu0
      %3355 = vmatprep.mubr.bf16.mxu0 0
      %3356 = vmatmul.mubr.bf16.gmra.mxu0 %v3231
      %v3357 = vpop.f32.mrf.mxu0
      %v3358 = vadd.f32 0.0, %v3357
      %v3359 = vpop.f32.mrf.mxu0
      %v3360 = vpop.f32.mrf.mxu0
      %v3361 = vadd.f32 0.0, %v3360
      %v3362 = vpop.f32.mrf.mxu0
      %3363 = vmatprep.mubr.bf16.mxu0 0
      %3364 = vmatmul.mubr.bf16.gmra.mxu0 %v3232
      %v3365 = vpop.f32.mrf.mxu0
      %v3366 = vadd.f32 0.0, %v3365
      %v3367 = vpop.f32.mrf.mxu0
      %v3368 = vpop.f32.mrf.mxu0
      %v3369 = vadd.f32 0.0, %v3368
      %v3370 = vpop.f32.mrf.mxu0
      %3371 = vmatprep.mubr.bf16.mxu0 0
      %3372 = vmatmul.mubr.bf16.gmra.mxu0 %v3233
      %v3373 = vpop.f32.mrf.mxu0
      %v3374 = vadd.f32 0.0, %v3373
      %v3375 = vpop.f32.mrf.mxu0
      %v3376 = vpop.f32.mrf.mxu0
      %v3377 = vadd.f32 0.0, %v3376
      %v3378 = vpop.f32.mrf.mxu0
      %3379 = vmatprep.mubr.bf16.mxu0 0
      %3380 = vmatmul.mubr.bf16.gmra.mxu0 %v3234
      %v3381 = vpop.f32.mrf.mxu0
      %v3382 = vadd.f32 0.0, %v3381
      %v3383 = vpop.f32.mrf.mxu0
      %v3384 = vpop.f32.mrf.mxu0
      %v3385 = vadd.f32 0.0, %v3384
      %v3386 = vpop.f32.mrf.mxu0
      %3387 = vdwg.mxu0
      %v3388 = vadd.f32 %v3145, %v3326
      %v3389 = vadd.f32 %v3146, %v3329
      %v3390 = vadd.f32 %v3147, %v3334
      %v3391 = vadd.f32 %v3148, %v3337
      %v3392 = vadd.f32 %v3149, %v3342
      %v3393 = vadd.f32 %v3150, %v3345
      %v3394 = vadd.f32 %v3151, %v3350
      %v3395 = vadd.f32 %v3152, %v3353
      %v3396 = vadd.f32 %v3153, %v3358
      %v3397 = vadd.f32 %v3154, %v3361
      %v3398 = vadd.f32 %v3155, %v3366
      %v3399 = vadd.f32 %v3156, %v3369
      %v3400 = vadd.f32 %v3157, %v3374
      %v3401 = vadd.f32 %v3158, %v3377
      %v3402 = vadd.f32 %v3159, %v3382
      %v3403 = vadd.f32 %v3160, %v3385
      %v3404 = vmax.f32 %v3388, 0.0
      %v3405 = vmax.f32 %v3389, 0.0
      %v3406 = vmax.f32 %v3390, 0.0
      %v3407 = vmax.f32 %v3391, 0.0
      %v3408 = vmax.f32 %v3392, 0.0
      %v3409 = vmax.f32 %v3393, 0.0
      %v3410 = vmax.f32 %v3394, 0.0
      %v3411 = vmax.f32 %v3395, 0.0
      %v3412 = vmax.f32 %v3396, 0.0
      %v3413 = vmax.f32 %v3397, 0.0
      %v3414 = vmax.f32 %v3398, 0.0
      %v3415 = vmax.f32 %v3399, 0.0
      %v3416 = vmax.f32 %v3400, 0.0
      %v3417 = vmax.f32 %v3401, 0.0
      %v3418 = vmax.f32 %v3402, 0.0
      %v3419 = vmax.f32 %v3403, 0.0
      %v3420 = vpack.c.bf16 %v3405, %v3404
      %v3421 = vpack.c.bf16 %v3407, %v3406
      %v3422 = vpack.c.bf16 %v3409, %v3408
      %v3423 = vpack.c.bf16 %v3411, %v3410
      %v3424 = vpack.c.bf16 %v3413, %v3412
      %v3425 = vpack.c.bf16 %v3415, %v3414
      %v3426 = vpack.c.bf16 %v3417, %v3416
      %v3427 = vpack.c.bf16 %v3419, %v3418
      %v3436 = vunpack.c.l.b16 %v3420
      %v3437 = vunpack.c.h.b16 %v3420
      %v3438 = vunpack.c.l.b16 %v3421
      %v3439 = vunpack.c.h.b16 %v3421
      %v3440 = vunpack.c.l.b16 %v3422
      %v3441 = vunpack.c.h.b16 %v3422
      %v3442 = vunpack.c.l.b16 %v3423
      %v3443 = vunpack.c.h.b16 %v3423
      %v3444 = vunpack.c.l.b16 %v3424
      %v3445 = vunpack.c.h.b16 %v3424
      %v3446 = vunpack.c.l.b16 %v3425
      %v3447 = vunpack.c.h.b16 %v3425
      %v3448 = vunpack.c.l.b16 %v3426
      %v3449 = vunpack.c.h.b16 %v3426
      %v3450 = vunpack.c.l.b16 %v3427
      %v3451 = vunpack.c.h.b16 %v3427
      %v3452 = vpack.c.b16 %v3436, %v3436
      %v3453 = vpack.c.b16 %v3437, %v3437
      %v3454 = vpack.c.b16 %v3438, %v3438
      %v3455 = vpack.c.b16 %v3439, %v3439
      %v3456 = vpack.c.b16 %v3440, %v3440
      %v3457 = vpack.c.b16 %v3441, %v3441
      %v3458 = vpack.c.b16 %v3442, %v3442
      %v3459 = vpack.c.b16 %v3443, %v3443
      %v3460 = vpack.c.b16 %v3444, %v3444
      %v3461 = vpack.c.b16 %v3445, %v3445
      %v3462 = vpack.c.b16 %v3446, %v3446
      %v3463 = vpack.c.b16 %v3447, %v3447
      %v3464 = vpack.c.b16 %v3448, %v3448
      %v3465 = vpack.c.b16 %v3449, %v3449
      %v3466 = vpack.c.b16 %v3450, %v3450
      %v3467 = vpack.c.b16 %v3451, %v3451
      %3484 = vst [vmem:[%s437] sm:$0xf] %v3452
      %3485 = vst [vmem:[%s437 + $0x4] sm:$0xf] %v3453
      %3486 = vst [vmem:[%s437 + $0x8] sm:$0xf] %v3454
      %3487 = vst [vmem:[%s437 + $0xc] sm:$0xf] %v3455
      %3488 = vst [vmem:[%s437 + $0x10] sm:$0xf] %v3456
      %3489 = vst [vmem:[%s437 + $0x14] sm:$0xf] %v3457
      %3490 = vst [vmem:[%s437 + $0x18] sm:$0xf] %v3458
      %3491 = vst [vmem:[%s437 + $0x1c] sm:$0xf] %v3459
      %3492 = vst [vmem:[%s437 + $0x20] sm:$0xf] %v3460
      %3493 = vst [vmem:[%s437 + $0x24] sm:$0xf] %v3461
      %3494 = vst [vmem:[%s437 + $0x28] sm:$0xf] %v3462
      %3495 = vst [vmem:[%s437 + $0x2c] sm:$0xf] %v3463
      %3496 = vst [vmem:[%s437 + $0x30] sm:$0xf] %v3464
      %3497 = vst [vmem:[%s437 + $0x34] sm:$0xf] %v3465
      %3498 = vst [vmem:[%s437 + $0x38] sm:$0xf] %v3466
      %3499 = vst [vmem:[%s437 + $0x3c] sm:$0xf] %v3467
      %s3500 = smul.u32 8, %s22
      %p3501 = scmp.lt.s32.totalorder %s21, 1
      %s3502 = scalar_select %p3501, %s21, 1
      %p3503 = scmp.lt.s32.totalorder %s3500, 15
      %s3504 = scalar_select %p3503, %s3500, 15
      %p3505 = scmp.lt.s32.totalorder %s23, 0
      %s3506 = scalar_select %p3505, %s23, 0
      %s3507 = smul.addr %s3504, 2
      %s3508 = sadd.s32 %s3506, %s3507
      %s3509 = smul.addr %s3502, 32
      %s3510 = sadd.s32 %s3508, %s3509
      %s3511 = smul.addr %s3510, 4
      %s3512 = scalar_lea.vmem %s5, %s3511
      // Predicated region
      $region45: #{double_conv_forward.2} parent=39 // pred_check
        %p3513 = pneg %p209
      $region46: #{double_conv_forward.2} parent=39 // pred_check_branch
        %3515 = sbr.rel (%p3513) target = $region48
      $region47: #{double_conv_forward.2} parent=39 // pred_region
        %s3516 = smul.u32 8, %s22
      $region48: #{double_conv_forward.2} parent=39 // pred_fallthru
        _
    $region40: #{double_conv_forward.2} parent=5 // pred_fallthru
      _
    %p3517 = scmp.le.s32.totalorder 2, %s11
    // Predicated region
    $region49: #{double_conv_forward.2} parent=5 // pred_check
      %p3518 = pneg %p3517
    $region50: #{double_conv_forward.2} parent=5 // pred_check_branch
      %3520 = sbr.rel (%p3518) target = $region52
    $region51: #{double_conv_forward.2} parent=5 // pred_region
      %s3521 = ssub.s32 %s11, 2
      // Predicated region
      $region53: #{double_conv_forward.2} parent=51 // pred_check
        %p3522 = pneg %p215
      $region54: #{double_conv_forward.2} parent=51 // pred_check_branch
        %3524 = sbr.rel (%p3522) target = $region56
      $region55: #{double_conv_forward.2} parent=51 // pred_region
        %s3525 = smul.u32 8, %s25
        %p3526 = scmp.lt.s32.totalorder %s24, 1
        %s3527 = scalar_select %p3526, %s24, 1
        %p3528 = scmp.lt.s32.totalorder %s3525, 15
        %s3529 = scalar_select %p3528, %s3525, 15
        %p3530 = scmp.lt.s32.totalorder %s26, 0
        %s3531 = scalar_select %p3530, %s26, 0
        %s3532 = smul.addr %s3529, 2
        %s3533 = sadd.s32 %s3531, %s3532
        %s3534 = smul.addr %s3527, 32
        %s3535 = sadd.s32 %s3533, %s3534
        %s3536 = smul.addr %s3535, 4
        %s3537 = scalar_lea.vmem %s5, %s3536
      $region56: #{double_conv_forward.2} parent=51 // pred_fallthru
        _
    $region52: #{double_conv_forward.2} parent=5 // pred_fallthru
      _
  $region6: #{double_conv_forward.2} parent=0 // loop_footer
    %s15 = sadd.s32 1, %s11
  $region7: #{double_conv_forward.2} parent=0 // loop_footer_branch
    %10 = sbr.rel target = $region3
  $region8: #{double_conv_forward.2} parent=0 // loop_exit
    _

</llo_original>
